<compile_context>
chip_gen: v5e
topology: v5e:2x2
jax: 0.10.0
libtpu: 0.0.40
codegen_flags: <defaults>
</compile_context>

<pallas_src>
import jax
import jax.numpy as jnp
from jax.experimental import pallas as pl
from jax.experimental.pallas import tpu as pltpu

D_IN = 512
D_HID = 512
NUM_CLASSES = 1000            # PyTorch default num_classes
NUM_CLASSES_PAD = 1024        # padded to a multiple of 128 lanes


def mlp_kernel(x_ref, w1_ref, b1_ref, w2_ref, b2_ref, o_ref):
    # x: (tile_b, 512) f32 -> bf16 for the MXU; weights already stored bf16.
    x = x_ref[...].astype(jnp.bfloat16)
    h = jnp.dot(x, w1_ref[...], preferred_element_type=jnp.float32) + b1_ref[...]
    h = jnp.maximum(h, 0.0)                                   # ReLU (f32)
    out = jnp.dot(h.astype(jnp.bfloat16), w2_ref[...],
                  preferred_element_type=jnp.float32) + b2_ref[...]
    o_ref[...] = out.astype(o_ref.dtype)


def prepare_params(w1, b1, w2, b2):
    """One-time weight preparation (keep OUT of the per-call hot path).

    w1: (512, 512) stored (in, out);  b1: (512,)
    w2: (512, NUM_CLASSES);           b2: (NUM_CLASSES,)
    Returns bf16 weights with the head padded to NUM_CLASSES_PAD and f32 2-D biases.
    """
    w1p = w1.astype(jnp.bfloat16)
    b1p = b1.reshape(1, D_HID).astype(jnp.float32)
    w2p = (jnp.zeros((D_HID, NUM_CLASSES_PAD), jnp.bfloat16)
           .at[:, :NUM_CLASSES].set(w2.astype(jnp.bfloat16)))
    b2p = (jnp.zeros((1, NUM_CLASSES_PAD), jnp.float32)
           .at[:, :NUM_CLASSES].set(b2.reshape(1, NUM_CLASSES).astype(jnp.float32)))
    return w1p, b1p, w2p, b2p


def _weight_spec(shape, buffer_count):
    if buffer_count is None:
        return pl.BlockSpec(shape, lambda i: (0, 0))
    return pl.BlockSpec(shape, lambda i: (0, 0),
                        pipeline_mode=pl.Buffered(buffer_count))


def _build_call(b_padded, tile_b, weight_buffer_count):
    return pl.pallas_call(
        mlp_kernel,
        out_shape=jax.ShapeDtypeStruct((b_padded, NUM_CLASSES_PAD), jnp.float32),
        grid_spec=pltpu.PrefetchScalarGridSpec(
            num_scalar_prefetch=0,
            grid=(b_padded // tile_b,),
            in_specs=[
                pl.BlockSpec((tile_b, D_IN), lambda i: (i, 0)),                # emb tile
                _weight_spec((D_IN, D_HID), weight_buffer_count),              # W1 (bf16)
                _weight_spec((1, D_HID), weight_buffer_count),                 # b1 (f32)
                _weight_spec((D_HID, NUM_CLASSES_PAD), weight_buffer_count),   # W2 (bf16, padded)
                _weight_spec((1, NUM_CLASSES_PAD), weight_buffer_count),       # b2 (f32, padded)
            ],
            out_specs=pl.BlockSpec((tile_b, NUM_CLASSES_PAD), lambda i: (i, 0)),
        ),
        compiler_params=pltpu.CompilerParams(
            dimension_semantics=("parallel",),
            vmem_limit_bytes=32 * 1024 * 1024,
        ),
    )


def _choose_tile_b(batch, requested):
    # Rows per grid step: multiple of 8 (sublane), at most `requested`, and — when
    # the batch allows — at most batch//2 so the "parallel" axis has >= 2 steps
    # (both v7x TensorCores get work).
    if batch >= 16:
        cap = max(8, (batch // 2) // 8 * 8)
    else:
        cap = 8
    return max(8, min(requested, cap))


def vqa_final_model(emb, params, *, tile_b=128):
    """emb: (B, 512) float32; params from prepare_params(). Returns (B, NUM_CLASSES) f32."""
    B, d = emb.shape
    assert d == D_IN
    w1p, b1p, w2p, b2p = params

    tb = _choose_tile_b(B, tile_b)
    b_padded = tb * pl.cdiv(B, tb)
    if b_padded != B:                       # support arbitrary batch sizes
        emb = jnp.pad(emb, ((0, b_padded - B), (0, 0)))

    try:
        out_padded = _build_call(b_padded, tb, weight_buffer_count=1)(
            emb, w1p, b1p, w2p, b2p)
    except Exception:
        # Fallback: default (double-buffered) weight specs if per-operand
        # pipeline_mode is not supported by this Pallas build.
        out_padded = _build_call(b_padded, tb, weight_buffer_count=None)(
            emb, w1p, b1p, w2p, b2p)

    # Slice back to the module's logical output.  (If the downstream consumer can
    # work on the padded (B, 1024) logits, skip this slice to save an HBM pass.)
    return out_padded[:B, :NUM_CLASSES]


if __name__ == "__main__":
    key = jax.random.PRNGKey(0)
    k_emb, k1, k2, k3, k4 = jax.random.split(key, 5)

    B = 8                                  # small example batch
    emb = jax.random.normal(k_emb, (B, D_IN), jnp.float32)

    # nn.Linear-style init (uniform +-1/sqrt(fan_in)); weights stored (in, out),
    # i.e. the transpose of PyTorch's (out, in) layout.
    bound1 = 1.0 / jnp.sqrt(D_IN)
    bound2 = 1.0 / jnp.sqrt(D_HID)
    w1 = jax.random.uniform(k1, (D_IN, D_HID), jnp.float32, -bound1, bound1)
    b1 = jax.random.uniform(k2, (D_HID,), jnp.float32, -bound1, bound1)
    w2 = jax.random.uniform(k3, (D_HID, NUM_CLASSES), jnp.float32, -bound2, bound2)
    b2 = jax.random.uniform(k4, (NUM_CLASSES,), jnp.float32, -bound2, bound2)

    params = prepare_params(w1, b1, w2, b2)     # one-time, outside the call path

    out = vqa_final_model(emb, params)
    out = jax.block_until_ready(out)
    assert out.shape == (B, NUM_CLASSES)

    # Pure-JAX reference with the same bf16 rounding of matmul operands
    # (the MXU accumulates in f32, so only operand rounding differs).
    def bf(x):
        return x.astype(jnp.bfloat16).astype(jnp.float32)

    h_ref = jnp.maximum(bf(emb) @ bf(w1) + b1, 0.0)
    ref = bf(h_ref) @ bf(w2) + b2

    assert jnp.allclose(out, ref, atol=2e-2, rtol=2e-2), \
        float(jnp.max(jnp.abs(out - ref)))

    print("KERNEL_OK")
</pallas_src>

<mosaic_0001>
module attributes {stable_mosaic.version = 11 : i64} {
  func.func @mlp_kernel(%arg0: i32, %arg1: memref<8x512xf32, #tpu.memory_space<vmem>>, %arg2: memref<512x512xbf16, #tpu.memory_space<vmem>>, %arg3: memref<1x512xf32, #tpu.memory_space<vmem>>, %arg4: memref<512x1024xbf16, #tpu.memory_space<vmem>>, %arg5: memref<1x1024xf32, #tpu.memory_space<vmem>>, %arg6: memref<8x1024xf32, #tpu.memory_space<vmem>>) attributes {dimension_semantics = [#tpu.dimension_semantics<parallel>], iteration_bounds = array<i64: 1>, scalar_prefetch = 0 : i64, scratch_operands = 0 : i64, tpu.core_type = #tpu.core_type<tc>, window_params = [{transform_indices = @transform_0, window_bounds = array<i64: 8, 512>}, {pipeline_mode = #tpu.pipeline_mode<synchronous>, transform_indices = @transform_1, window_bounds = array<i64: 512, 512>}, {pipeline_mode = #tpu.pipeline_mode<synchronous>, transform_indices = @transform_2, window_bounds = array<i64: 1, 512>}, {pipeline_mode = #tpu.pipeline_mode<synchronous>, transform_indices = @transform_3, window_bounds = array<i64: 512, 1024>}, {pipeline_mode = #tpu.pipeline_mode<synchronous>, transform_indices = @transform_4, window_bounds = array<i64: 1, 1024>}, {transform_indices = @transform_5, window_bounds = array<i64: 8, 1024>}]} {
    %c0 = arith.constant 0 : index
    %c0_0 = arith.constant 0 : index
    %0 = vector.load %arg1[%c0, %c0_0] : memref<8x512xf32, #tpu.memory_space<vmem>>, vector<8x512xf32>
    %1 = arith.truncf %0 : vector<8x512xf32> to vector<8x512xbf16>
    %c0_1 = arith.constant 0 : index
    %c0_2 = arith.constant 0 : index
    %2 = vector.load %arg2[%c0_1, %c0_2] : memref<512x512xbf16, #tpu.memory_space<vmem>>, vector<512x512xbf16>
    %cst = arith.constant dense<0.000000e+00> : vector<8x512xf32>
    %3 = tpu.matmul %1, %2, %cst {dimension_numbers = #tpu.dot_dimension_numbers<[1], [0], [0], [1], [0, 0, 1, 1], [], []>} : vector<8x512xbf16>, vector<512x512xbf16>, vector<8x512xf32> -> vector<8x512xf32>
    %c0_3 = arith.constant 0 : index
    %c0_4 = arith.constant 0 : index
    %4 = vector.load %arg3[%c0_3, %c0_4] : memref<1x512xf32, #tpu.memory_space<vmem>>, vector<1x512xf32>
    %5 = vector.broadcast %4 : vector<1x512xf32> to vector<8x512xf32>
    %6 = arith.addf %3, %5 : vector<8x512xf32>
    %cst_5 = arith.constant 0.000000e+00 : f32
    %7 = vector.broadcast %cst_5 : f32 to vector<8x512xf32>
    %8 = arith.maximumf %6, %7 : vector<8x512xf32>
    %9 = arith.truncf %8 : vector<8x512xf32> to vector<8x512xbf16>
    %c0_6 = arith.constant 0 : index
    %c0_7 = arith.constant 0 : index
    %10 = vector.load %arg4[%c0_6, %c0_7] : memref<512x1024xbf16, #tpu.memory_space<vmem>>, vector<512x1024xbf16>
    %cst_8 = arith.constant dense<0.000000e+00> : vector<8x1024xf32>
    %11 = tpu.matmul %9, %10, %cst_8 {dimension_numbers = #tpu.dot_dimension_numbers<[1], [0], [0], [1], [0, 0, 1, 1], [], []>} : vector<8x512xbf16>, vector<512x1024xbf16>, vector<8x1024xf32> -> vector<8x1024xf32>
    %c0_9 = arith.constant 0 : index
    %c0_10 = arith.constant 0 : index
    %12 = vector.load %arg5[%c0_9, %c0_10] : memref<1x1024xf32, #tpu.memory_space<vmem>>, vector<1x1024xf32>
    %13 = vector.broadcast %12 : vector<1x1024xf32> to vector<8x1024xf32>
    %14 = arith.addf %11, %13 : vector<8x1024xf32>
    %c0_11 = arith.constant 0 : index
    %c0_12 = arith.constant 0 : index
    %15 = vector.load %arg6[%c0_11, %c0_12] : memref<8x1024xf32, #tpu.memory_space<vmem>>, vector<8x1024xf32>
    tpu.vector_store %arg6[%c0_11, %c0_12], %14 {strides = array<i32>} : memref<8x1024xf32, #tpu.memory_space<vmem>>, vector<8x1024xf32>,
    return
  }
  func.func @transform_0(%arg0: i32) -> (i32, i32) {
    %c0_i32 = arith.constant 0 : i32
    %c0_i32_0 = arith.constant 0 : i32
    return %arg0, %c0_i32 : i32, i32
  }
  func.func @transform_1(%arg0: i32) -> (i32, i32) {
    %c0_i32 = arith.constant 0 : i32
    %c0_i32_0 = arith.constant 0 : i32
    %c0_i32_1 = arith.constant 0 : i32
    return %c0_i32, %c0_i32_0 : i32, i32
  }
  func.func @transform_2(%arg0: i32) -> (i32, i32) {
    %c0_i32 = arith.constant 0 : i32
    %c0_i32_0 = arith.constant 0 : i32
    %c0_i32_1 = arith.constant 0 : i32
    return %c0_i32, %c0_i32_0 : i32, i32
  }
  func.func @transform_3(%arg0: i32) -> (i32, i32) {
    %c0_i32 = arith.constant 0 : i32
    %c0_i32_0 = arith.constant 0 : i32
    %c0_i32_1 = arith.constant 0 : i32
    return %c0_i32, %c0_i32_0 : i32, i32
  }
  func.func @transform_4(%arg0: i32) -> (i32, i32) {
    %c0_i32 = arith.constant 0 : i32
    %c0_i32_0 = arith.constant 0 : i32
    %c0_i32_1 = arith.constant 0 : i32
    return %c0_i32, %c0_i32_0 : i32, i32
  }
  func.func @transform_5(%arg0: i32) -> (i32, i32) {
    %c0_i32 = arith.constant 0 : i32
    %c0_i32_0 = arith.constant 0 : i32
    return %arg0, %c0_i32 : i32, i32
  }
}

module attributes {stable_mosaic.version = 11 : i64} {
  func.func @mlp_kernel(%arg0: i32, %arg1: memref<8x512xf32, #tpu.memory_space<vmem>>, %arg2: memref<512x512xbf16, #tpu.memory_space<vmem>>, %arg3: memref<1x512xf32, #tpu.memory_space<vmem>>, %arg4: memref<512x1024xbf16, #tpu.memory_space<vmem>>, %arg5: memref<1x1024xf32, #tpu.memory_space<vmem>>, %arg6: memref<8x1024xf32, #tpu.memory_space<vmem>>) attributes {dimension_semantics = [#tpu.dimension_semantics<parallel>], iteration_bounds = array<i64: 1>, scalar_prefetch = 0 : i64, scratch_operands = 0 : i64, tpu.core_type = #tpu.core_type<tc>, window_params = [{transform_indices = @transform_0, window_bounds = array<i64: 8, 512>}, {pipeline_mode = #tpu.pipeline_mode<synchronous>, transform_indices = @transform_1, window_bounds = array<i64: 512, 512>}, {pipeline_mode = #tpu.pipeline_mode<synchronous>, transform_indices = @transform_2, window_bounds = array<i64: 1, 512>}, {pipeline_mode = #tpu.pipeline_mode<synchronous>, transform_indices = @transform_3, window_bounds = array<i64: 512, 1024>}, {pipeline_mode = #tpu.pipeline_mode<synchronous>, transform_indices = @transform_4, window_bounds = array<i64: 1, 1024>}, {transform_indices = @transform_5, window_bounds = array<i64: 8, 1024>}]} {
    %c0 = arith.constant 0 : index
    %c0_0 = arith.constant 0 : index
    %0 = vector.load %arg1[%c0, %c0_0] : memref<8x512xf32, #tpu.memory_space<vmem>>, vector<8x512xf32>
    %1 = arith.truncf %0 : vector<8x512xf32> to vector<8x512xbf16>
    %c0_1 = arith.constant 0 : index
    %c0_2 = arith.constant 0 : index
    %2 = vector.load %arg2[%c0_1, %c0_2] : memref<512x512xbf16, #tpu.memory_space<vmem>>, vector<512x512xbf16>
    %cst = arith.constant dense<0.000000e+00> : vector<8x512xf32>
    %3 = tpu.matmul %1, %2, %cst {dimension_numbers = #tpu.dot_dimension_numbers<[1], [0], [0], [1], [0, 0, 1, 1], [], []>} : vector<8x512xbf16>, vector<512x512xbf16>, vector<8x512xf32> -> vector<8x512xf32>
    %c0_3 = arith.constant 0 : index
    %c0_4 = arith.constant 0 : index
    %4 = vector.load %arg3[%c0_3, %c0_4] : memref<1x512xf32, #tpu.memory_space<vmem>>, vector<1x512xf32>
    %5 = vector.broadcast %4 : vector<1x512xf32> to vector<8x512xf32>
    %6 = arith.addf %3, %5 : vector<8x512xf32>
    %cst_5 = arith.constant 0.000000e+00 : f32
    %7 = vector.broadcast %cst_5 : f32 to vector<8x512xf32>
    %8 = arith.maximumf %6, %7 : vector<8x512xf32>
    %9 = arith.truncf %8 : vector<8x512xf32> to vector<8x512xbf16>
    %c0_6 = arith.constant 0 : index
    %c0_7 = arith.constant 0 : index
    %10 = vector.load %arg4[%c0_6, %c0_7] : memref<512x1024xbf16, #tpu.memory_space<vmem>>, vector<512x1024xbf16>
    %cst_8 = arith.constant dense<0.000000e+00> : vector<8x1024xf32>
    %11 = tpu.matmul %9, %10, %cst_8 {dimension_numbers = #tpu.dot_dimension_numbers<[1], [0], [0], [1], [0, 0, 1, 1], [], []>} : vector<8x512xbf16>, vector<512x1024xbf16>, vector<8x1024xf32> -> vector<8x1024xf32>
    %c0_9 = arith.constant 0 : index
    %c0_10 = arith.constant 0 : index
    %12 = vector.load %arg5[%c0_9, %c0_10] : memref<1x1024xf32, #tpu.memory_space<vmem>>, vector<1x1024xf32>
    %13 = vector.broadcast %12 : vector<1x1024xf32> to vector<8x1024xf32>
    %14 = arith.addf %11, %13 : vector<8x1024xf32>
    %c0_11 = arith.constant 0 : index
    %c0_12 = arith.constant 0 : index
    %15 = vector.load %arg6[%c0_11, %c0_12] : memref<8x1024xf32, #tpu.memory_space<vmem>>, vector<8x1024xf32>
    tpu.vector_store %arg6[%c0_11, %c0_12], %14 {strides = array<i32>} : memref<8x1024xf32, #tpu.memory_space<vmem>>, vector<8x1024xf32>,
    return
  }
  func.func @transform_0(%arg0: i32) -> (i32, i32) {
    %c0_i32 = arith.constant 0 : i32
    %c0_i32_0 = arith.constant 0 : i32
    return %arg0, %c0_i32 : i32, i32
  }
  func.func @transform_1(%arg0: i32) -> (i32, i32) {
    %c0_i32 = arith.constant 0 : i32
    %c0_i32_0 = arith.constant 0 : i32
    %c0_i32_1 = arith.constant 0 : i32
    return %c0_i32, %c0_i32_0 : i32, i32
  }
  func.func @transform_2(%arg0: i32) -> (i32, i32) {
    %c0_i32 = arith.constant 0 : i32
    %c0_i32_0 = arith.constant 0 : i32
    %c0_i32_1 = arith.constant 0 : i32
    return %c0_i32, %c0_i32_0 : i32, i32
  }
  func.func @transform_3(%arg0: i32) -> (i32, i32) {
    %c0_i32 = arith.constant 0 : i32
    %c0_i32_0 = arith.constant 0 : i32
    %c0_i32_1 = arith.constant 0 : i32
    return %c0_i32, %c0_i32_0 : i32, i32
  }
  func.func @transform_4(%arg0: i32) -> (i32, i32) {
    %c0_i32 = arith.constant 0 : i32
    %c0_i32_0 = arith.constant 0 : i32
    %c0_i32_1 = arith.constant 0 : i32
    return %c0_i32, %c0_i32_0 : i32, i32
  }
  func.func @transform_5(%arg0: i32) -> (i32, i32) {
    %c0_i32 = arith.constant 0 : i32
    %c0_i32_0 = arith.constant 0 : i32
    return %arg0, %c0_i32 : i32, i32
  }
}

</mosaic_0001>

<llo_original>
// kernel: tpu_custom_call.1
$region0: #{tpu_custom_call.1}
  #allocation0 [shape = 'u32[]', space=smem, size = 0x4, offset = 0x4, fixed_abs, tag = 'smem constant byte address 0x4 - core index']
  #allocation1 [shape = 'u32[72,128]{1,0:T(1,128)}', space=vmem, size = 0x9000, scoped, tag = 'internal scratch']
  %s0 = inlined_call_operand.hbm [shape: f32[8,512], index: 0, kind: input, shape index: {}]
  %s1 = inlined_call_operand.hbm [shape: bf16[512,512], index: 1, kind: input, shape index: {}]
  %s2 = inlined_call_operand.hbm [shape: f32[1,512], index: 2, kind: input, shape index: {}]
  %s3 = inlined_call_operand.hbm [shape: bf16[512,1024], index: 3, kind: input, shape index: {}]
  %s4 = inlined_call_operand.hbm [shape: f32[1,1024], index: 4, kind: input, shape index: {}]
  %s5 = inlined_call_operand.hbm [shape: f32[8,1024], index: 5, kind: output, shape index: {}]
  %s6 = sld [smem:[#allocation0]]
  $region50: #{tpu_custom_call.1} parent=0
    _
  %s8 = ssub.s32 1, %s6
  %s9 = scalar_select 0, %s8, %s6
  $region1: #{tpu_custom_call.1} parent=0
    #allocation2 [shape = 'u8[16384]{0}', space=vmem, size = 0x4000, scoped, tag = 'input window, operand 0, single buffered']
    #allocation3 [shape = 's32[1]{0}', space=sflag, size = 0x4, scoped, tag = 'scoped memory for tpu_custom_call.1']
    #allocation4 [shape = 's32[1]{0}', space=sflag, size = 0x4, scoped, tag = 'scoped memory for tpu_custom_call.1']
    #allocation5 [shape = 'u8[524288]{0}', space=vmem, size = 0x80000, scoped, tag = 'input window, operand 1, single buffered']
    #allocation6 [shape = 's32[1]{0}', space=sflag, size = 0x4, scoped, tag = 'scoped memory for tpu_custom_call.1']
    #allocation7 [shape = 'u8[2048]{0}', space=vmem, size = 0x800, scoped, tag = 'input window, operand 2, single buffered']
    #allocation8 [shape = 'u8[1048576]{0}', space=vmem, size = 0x100000, scoped, tag = 'input window, operand 3, single buffered']
    #allocation9 [shape = 's32[1]{0}', space=sflag, size = 0x4, scoped, tag = 'scoped memory for tpu_custom_call.1']
    #allocation10 [shape = 'u8[4096]{0}', space=vmem, size = 0x1000, scoped, tag = 'input window, operand 4, single buffered']
    #allocation11 [shape = 'u8[32768]{0}', space=vmem, size = 0x8000, scoped, tag = 'output window, operand 0, single buffered']
    %10 = vsyncpa [#allocation3], 0
    %11 = vsyncpa [#allocation6], 0
    %12 = vsyncpa [#allocation9], 0
    %13 = vsyncpa [#allocation4], 0
    // Predicated region
    $region2: #{tpu_custom_call.1} parent=1 // pred_check
      _
    $region3: #{tpu_custom_call.1} parent=1 // pred_check_branch
      %15 = sbr.rel (0) target = $region5
    $region4: #{tpu_custom_call.1} parent=1 // pred_region
      %17 = vsyncadd [#allocation3], 0
      %s19 = sshll.u32 %s0, 4
      %s20 = int_to_ptr.hbm [resolvable:$true] %s19
      %s21 = sshll.u32 [#allocation2], 4
      %s22 = int_to_ptr.vmem [resolvable:$true] %s21
      %24 = dma.hbm_to_vmem [thread:$0]  %s20, 512, %s22, [#allocation3]
    $region5: #{tpu_custom_call.1} parent=1 // pred_fallthru
      _
    // Predicated region
    $region6: #{tpu_custom_call.1} parent=1 // pred_check
      _
    $region7: #{tpu_custom_call.1} parent=1 // pred_check_branch
      %26 = sbr.rel (0) target = $region9
    $region8: #{tpu_custom_call.1} parent=1 // pred_region
      %28 = vsyncadd [#allocation6], 0
      %s29 = sshll.u32 %s1, 4
      %s30 = int_to_ptr.hbm [resolvable:$true] %s29
      %s31 = sshll.u32 [#allocation5], 4
      %s32 = int_to_ptr.vmem [resolvable:$true] %s31
      %37 = dma.hbm_to_vmem [thread:$0]  %s30, 16384, %s32, [#allocation6], 256, 256, 16
    $region9: #{tpu_custom_call.1} parent=1 // pred_fallthru
      _
    // Predicated region
    $region10: #{tpu_custom_call.1} parent=1 // pred_check
      _
    $region11: #{tpu_custom_call.1} parent=1 // pred_check_branch
      %39 = sbr.rel (0) target = $region13
    $region12: #{tpu_custom_call.1} parent=1 // pred_region
      %41 = vsyncadd [#allocation6], 0
      %s43 = sshll.u32 %s2, 4
      %s44 = int_to_ptr.hbm [resolvable:$true] %s43
      %s45 = sshll.u32 [#allocation7], 4
      %s46 = int_to_ptr.vmem [resolvable:$true] %s45
      %48 = dma.hbm_to_vmem [thread:$0]  %s44, 64, %s46, [#allocation6]
    $region13: #{tpu_custom_call.1} parent=1 // pred_fallthru
      _
    // Predicated region
    $region14: #{tpu_custom_call.1} parent=1 // pred_check
      _
    $region15: #{tpu_custom_call.1} parent=1 // pred_check_branch
      %50 = sbr.rel (0) target = $region17
    $region16: #{tpu_custom_call.1} parent=1 // pred_region
      %52 = vsyncadd [#allocation9], 0
      %s53 = sshll.u32 %s3, 4
      %s54 = int_to_ptr.hbm [resolvable:$true] %s53
      %s55 = sshll.u32 [#allocation8], 4
      %s56 = int_to_ptr.vmem [resolvable:$true] %s55
      %61 = dma.hbm_to_vmem [thread:$0]  %s54, 32768, %s56, [#allocation9], 512, 512, 32
    $region17: #{tpu_custom_call.1} parent=1 // pred_fallthru
      _
    // Predicated region
    $region18: #{tpu_custom_call.1} parent=1 // pred_check
      _
    $region19: #{tpu_custom_call.1} parent=1 // pred_check_branch
      %63 = sbr.rel (0) target = $region21
    $region20: #{tpu_custom_call.1} parent=1 // pred_region
      %65 = vsyncadd [#allocation9], 0
      %s67 = sshll.u32 %s4, 4
      %s68 = int_to_ptr.hbm [resolvable:$true] %s67
      %s69 = sshll.u32 [#allocation10], 4
      %s70 = int_to_ptr.vmem [resolvable:$true] %s69
      %72 = dma.hbm_to_vmem [thread:$0]  %s68, 128, %s70, [#allocation9]
    $region21: #{tpu_custom_call.1} parent=1 // pred_fallthru
      _
    // Predicated region
    $region22: #{tpu_custom_call.1} parent=1 // pred_check
      _
    $region23: #{tpu_custom_call.1} parent=1 // pred_check_branch
      %74 = sbr.rel (0) target = $region25
    $region24: #{tpu_custom_call.1} parent=1 // pred_region
      %76 = dma.done [#allocation3], 512
    $region25: #{tpu_custom_call.1} parent=1 // pred_fallthru
      _
    // Predicated region
    $region26: #{tpu_custom_call.1} parent=1 // pred_check
      _
    $region27: #{tpu_custom_call.1} parent=1 // pred_check_branch
      %78 = sbr.rel (0) target = $region29
    $region28: #{tpu_custom_call.1} parent=1 // pred_region
      %80 = dma.done [#allocation6], 16384
    $region29: #{tpu_custom_call.1} parent=1 // pred_fallthru
      _
    // Predicated region
    $region30: #{tpu_custom_call.1} parent=1 // pred_check
      _
    $region31: #{tpu_custom_call.1} parent=1 // pred_check_branch
      %82 = sbr.rel (0) target = $region33
    $region32: #{tpu_custom_call.1} parent=1 // pred_region
      %84 = dma.done [#allocation6], 64
    $region33: #{tpu_custom_call.1} parent=1 // pred_fallthru
      _
    // Predicated region
    $region34: #{tpu_custom_call.1} parent=1 // pred_check
      _
    $region35: #{tpu_custom_call.1} parent=1 // pred_check_branch
      %86 = sbr.rel (0) target = $region37
    $region36: #{tpu_custom_call.1} parent=1 // pred_region
      %88 = dma.done [#allocation9], 32768
    $region37: #{tpu_custom_call.1} parent=1 // pred_fallthru
      _
    // Predicated region
    $region38: #{tpu_custom_call.1} parent=1 // pred_check
      _
    $region39: #{tpu_custom_call.1} parent=1 // pred_check_branch
      %90 = sbr.rel (0) target = $region41
    $region40: #{tpu_custom_call.1} parent=1 // pred_region
      %92 = dma.done [#allocation9], 128
    $region41: #{tpu_custom_call.1} parent=1 // pred_fallthru
      _
    %v93 = vld [vmem:[#allocation2] sm:$0xff]
    %v94 = vld [vmem:[#allocation2 + $0x8] sm:$0xff]
    %v95 = vld [vmem:[#allocation2 + $0x10] sm:$0xff]
    %v96 = vld [vmem:[#allocation2 + $0x18] sm:$0xff]
    %v97 = vpack.c.bf16 %v93, %v93
    %v98 = vpack.c.bf16 %v94, %v94
    %v99 = vpack.c.bf16 %v95, %v95
    %v100 = vpack.c.bf16 %v96, %v96
    %v101 = vld [vmem:[#allocation5] sm:$0xff]
    %v102 = vld [vmem:[#allocation5 + $0x8] sm:$0xff]
    %v103 = vld [vmem:[#allocation5 + $0x10] sm:$0xff]
    %v104 = vld [vmem:[#allocation5 + $0x18] sm:$0xff]
    %v105 = vld [vmem:[#allocation5 + $0x20] sm:$0xff]
    %v106 = vld [vmem:[#allocation5 + $0x28] sm:$0xff]
    %v107 = vld [vmem:[#allocation5 + $0x30] sm:$0xff]
    %v108 = vld [vmem:[#allocation5 + $0x38] sm:$0xff]
    %v109 = vld [vmem:[#allocation5 + $0x40] sm:$0xff]
    %v110 = vld [vmem:[#allocation5 + $0x48] sm:$0xff]
    %v111 = vld [vmem:[#allocation5 + $0x50] sm:$0xff]
    %v112 = vld [vmem:[#allocation5 + $0x58] sm:$0xff]
    %v113 = vld [vmem:[#allocation5 + $0x60] sm:$0xff]
    %v114 = vld [vmem:[#allocation5 + $0x68] sm:$0xff]
    %v115 = vld [vmem:[#allocation5 + $0x70] sm:$0xff]
    %v116 = vld [vmem:[#allocation5 + $0x78] sm:$0xff]
    %v117 = vld [vmem:[#allocation5 + $0x80] sm:$0xff]
    %v118 = vld [vmem:[#allocation5 + $0x88] sm:$0xff]
    %v119 = vld [vmem:[#allocation5 + $0x90] sm:$0xff]
    %v120 = vld [vmem:[#allocation5 + $0x98] sm:$0xff]
    %v121 = vld [vmem:[#allocation5 + $0xa0] sm:$0xff]
    %v122 = vld [vmem:[#allocation5 + $0xa8] sm:$0xff]
    %v123 = vld [vmem:[#allocation5 + $0xb0] sm:$0xff]
    %v124 = vld [vmem:[#allocation5 + $0xb8] sm:$0xff]
    %v125 = vld [vmem:[#allocation5 + $0xc0] sm:$0xff]
    %v126 = vld [vmem:[#allocation5 + $0xc8] sm:$0xff]
    %v127 = vld [vmem:[#allocation5 + $0xd0] sm:$0xff]
    %v128 = vld [vmem:[#allocation5 + $0xd8] sm:$0xff]
    %v129 = vld [vmem:[#allocation5 + $0xe0] sm:$0xff]
    %v130 = vld [vmem:[#allocation5 + $0xe8] sm:$0xff]
    %v131 = vld [vmem:[#allocation5 + $0xf0] sm:$0xff]
    %v132 = vld [vmem:[#allocation5 + $0xf8] sm:$0xff]
    %v133 = vld [vmem:[#allocation5 + $0x100] sm:$0xff]
    %v134 = vld [vmem:[#allocation5 + $0x108] sm:$0xff]
    %v135 = vld [vmem:[#allocation5 + $0x110] sm:$0xff]
    %v136 = vld [vmem:[#allocation5 + $0x118] sm:$0xff]
    %v137 = vld [vmem:[#allocation5 + $0x120] sm:$0xff]
    %v138 = vld [vmem:[#allocation5 + $0x128] sm:$0xff]
    %v139 = vld [vmem:[#allocation5 + $0x130] sm:$0xff]
    %v140 = vld [vmem:[#allocation5 + $0x138] sm:$0xff]
    %v141 = vld [vmem:[#allocation5 + $0x140] sm:$0xff]
    %v142 = vld [vmem:[#allocation5 + $0x148] sm:$0xff]
    %v143 = vld [vmem:[#allocation5 + $0x150] sm:$0xff]
    %v144 = vld [vmem:[#allocation5 + $0x158] sm:$0xff]
    %v145 = vld [vmem:[#allocation5 + $0x160] sm:$0xff]
    %v146 = vld [vmem:[#allocation5 + $0x168] sm:$0xff]
    %v147 = vld [vmem:[#allocation5 + $0x170] sm:$0xff]
    %v148 = vld [vmem:[#allocation5 + $0x178] sm:$0xff]
    %v149 = vld [vmem:[#allocation5 + $0x180] sm:$0xff]
    %v150 = vld [vmem:[#allocation5 + $0x188] sm:$0xff]
    %v151 = vld [vmem:[#allocation5 + $0x190] sm:$0xff]
    %v152 = vld [vmem:[#allocation5 + $0x198] sm:$0xff]
    %v153 = vld [vmem:[#allocation5 + $0x1a0] sm:$0xff]
    %v154 = vld [vmem:[#allocation5 + $0x1a8] sm:$0xff]
    %v155 = vld [vmem:[#allocation5 + $0x1b0] sm:$0xff]
    %v156 = vld [vmem:[#allocation5 + $0x1b8] sm:$0xff]
    %v157 = vld [vmem:[#allocation5 + $0x1c0] sm:$0xff]
    %v158 = vld [vmem:[#allocation5 + $0x1c8] sm:$0xff]
    %v159 = vld [vmem:[#allocation5 + $0x1d0] sm:$0xff]
    %v160 = vld [vmem:[#allocation5 + $0x1d8] sm:$0xff]
    %v161 = vld [vmem:[#allocation5 + $0x1e0] sm:$0xff]
    %v162 = vld [vmem:[#allocation5 + $0x1e8] sm:$0xff]
    %v163 = vld [vmem:[#allocation5 + $0x1f0] sm:$0xff]
    %v164 = vld [vmem:[#allocation5 + $0x1f8] sm:$0xff]
    %v165 = vld [vmem:[#allocation5 + $0x200] sm:$0xff]
    %v166 = vld [vmem:[#allocation5 + $0x208] sm:$0xff]
    %v167 = vld [vmem:[#allocation5 + $0x210] sm:$0xff]
    %v168 = vld [vmem:[#allocation5 + $0x218] sm:$0xff]
    %v169 = vld [vmem:[#allocation5 + $0x220] sm:$0xff]
    %v170 = vld [vmem:[#allocation5 + $0x228] sm:$0xff]
    %v171 = vld [vmem:[#allocation5 + $0x230] sm:$0xff]
    %v172 = vld [vmem:[#allocation5 + $0x238] sm:$0xff]
    %v173 = vld [vmem:[#allocation5 + $0x240] sm:$0xff]
    %v174 = vld [vmem:[#allocation5 + $0x248] sm:$0xff]
    %v175 = vld [vmem:[#allocation5 + $0x250] sm:$0xff]
    %v176 = vld [vmem:[#allocation5 + $0x258] sm:$0xff]
    %v177 = vld [vmem:[#allocation5 + $0x260] sm:$0xff]
    %v178 = vld [vmem:[#allocation5 + $0x268] sm:$0xff]
    %v179 = vld [vmem:[#allocation5 + $0x270] sm:$0xff]
    %v180 = vld [vmem:[#allocation5 + $0x278] sm:$0xff]
    %v181 = vld [vmem:[#allocation5 + $0x280] sm:$0xff]
    %v182 = vld [vmem:[#allocation5 + $0x288] sm:$0xff]
    %v183 = vld [vmem:[#allocation5 + $0x290] sm:$0xff]
    %v184 = vld [vmem:[#allocation5 + $0x298] sm:$0xff]
    %v185 = vld [vmem:[#allocation5 + $0x2a0] sm:$0xff]
    %v186 = vld [vmem:[#allocation5 + $0x2a8] sm:$0xff]
    %v187 = vld [vmem:[#allocation5 + $0x2b0] sm:$0xff]
    %v188 = vld [vmem:[#allocation5 + $0x2b8] sm:$0xff]
    %v189 = vld [vmem:[#allocation5 + $0x2c0] sm:$0xff]
    %v190 = vld [vmem:[#allocation5 + $0x2c8] sm:$0xff]
    %v191 = vld [vmem:[#allocation5 + $0x2d0] sm:$0xff]
    %v192 = vld [vmem:[#allocation5 + $0x2d8] sm:$0xff]
    %v193 = vld [vmem:[#allocation5 + $0x2e0] sm:$0xff]
    %v194 = vld [vmem:[#allocation5 + $0x2e8] sm:$0xff]
    %v195 = vld [vmem:[#allocation5 + $0x2f0] sm:$0xff]
    %v196 = vld [vmem:[#allocation5 + $0x2f8] sm:$0xff]
    %v197 = vld [vmem:[#allocation5 + $0x300] sm:$0xff]
    %v198 = vld [vmem:[#allocation5 + $0x308] sm:$0xff]
    %v199 = vld [vmem:[#allocation5 + $0x310] sm:$0xff]
    %v200 = vld [vmem:[#allocation5 + $0x318] sm:$0xff]
    %v201 = vld [vmem:[#allocation5 + $0x320] sm:$0xff]
    %v202 = vld [vmem:[#allocation5 + $0x328] sm:$0xff]
    %v203 = vld [vmem:[#allocation5 + $0x330] sm:$0xff]
    %v204 = vld [vmem:[#allocation5 + $0x338] sm:$0xff]
    %v205 = vld [vmem:[#allocation5 + $0x340] sm:$0xff]
    %v206 = vld [vmem:[#allocation5 + $0x348] sm:$0xff]
    %v207 = vld [vmem:[#allocation5 + $0x350] sm:$0xff]
    %v208 = vld [vmem:[#allocation5 + $0x358] sm:$0xff]
    %v209 = vld [vmem:[#allocation5 + $0x360] sm:$0xff]
    %v210 = vld [vmem:[#allocation5 + $0x368] sm:$0xff]
    %v211 = vld [vmem:[#allocation5 + $0x370] sm:$0xff]
    %v212 = vld [vmem:[#allocation5 + $0x378] sm:$0xff]
    %v213 = vld [vmem:[#allocation5 + $0x380] sm:$0xff]
    %v214 = vld [vmem:[#allocation5 + $0x388] sm:$0xff]
    %v215 = vld [vmem:[#allocation5 + $0x390] sm:$0xff]
    %v216 = vld [vmem:[#allocation5 + $0x398] sm:$0xff]
    %v217 = vld [vmem:[#allocation5 + $0x3a0] sm:$0xff]
    %v218 = vld [vmem:[#allocation5 + $0x3a8] sm:$0xff]
    %v219 = vld [vmem:[#allocation5 + $0x3b0] sm:$0xff]
    %v220 = vld [vmem:[#allocation5 + $0x3b8] sm:$0xff]
    %v221 = vld [vmem:[#allocation5 + $0x3c0] sm:$0xff]
    %v222 = vld [vmem:[#allocation5 + $0x3c8] sm:$0xff]
    %v223 = vld [vmem:[#allocation5 + $0x3d0] sm:$0xff]
    %v224 = vld [vmem:[#allocation5 + $0x3d8] sm:$0xff]
    %v225 = vld [vmem:[#allocation5 + $0x3e0] sm:$0xff]
    %v226 = vld [vmem:[#allocation5 + $0x3e8] sm:$0xff]
    %v227 = vld [vmem:[#allocation5 + $0x3f0] sm:$0xff]
    %v228 = vld [vmem:[#allocation5 + $0x3f8] sm:$0xff]
    %v229 = vld [vmem:[#allocation7] sm:$0xf]
    %v231 = vperm.slane %v229, 0
    %v232 = vperm.slane %v229, 1
    %v233 = vperm.slane %v229, 2
    %v234 = vperm.slane %v229, 3
    %v367 = vunpack.c.l.b16 %v101
    %v368 = vunpack.c.h.b16 %v101
    %v369 = vunpack.c.l.b16 %v102
    %v370 = vunpack.c.h.b16 %v102
    %v371 = vunpack.c.l.b16 %v103
    %v372 = vunpack.c.h.b16 %v103
    %v373 = vunpack.c.l.b16 %v104
    %v374 = vunpack.c.h.b16 %v104
    %v375 = vunpack.c.l.b16 %v105
    %v376 = vunpack.c.h.b16 %v105
    %v377 = vunpack.c.l.b16 %v106
    %v378 = vunpack.c.h.b16 %v106
    %v379 = vunpack.c.l.b16 %v107
    %v380 = vunpack.c.h.b16 %v107
    %v381 = vunpack.c.l.b16 %v108
    %v382 = vunpack.c.h.b16 %v108
    %v383 = vunpack.c.l.b16 %v109
    %v384 = vunpack.c.h.b16 %v109
    %v385 = vunpack.c.l.b16 %v110
    %v386 = vunpack.c.h.b16 %v110
    %v387 = vunpack.c.l.b16 %v111
    %v388 = vunpack.c.h.b16 %v111
    %v389 = vunpack.c.l.b16 %v112
    %v390 = vunpack.c.h.b16 %v112
    %v391 = vunpack.c.l.b16 %v113
    %v392 = vunpack.c.h.b16 %v113
    %v393 = vunpack.c.l.b16 %v114
    %v394 = vunpack.c.h.b16 %v114
    %v395 = vunpack.c.l.b16 %v115
    %v396 = vunpack.c.h.b16 %v115
    %v397 = vunpack.c.l.b16 %v116
    %v398 = vunpack.c.h.b16 %v116
    %v399 = vunpack.c.l.b16 %v117
    %v400 = vunpack.c.h.b16 %v117
    %v401 = vunpack.c.l.b16 %v118
    %v402 = vunpack.c.h.b16 %v118
    %v403 = vunpack.c.l.b16 %v119
    %v404 = vunpack.c.h.b16 %v119
    %v405 = vunpack.c.l.b16 %v120
    %v406 = vunpack.c.h.b16 %v120
    %v407 = vunpack.c.l.b16 %v121
    %v408 = vunpack.c.h.b16 %v121
    %v409 = vunpack.c.l.b16 %v122
    %v410 = vunpack.c.h.b16 %v122
    %v411 = vunpack.c.l.b16 %v123
    %v412 = vunpack.c.h.b16 %v123
    %v413 = vunpack.c.l.b16 %v124
    %v414 = vunpack.c.h.b16 %v124
    %v415 = vunpack.c.l.b16 %v125
    %v416 = vunpack.c.h.b16 %v125
    %v417 = vunpack.c.l.b16 %v126
    %v418 = vunpack.c.h.b16 %v126
    %v419 = vunpack.c.l.b16 %v127
    %v420 = vunpack.c.h.b16 %v127
    %v421 = vunpack.c.l.b16 %v128
    %v422 = vunpack.c.h.b16 %v128
    %v423 = vunpack.c.l.b16 %v129
    %v424 = vunpack.c.h.b16 %v129
    %v425 = vunpack.c.l.b16 %v130
    %v426 = vunpack.c.h.b16 %v130
    %v427 = vunpack.c.l.b16 %v131
    %v428 = vunpack.c.h.b16 %v131
    %v429 = vunpack.c.l.b16 %v132
    %v430 = vunpack.c.h.b16 %v132
    %v431 = vunpack.c.l.b16 %v133
    %v432 = vunpack.c.h.b16 %v133
    %v433 = vunpack.c.l.b16 %v134
    %v434 = vunpack.c.h.b16 %v134
    %v435 = vunpack.c.l.b16 %v135
    %v436 = vunpack.c.h.b16 %v135
    %v437 = vunpack.c.l.b16 %v136
    %v438 = vunpack.c.h.b16 %v136
    %v439 = vunpack.c.l.b16 %v137
    %v440 = vunpack.c.h.b16 %v137
    %v441 = vunpack.c.l.b16 %v138
    %v442 = vunpack.c.h.b16 %v138
    %v443 = vunpack.c.l.b16 %v139
    %v444 = vunpack.c.h.b16 %v139
    %v445 = vunpack.c.l.b16 %v140
    %v446 = vunpack.c.h.b16 %v140
    %v447 = vunpack.c.l.b16 %v141
    %v448 = vunpack.c.h.b16 %v141
    %v449 = vunpack.c.l.b16 %v142
    %v450 = vunpack.c.h.b16 %v142
    %v451 = vunpack.c.l.b16 %v143
    %v452 = vunpack.c.h.b16 %v143
    %v453 = vunpack.c.l.b16 %v144
    %v454 = vunpack.c.h.b16 %v144
    %v455 = vunpack.c.l.b16 %v145
    %v456 = vunpack.c.h.b16 %v145
    %v457 = vunpack.c.l.b16 %v146
    %v458 = vunpack.c.h.b16 %v146
    %v459 = vunpack.c.l.b16 %v147
    %v460 = vunpack.c.h.b16 %v147
    %v461 = vunpack.c.l.b16 %v148
    %v462 = vunpack.c.h.b16 %v148
    %v463 = vunpack.c.l.b16 %v149
    %v464 = vunpack.c.h.b16 %v149
    %v465 = vunpack.c.l.b16 %v150
    %v466 = vunpack.c.h.b16 %v150
    %v467 = vunpack.c.l.b16 %v151
    %v468 = vunpack.c.h.b16 %v151
    %v469 = vunpack.c.l.b16 %v152
    %v470 = vunpack.c.h.b16 %v152
    %v471 = vunpack.c.l.b16 %v153
    %v472 = vunpack.c.h.b16 %v153
    %v473 = vunpack.c.l.b16 %v154
    %v474 = vunpack.c.h.b16 %v154
    %v475 = vunpack.c.l.b16 %v155
    %v476 = vunpack.c.h.b16 %v155
    %v477 = vunpack.c.l.b16 %v156
    %v478 = vunpack.c.h.b16 %v156
    %v479 = vunpack.c.l.b16 %v157
    %v480 = vunpack.c.h.b16 %v157
    %v481 = vunpack.c.l.b16 %v158
    %v482 = vunpack.c.h.b16 %v158
    %v483 = vunpack.c.l.b16 %v159
    %v484 = vunpack.c.h.b16 %v159
    %v485 = vunpack.c.l.b16 %v160
    %v486 = vunpack.c.h.b16 %v160
    %v487 = vunpack.c.l.b16 %v161
    %v488 = vunpack.c.h.b16 %v161
    %v489 = vunpack.c.l.b16 %v162
    %v490 = vunpack.c.h.b16 %v162
    %v491 = vunpack.c.l.b16 %v163
    %v492 = vunpack.c.h.b16 %v163
    %v493 = vunpack.c.l.b16 %v164
    %v494 = vunpack.c.h.b16 %v164
    %v495 = vunpack.c.l.b16 %v165
    %v496 = vunpack.c.h.b16 %v165
    %v497 = vunpack.c.l.b16 %v166
    %v498 = vunpack.c.h.b16 %v166
    %v499 = vunpack.c.l.b16 %v167
    %v500 = vunpack.c.h.b16 %v167
    %v501 = vunpack.c.l.b16 %v168
    %v502 = vunpack.c.h.b16 %v168
    %v503 = vunpack.c.l.b16 %v169
    %v504 = vunpack.c.h.b16 %v169
    %v505 = vunpack.c.l.b16 %v170
    %v506 = vunpack.c.h.b16 %v170
    %v507 = vunpack.c.l.b16 %v171
    %v508 = vunpack.c.h.b16 %v171
    %v509 = vunpack.c.l.b16 %v172
    %v510 = vunpack.c.h.b16 %v172
    %v511 = vunpack.c.l.b16 %v173
    %v512 = vunpack.c.h.b16 %v173
    %v513 = vunpack.c.l.b16 %v174
    %v514 = vunpack.c.h.b16 %v174
    %v515 = vunpack.c.l.b16 %v175
    %v516 = vunpack.c.h.b16 %v175
    %v517 = vunpack.c.l.b16 %v176
    %v518 = vunpack.c.h.b16 %v176
    %v519 = vunpack.c.l.b16 %v177
    %v520 = vunpack.c.h.b16 %v177
    %v521 = vunpack.c.l.b16 %v178
    %v522 = vunpack.c.h.b16 %v178
    %v523 = vunpack.c.l.b16 %v179
    %v524 = vunpack.c.h.b16 %v179
    %v525 = vunpack.c.l.b16 %v180
    %v526 = vunpack.c.h.b16 %v180
    %v527 = vunpack.c.l.b16 %v181
    %v528 = vunpack.c.h.b16 %v181
    %v529 = vunpack.c.l.b16 %v182
    %v530 = vunpack.c.h.b16 %v182
    %v531 = vunpack.c.l.b16 %v183
    %v532 = vunpack.c.h.b16 %v183
    %v533 = vunpack.c.l.b16 %v184
    %v534 = vunpack.c.h.b16 %v184
    %v535 = vunpack.c.l.b16 %v185
    %v536 = vunpack.c.h.b16 %v185
    %v537 = vunpack.c.l.b16 %v186
    %v538 = vunpack.c.h.b16 %v186
    %v539 = vunpack.c.l.b16 %v187
    %v540 = vunpack.c.h.b16 %v187
    %v541 = vunpack.c.l.b16 %v188
    %v542 = vunpack.c.h.b16 %v188
    %v543 = vunpack.c.l.b16 %v189
    %v544 = vunpack.c.h.b16 %v189
    %v545 = vunpack.c.l.b16 %v190
    %v546 = vunpack.c.h.b16 %v190
    %v547 = vunpack.c.l.b16 %v191
    %v548 = vunpack.c.h.b16 %v191
    %v549 = vunpack.c.l.b16 %v192
    %v550 = vunpack.c.h.b16 %v192
    %v551 = vunpack.c.l.b16 %v193
    %v552 = vunpack.c.h.b16 %v193
    %v553 = vunpack.c.l.b16 %v194
    %v554 = vunpack.c.h.b16 %v194
    %v555 = vunpack.c.l.b16 %v195
    %v556 = vunpack.c.h.b16 %v195
    %v557 = vunpack.c.l.b16 %v196
    %v558 = vunpack.c.h.b16 %v196
    %v559 = vunpack.c.l.b16 %v197
    %v560 = vunpack.c.h.b16 %v197
    %v561 = vunpack.c.l.b16 %v198
    %v562 = vunpack.c.h.b16 %v198
    %v563 = vunpack.c.l.b16 %v199
    %v564 = vunpack.c.h.b16 %v199
    %v565 = vunpack.c.l.b16 %v200
    %v566 = vunpack.c.h.b16 %v200
    %v567 = vunpack.c.l.b16 %v201
    %v568 = vunpack.c.h.b16 %v201
    %v569 = vunpack.c.l.b16 %v202
    %v570 = vunpack.c.h.b16 %v202
    %v571 = vunpack.c.l.b16 %v203
    %v572 = vunpack.c.h.b16 %v203
    %v573 = vunpack.c.l.b16 %v204
    %v574 = vunpack.c.h.b16 %v204
    %v575 = vunpack.c.l.b16 %v205
    %v576 = vunpack.c.h.b16 %v205
    %v577 = vunpack.c.l.b16 %v206
    %v578 = vunpack.c.h.b16 %v206
    %v579 = vunpack.c.l.b16 %v207
    %v580 = vunpack.c.h.b16 %v207
    %v581 = vunpack.c.l.b16 %v208
    %v582 = vunpack.c.h.b16 %v208
    %v583 = vunpack.c.l.b16 %v209
    %v584 = vunpack.c.h.b16 %v209
    %v585 = vunpack.c.l.b16 %v210
    %v586 = vunpack.c.h.b16 %v210
    %v587 = vunpack.c.l.b16 %v211
    %v588 = vunpack.c.h.b16 %v211
    %v589 = vunpack.c.l.b16 %v212
    %v590 = vunpack.c.h.b16 %v212
    %v591 = vunpack.c.l.b16 %v213
    %v592 = vunpack.c.h.b16 %v213
    %v593 = vunpack.c.l.b16 %v214
    %v594 = vunpack.c.h.b16 %v214
    %v595 = vunpack.c.l.b16 %v215
    %v596 = vunpack.c.h.b16 %v215
    %v597 = vunpack.c.l.b16 %v216
    %v598 = vunpack.c.h.b16 %v216
    %v599 = vunpack.c.l.b16 %v217
    %v600 = vunpack.c.h.b16 %v217
    %v601 = vunpack.c.l.b16 %v218
    %v602 = vunpack.c.h.b16 %v218
    %v603 = vunpack.c.l.b16 %v219
    %v604 = vunpack.c.h.b16 %v219
    %v605 = vunpack.c.l.b16 %v220
    %v606 = vunpack.c.h.b16 %v220
    %v607 = vunpack.c.l.b16 %v221
    %v608 = vunpack.c.h.b16 %v221
    %v609 = vunpack.c.l.b16 %v222
    %v610 = vunpack.c.h.b16 %v222
    %v611 = vunpack.c.l.b16 %v223
    %v612 = vunpack.c.h.b16 %v223
    %v613 = vunpack.c.l.b16 %v224
    %v614 = vunpack.c.h.b16 %v224
    %v615 = vunpack.c.l.b16 %v225
    %v616 = vunpack.c.h.b16 %v225
    %v617 = vunpack.c.l.b16 %v226
    %v618 = vunpack.c.h.b16 %v226
    %v619 = vunpack.c.l.b16 %v227
    %v620 = vunpack.c.h.b16 %v227
    %v621 = vunpack.c.l.b16 %v228
    %v622 = vunpack.c.h.b16 %v228
    %v623 = vpack.c.b16 %v371, %v367
    %v624 = vpack.c.b16 %v372, %v368
    %v625 = vpack.c.b16 %v373, %v369
    %v626 = vpack.c.b16 %v374, %v370
    %v627 = vpack.c.b16 %v379, %v375
    %v628 = vpack.c.b16 %v380, %v376
    %v629 = vpack.c.b16 %v381, %v377
    %v630 = vpack.c.b16 %v382, %v378
    %v631 = vpack.c.b16 %v387, %v383
    %v632 = vpack.c.b16 %v388, %v384
    %v633 = vpack.c.b16 %v389, %v385
    %v634 = vpack.c.b16 %v390, %v386
    %v635 = vpack.c.b16 %v395, %v391
    %v636 = vpack.c.b16 %v396, %v392
    %v637 = vpack.c.b16 %v397, %v393
    %v638 = vpack.c.b16 %v398, %v394
    %v639 = vpack.c.b16 %v403, %v399
    %v640 = vpack.c.b16 %v404, %v400
    %v641 = vpack.c.b16 %v405, %v401
    %v642 = vpack.c.b16 %v406, %v402
    %v643 = vpack.c.b16 %v411, %v407
    %v644 = vpack.c.b16 %v412, %v408
    %v645 = vpack.c.b16 %v413, %v409
    %v646 = vpack.c.b16 %v414, %v410
    %v647 = vpack.c.b16 %v419, %v415
    %v648 = vpack.c.b16 %v420, %v416
    %v649 = vpack.c.b16 %v421, %v417
    %v650 = vpack.c.b16 %v422, %v418
    %v651 = vpack.c.b16 %v427, %v423
    %v652 = vpack.c.b16 %v428, %v424
    %v653 = vpack.c.b16 %v429, %v425
    %v654 = vpack.c.b16 %v430, %v426
    %v655 = vpack.c.b16 %v435, %v431
    %v656 = vpack.c.b16 %v436, %v432
    %v657 = vpack.c.b16 %v437, %v433
    %v658 = vpack.c.b16 %v438, %v434
    %v659 = vpack.c.b16 %v443, %v439
    %v660 = vpack.c.b16 %v444, %v440
    %v661 = vpack.c.b16 %v445, %v441
    %v662 = vpack.c.b16 %v446, %v442
    %v663 = vpack.c.b16 %v451, %v447
    %v664 = vpack.c.b16 %v452, %v448
    %v665 = vpack.c.b16 %v453, %v449
    %v666 = vpack.c.b16 %v454, %v450
    %v667 = vpack.c.b16 %v459, %v455
    %v668 = vpack.c.b16 %v460, %v456
    %v669 = vpack.c.b16 %v461, %v457
    %v670 = vpack.c.b16 %v462, %v458
    %v671 = vpack.c.b16 %v467, %v463
    %v672 = vpack.c.b16 %v468, %v464
    %v673 = vpack.c.b16 %v469, %v465
    %v674 = vpack.c.b16 %v470, %v466
    %v675 = vpack.c.b16 %v475, %v471
    %v676 = vpack.c.b16 %v476, %v472
    %v677 = vpack.c.b16 %v477, %v473
    %v678 = vpack.c.b16 %v478, %v474
    %v679 = vpack.c.b16 %v483, %v479
    %v680 = vpack.c.b16 %v484, %v480
    %v681 = vpack.c.b16 %v485, %v481
    %v682 = vpack.c.b16 %v486, %v482
    %v683 = vpack.c.b16 %v491, %v487
    %v684 = vpack.c.b16 %v492, %v488
    %v685 = vpack.c.b16 %v493, %v489
    %v686 = vpack.c.b16 %v494, %v490
    %v687 = vpack.c.b16 %v499, %v495
    %v688 = vpack.c.b16 %v500, %v496
    %v689 = vpack.c.b16 %v501, %v497
    %v690 = vpack.c.b16 %v502, %v498
    %v691 = vpack.c.b16 %v507, %v503
    %v692 = vpack.c.b16 %v508, %v504
    %v693 = vpack.c.b16 %v509, %v505
    %v694 = vpack.c.b16 %v510, %v506
    %v695 = vpack.c.b16 %v515, %v511
    %v696 = vpack.c.b16 %v516, %v512
    %v697 = vpack.c.b16 %v517, %v513
    %v698 = vpack.c.b16 %v518, %v514
    %v699 = vpack.c.b16 %v523, %v519
    %v700 = vpack.c.b16 %v524, %v520
    %v701 = vpack.c.b16 %v525, %v521
    %v702 = vpack.c.b16 %v526, %v522
    %v703 = vpack.c.b16 %v531, %v527
    %v704 = vpack.c.b16 %v532, %v528
    %v705 = vpack.c.b16 %v533, %v529
    %v706 = vpack.c.b16 %v534, %v530
    %v707 = vpack.c.b16 %v539, %v535
    %v708 = vpack.c.b16 %v540, %v536
    %v709 = vpack.c.b16 %v541, %v537
    %v710 = vpack.c.b16 %v542, %v538
    %v711 = vpack.c.b16 %v547, %v543
    %v712 = vpack.c.b16 %v548, %v544
    %v713 = vpack.c.b16 %v549, %v545
    %v714 = vpack.c.b16 %v550, %v546
    %v715 = vpack.c.b16 %v555, %v551
    %v716 = vpack.c.b16 %v556, %v552
    %v717 = vpack.c.b16 %v557, %v553
    %v718 = vpack.c.b16 %v558, %v554
    %v719 = vpack.c.b16 %v563, %v559
    %v720 = vpack.c.b16 %v564, %v560
    %v721 = vpack.c.b16 %v565, %v561
    %v722 = vpack.c.b16 %v566, %v562
    %v723 = vpack.c.b16 %v571, %v567
    %v724 = vpack.c.b16 %v572, %v568
    %v725 = vpack.c.b16 %v573, %v569
    %v726 = vpack.c.b16 %v574, %v570
    %v727 = vpack.c.b16 %v579, %v575
    %v728 = vpack.c.b16 %v580, %v576
    %v729 = vpack.c.b16 %v581, %v577
    %v730 = vpack.c.b16 %v582, %v578
    %v731 = vpack.c.b16 %v587, %v583
    %v732 = vpack.c.b16 %v588, %v584
    %v733 = vpack.c.b16 %v589, %v585
    %v734 = vpack.c.b16 %v590, %v586
    %v735 = vpack.c.b16 %v595, %v591
    %v736 = vpack.c.b16 %v596, %v592
    %v737 = vpack.c.b16 %v597, %v593
    %v738 = vpack.c.b16 %v598, %v594
    %v739 = vpack.c.b16 %v603, %v599
    %v740 = vpack.c.b16 %v604, %v600
    %v741 = vpack.c.b16 %v605, %v601
    %v742 = vpack.c.b16 %v606, %v602
    %v743 = vpack.c.b16 %v611, %v607
    %v744 = vpack.c.b16 %v612, %v608
    %v745 = vpack.c.b16 %v613, %v609
    %v746 = vpack.c.b16 %v614, %v610
    %v747 = vpack.c.b16 %v619, %v615
    %v748 = vpack.c.b16 %v620, %v616
    %v749 = vpack.c.b16 %v621, %v617
    %v750 = vpack.c.b16 %v622, %v618
    %879 = vmatpush.bf16.msra.mxu0 %v651
    %880 = vmatpush.bf16.msra.mxu0 %v647
    %881 = vmatpush.bf16.msra.mxu0 %v643
    %882 = vmatpush.bf16.msra.mxu0 %v639
    %883 = vmatpush.bf16.msra.mxu0 %v635
    %884 = vmatpush.bf16.msra.mxu0 %v631
    %885 = vmatpush.bf16.msra.mxu0 %v627
    %886 = vmatpush.bf16.msra.mxu0 %v623
    %887 = vmatmul.bf16.gmra.mxu0 %v97
    %v888 = vpop.f32.mrf.mxu0
    %v889 = vadd.f32 %v231, %v888
    %v890 = vpop.f32.mrf.mxu0
    %891 = vdwg.mxu0
    %892 = vmatpush.bf16.msra.mxu0 %v683
    %893 = vmatpush.bf16.msra.mxu0 %v679
    %894 = vmatpush.bf16.msra.mxu0 %v675
    %895 = vmatpush.bf16.msra.mxu0 %v671
    %896 = vmatpush.bf16.msra.mxu0 %v667
    %897 = vmatpush.bf16.msra.mxu0 %v663
    %898 = vmatpush.bf16.msra.mxu0 %v659
    %899 = vmatpush.bf16.msra.mxu0 %v655
    %900 = vmatmul.bf16.gmra.mxu0 %v98
    %v901 = vpop.f32.mrf.mxu0
    %v902 = vadd.f32 %v889, %v901
    %v903 = vpop.f32.mrf.mxu0
    %904 = vdwg.mxu0
    %905 = vmatpush.bf16.msra.mxu0 %v715
    %906 = vmatpush.bf16.msra.mxu0 %v711
    %907 = vmatpush.bf16.msra.mxu0 %v707
    %908 = vmatpush.bf16.msra.mxu0 %v703
    %909 = vmatpush.bf16.msra.mxu0 %v699
    %910 = vmatpush.bf16.msra.mxu0 %v695
    %911 = vmatpush.bf16.msra.mxu0 %v691
    %912 = vmatpush.bf16.msra.mxu0 %v687
    %913 = vmatmul.bf16.gmra.mxu0 %v99
    %v914 = vpop.f32.mrf.mxu0
    %v915 = vadd.f32 %v902, %v914
    %v916 = vpop.f32.mrf.mxu0
    %917 = vdwg.mxu0
    %918 = vmatpush.bf16.msra.mxu0 %v747
    %919 = vmatpush.bf16.msra.mxu0 %v743
    %920 = vmatpush.bf16.msra.mxu0 %v739
    %921 = vmatpush.bf16.msra.mxu0 %v735
    %922 = vmatpush.bf16.msra.mxu0 %v731
    %923 = vmatpush.bf16.msra.mxu0 %v727
    %924 = vmatpush.bf16.msra.mxu0 %v723
    %925 = vmatpush.bf16.msra.mxu0 %v719
    %926 = vmatmul.bf16.gmra.mxu0 %v100
    %v927 = vpop.f32.mrf.mxu0
    %v928 = vadd.f32 %v915, %v927
    %v929 = vpop.f32.mrf.mxu0
    %930 = vdwg.mxu0
    %931 = vmatpush.bf16.msra.mxu0 %v652
    %932 = vmatpush.bf16.msra.mxu0 %v648
    %933 = vmatpush.bf16.msra.mxu0 %v644
    %934 = vmatpush.bf16.msra.mxu0 %v640
    %935 = vmatpush.bf16.msra.mxu0 %v636
    %936 = vmatpush.bf16.msra.mxu0 %v632
    %937 = vmatpush.bf16.msra.mxu0 %v628
    %938 = vmatpush.bf16.msra.mxu0 %v624
    %939 = vmatmul.bf16.gmra.mxu0 %v97
    %v940 = vpop.f32.mrf.mxu0
    %v941 = vadd.f32 %v232, %v940
    %v942 = vpop.f32.mrf.mxu0
    %943 = vdwg.mxu0
    %944 = vmatpush.bf16.msra.mxu0 %v684
    %945 = vmatpush.bf16.msra.mxu0 %v680
    %946 = vmatpush.bf16.msra.mxu0 %v676
    %947 = vmatpush.bf16.msra.mxu0 %v672
    %948 = vmatpush.bf16.msra.mxu0 %v668
    %949 = vmatpush.bf16.msra.mxu0 %v664
    %950 = vmatpush.bf16.msra.mxu0 %v660
    %951 = vmatpush.bf16.msra.mxu0 %v656
    %952 = vmatmul.bf16.gmra.mxu0 %v98
    %v953 = vpop.f32.mrf.mxu0
    %v954 = vadd.f32 %v941, %v953
    %v955 = vpop.f32.mrf.mxu0
    %956 = vdwg.mxu0
    %957 = vmatpush.bf16.msra.mxu0 %v716
    %958 = vmatpush.bf16.msra.mxu0 %v712
    %959 = vmatpush.bf16.msra.mxu0 %v708
    %960 = vmatpush.bf16.msra.mxu0 %v704
    %961 = vmatpush.bf16.msra.mxu0 %v700
    %962 = vmatpush.bf16.msra.mxu0 %v696
    %963 = vmatpush.bf16.msra.mxu0 %v692
    %964 = vmatpush.bf16.msra.mxu0 %v688
    %965 = vmatmul.bf16.gmra.mxu0 %v99
    %v966 = vpop.f32.mrf.mxu0
    %v967 = vadd.f32 %v954, %v966
    %v968 = vpop.f32.mrf.mxu0
    %969 = vdwg.mxu0
    %970 = vmatpush.bf16.msra.mxu0 %v748
    %971 = vmatpush.bf16.msra.mxu0 %v744
    %972 = vmatpush.bf16.msra.mxu0 %v740
    %973 = vmatpush.bf16.msra.mxu0 %v736
    %974 = vmatpush.bf16.msra.mxu0 %v732
    %975 = vmatpush.bf16.msra.mxu0 %v728
    %976 = vmatpush.bf16.msra.mxu0 %v724
    %977 = vmatpush.bf16.msra.mxu0 %v720
    %978 = vmatmul.bf16.gmra.mxu0 %v100
    %v979 = vpop.f32.mrf.mxu0
    %v980 = vadd.f32 %v967, %v979
    %v981 = vpop.f32.mrf.mxu0
    %982 = vdwg.mxu0
    %983 = vmatpush.bf16.msra.mxu0 %v653
    %984 = vmatpush.bf16.msra.mxu0 %v649
    %985 = vmatpush.bf16.msra.mxu0 %v645
    %986 = vmatpush.bf16.msra.mxu0 %v641
    %987 = vmatpush.bf16.msra.mxu0 %v637
    %988 = vmatpush.bf16.msra.mxu0 %v633
    %989 = vmatpush.bf16.msra.mxu0 %v629
    %990 = vmatpush.bf16.msra.mxu0 %v625
    %991 = vmatmul.bf16.gmra.mxu0 %v97
    %v992 = vpop.f32.mrf.mxu0
    %v993 = vadd.f32 %v233, %v992
    %v994 = vpop.f32.mrf.mxu0
    %995 = vdwg.mxu0
    %996 = vmatpush.bf16.msra.mxu0 %v685
    %997 = vmatpush.bf16.msra.mxu0 %v681
    %998 = vmatpush.bf16.msra.mxu0 %v677
    %999 = vmatpush.bf16.msra.mxu0 %v673
    %1000 = vmatpush.bf16.msra.mxu0 %v669
    %1001 = vmatpush.bf16.msra.mxu0 %v665
    %1002 = vmatpush.bf16.msra.mxu0 %v661
    %1003 = vmatpush.bf16.msra.mxu0 %v657
    %1004 = vmatmul.bf16.gmra.mxu0 %v98
    %v1005 = vpop.f32.mrf.mxu0
    %v1006 = vadd.f32 %v993, %v1005
    %v1007 = vpop.f32.mrf.mxu0
    %1008 = vdwg.mxu0
    %1009 = vmatpush.bf16.msra.mxu0 %v717
    %1010 = vmatpush.bf16.msra.mxu0 %v713
    %1011 = vmatpush.bf16.msra.mxu0 %v709
    %1012 = vmatpush.bf16.msra.mxu0 %v705
    %1013 = vmatpush.bf16.msra.mxu0 %v701
    %1014 = vmatpush.bf16.msra.mxu0 %v697
    %1015 = vmatpush.bf16.msra.mxu0 %v693
    %1016 = vmatpush.bf16.msra.mxu0 %v689
    %1017 = vmatmul.bf16.gmra.mxu0 %v99
    %v1018 = vpop.f32.mrf.mxu0
    %v1019 = vadd.f32 %v1006, %v1018
    %v1020 = vpop.f32.mrf.mxu0
    %1021 = vdwg.mxu0
    %1022 = vmatpush.bf16.msra.mxu0 %v749
    %1023 = vmatpush.bf16.msra.mxu0 %v745
    %1024 = vmatpush.bf16.msra.mxu0 %v741
    %1025 = vmatpush.bf16.msra.mxu0 %v737
    %1026 = vmatpush.bf16.msra.mxu0 %v733
    %1027 = vmatpush.bf16.msra.mxu0 %v729
    %1028 = vmatpush.bf16.msra.mxu0 %v725
    %1029 = vmatpush.bf16.msra.mxu0 %v721
    %1030 = vmatmul.bf16.gmra.mxu0 %v100
    %v1031 = vpop.f32.mrf.mxu0
    %v1032 = vadd.f32 %v1019, %v1031
    %v1033 = vpop.f32.mrf.mxu0
    %1034 = vdwg.mxu0
    %1035 = vmatpush.bf16.msra.mxu0 %v654
    %1036 = vmatpush.bf16.msra.mxu0 %v650
    %1037 = vmatpush.bf16.msra.mxu0 %v646
    %1038 = vmatpush.bf16.msra.mxu0 %v642
    %1039 = vmatpush.bf16.msra.mxu0 %v638
    %1040 = vmatpush.bf16.msra.mxu0 %v634
    %1041 = vmatpush.bf16.msra.mxu0 %v630
    %1042 = vmatpush.bf16.msra.mxu0 %v626
    %1043 = vmatmul.bf16.gmra.mxu0 %v97
    %v1044 = vpop.f32.mrf.mxu0
    %v1045 = vadd.f32 %v234, %v1044
    %v1046 = vpop.f32.mrf.mxu0
    %1047 = vdwg.mxu0
    %1048 = vmatpush.bf16.msra.mxu0 %v686
    %1049 = vmatpush.bf16.msra.mxu0 %v682
    %1050 = vmatpush.bf16.msra.mxu0 %v678
    %1051 = vmatpush.bf16.msra.mxu0 %v674
    %1052 = vmatpush.bf16.msra.mxu0 %v670
    %1053 = vmatpush.bf16.msra.mxu0 %v666
    %1054 = vmatpush.bf16.msra.mxu0 %v662
    %1055 = vmatpush.bf16.msra.mxu0 %v658
    %1056 = vmatmul.bf16.gmra.mxu0 %v98
    %v1057 = vpop.f32.mrf.mxu0
    %v1058 = vadd.f32 %v1045, %v1057
    %v1059 = vpop.f32.mrf.mxu0
    %1060 = vdwg.mxu0
    %1061 = vmatpush.bf16.msra.mxu0 %v718
    %1062 = vmatpush.bf16.msra.mxu0 %v714
    %1063 = vmatpush.bf16.msra.mxu0 %v710
    %1064 = vmatpush.bf16.msra.mxu0 %v706
    %1065 = vmatpush.bf16.msra.mxu0 %v702
    %1066 = vmatpush.bf16.msra.mxu0 %v698
    %1067 = vmatpush.bf16.msra.mxu0 %v694
    %1068 = vmatpush.bf16.msra.mxu0 %v690
    %1069 = vmatmul.bf16.gmra.mxu0 %v99
    %v1070 = vpop.f32.mrf.mxu0
    %v1071 = vadd.f32 %v1058, %v1070
    %v1072 = vpop.f32.mrf.mxu0
    %1073 = vdwg.mxu0
    %1074 = vmatpush.bf16.msra.mxu0 %v750
    %1075 = vmatpush.bf16.msra.mxu0 %v746
    %1076 = vmatpush.bf16.msra.mxu0 %v742
    %1077 = vmatpush.bf16.msra.mxu0 %v738
    %1078 = vmatpush.bf16.msra.mxu0 %v734
    %1079 = vmatpush.bf16.msra.mxu0 %v730
    %1080 = vmatpush.bf16.msra.mxu0 %v726
    %1081 = vmatpush.bf16.msra.mxu0 %v722
    %1082 = vmatmul.bf16.gmra.mxu0 %v100
    %v1083 = vpop.f32.mrf.mxu0
    %v1084 = vadd.f32 %v1071, %v1083
    %v1085 = vpop.f32.mrf.mxu0
    %1086 = vdwg.mxu0
    %v1087 = vmax.f32 %v928, 0.0
    %v1088 = vmax.f32 %v980, 0.0
    %v1089 = vmax.f32 %v1032, 0.0
    %v1090 = vmax.f32 %v1084, 0.0
    %v1091 = vpack.c.bf16 %v1087, %v1087
    %v1092 = vpack.c.bf16 %v1088, %v1088
    %v1093 = vpack.c.bf16 %v1089, %v1089
    %v1094 = vpack.c.bf16 %v1090, %v1090
    %v1095 = vld [vmem:[#allocation8] sm:$0xff]
    %v1096 = vld [vmem:[#allocation8 + $0x8] sm:$0xff]
    %v1097 = vld [vmem:[#allocation8 + $0x10] sm:$0xff]
    %v1098 = vld [vmem:[#allocation8 + $0x18] sm:$0xff]
    %v1099 = vld [vmem:[#allocation8 + $0x20] sm:$0xff]
    %v1100 = vld [vmem:[#allocation8 + $0x28] sm:$0xff]
    %v1101 = vld [vmem:[#allocation8 + $0x30] sm:$0xff]
    %v1102 = vld [vmem:[#allocation8 + $0x38] sm:$0xff]
    %v1103 = vld [vmem:[#allocation8 + $0x40] sm:$0xff]
    %v1104 = vld [vmem:[#allocation8 + $0x48] sm:$0xff]
    %v1105 = vld [vmem:[#allocation8 + $0x50] sm:$0xff]
    %v1106 = vld [vmem:[#allocation8 + $0x58] sm:$0xff]
    %v1107 = vld [vmem:[#allocation8 + $0x60] sm:$0xff]
    %v1108 = vld [vmem:[#allocation8 + $0x68] sm:$0xff]
    %v1109 = vld [vmem:[#allocation8 + $0x70] sm:$0xff]
    %v1110 = vld [vmem:[#allocation8 + $0x78] sm:$0xff]
    %v1111 = vld [vmem:[#allocation8 + $0x80] sm:$0xff]
    %v1112 = vld [vmem:[#allocation8 + $0x88] sm:$0xff]
    %v1113 = vld [vmem:[#allocation8 + $0x90] sm:$0xff]
    %v1114 = vld [vmem:[#allocation8 + $0x98] sm:$0xff]
    %v1115 = vld [vmem:[#allocation8 + $0xa0] sm:$0xff]
    %v1116 = vld [vmem:[#allocation8 + $0xa8] sm:$0xff]
    %v1117 = vld [vmem:[#allocation8 + $0xb0] sm:$0xff]
    %v1118 = vld [vmem:[#allocation8 + $0xb8] sm:$0xff]
    %v1119 = vld [vmem:[#allocation8 + $0xc0] sm:$0xff]
    %v1120 = vld [vmem:[#allocation8 + $0xc8] sm:$0xff]
    %v1121 = vld [vmem:[#allocation8 + $0xd0] sm:$0xff]
    %v1122 = vld [vmem:[#allocation8 + $0xd8] sm:$0xff]
    %v1123 = vld [vmem:[#allocation8 + $0xe0] sm:$0xff]
    %v1124 = vld [vmem:[#allocation8 + $0xe8] sm:$0xff]
    %v1125 = vld [vmem:[#allocation8 + $0xf0] sm:$0xff]
    %v1126 = vld [vmem:[#allocation8 + $0xf8] sm:$0xff]
    %v1127 = vld [vmem:[#allocation8 + $0x100] sm:$0xff]
    %v1128 = vld [vmem:[#allocation8 + $0x108] sm:$0xff]
    %v1129 = vld [vmem:[#allocation8 + $0x110] sm:$0xff]
    %v1130 = vld [vmem:[#allocation8 + $0x118] sm:$0xff]
    %v1131 = vld [vmem:[#allocation8 + $0x120] sm:$0xff]
    %v1132 = vld [vmem:[#allocation8 + $0x128] sm:$0xff]
    %v1133 = vld [vmem:[#allocation8 + $0x130] sm:$0xff]
    %v1134 = vld [vmem:[#allocation8 + $0x138] sm:$0xff]
    %v1135 = vld [vmem:[#allocation8 + $0x140] sm:$0xff]
    %v1136 = vld [vmem:[#allocation8 + $0x148] sm:$0xff]
    %v1137 = vld [vmem:[#allocation8 + $0x150] sm:$0xff]
    %v1138 = vld [vmem:[#allocation8 + $0x158] sm:$0xff]
    %v1139 = vld [vmem:[#allocation8 + $0x160] sm:$0xff]
    %v1140 = vld [vmem:[#allocation8 + $0x168] sm:$0xff]
    %v1141 = vld [vmem:[#allocation8 + $0x170] sm:$0xff]
    %v1142 = vld [vmem:[#allocation8 + $0x178] sm:$0xff]
    %v1143 = vld [vmem:[#allocation8 + $0x180] sm:$0xff]
    %v1144 = vld [vmem:[#allocation8 + $0x188] sm:$0xff]
    %v1145 = vld [vmem:[#allocation8 + $0x190] sm:$0xff]
    %v1146 = vld [vmem:[#allocation8 + $0x198] sm:$0xff]
    %v1147 = vld [vmem:[#allocation8 + $0x1a0] sm:$0xff]
    %v1148 = vld [vmem:[#allocation8 + $0x1a8] sm:$0xff]
    %v1149 = vld [vmem:[#allocation8 + $0x1b0] sm:$0xff]
    %v1150 = vld [vmem:[#allocation8 + $0x1b8] sm:$0xff]
    %v1151 = vld [vmem:[#allocation8 + $0x1c0] sm:$0xff]
    %v1152 = vld [vmem:[#allocation8 + $0x1c8] sm:$0xff]
    %v1153 = vld [vmem:[#allocation8 + $0x1d0] sm:$0xff]
    %v1154 = vld [vmem:[#allocation8 + $0x1d8] sm:$0xff]
    %v1155 = vld [vmem:[#allocation8 + $0x1e0] sm:$0xff]
    %v1156 = vld [vmem:[#allocation8 + $0x1e8] sm:$0xff]
    %v1157 = vld [vmem:[#allocation8 + $0x1f0] sm:$0xff]
    %v1158 = vld [vmem:[#allocation8 + $0x1f8] sm:$0xff]
    %v1159 = vld [vmem:[#allocation8 + $0x200] sm:$0xff]
    %v1160 = vld [vmem:[#allocation8 + $0x208] sm:$0xff]
    %v1161 = vld [vmem:[#allocation8 + $0x210] sm:$0xff]
    %v1162 = vld [vmem:[#allocation8 + $0x218] sm:$0xff]
    %v1163 = vld [vmem:[#allocation8 + $0x220] sm:$0xff]
    %v1164 = vld [vmem:[#allocation8 + $0x228] sm:$0xff]
    %v1165 = vld [vmem:[#allocation8 + $0x230] sm:$0xff]
    %v1166 = vld [vmem:[#allocation8 + $0x238] sm:$0xff]
    %v1167 = vld [vmem:[#allocation8 + $0x240] sm:$0xff]
    %v1168 = vld [vmem:[#allocation8 + $0x248] sm:$0xff]
    %v1169 = vld [vmem:[#allocation8 + $0x250] sm:$0xff]
    %v1170 = vld [vmem:[#allocation8 + $0x258] sm:$0xff]
    %v1171 = vld [vmem:[#allocation8 + $0x260] sm:$0xff]
    %v1172 = vld [vmem:[#allocation8 + $0x268] sm:$0xff]
    %v1173 = vld [vmem:[#allocation8 + $0x270] sm:$0xff]
    %v1174 = vld [vmem:[#allocation8 + $0x278] sm:$0xff]
    %v1175 = vld [vmem:[#allocation8 + $0x280] sm:$0xff]
    %v1176 = vld [vmem:[#allocation8 + $0x288] sm:$0xff]
    %v1177 = vld [vmem:[#allocation8 + $0x290] sm:$0xff]
    %v1178 = vld [vmem:[#allocation8 + $0x298] sm:$0xff]
    %v1179 = vld [vmem:[#allocation8 + $0x2a0] sm:$0xff]
    %v1180 = vld [vmem:[#allocation8 + $0x2a8] sm:$0xff]
    %v1181 = vld [vmem:[#allocation8 + $0x2b0] sm:$0xff]
    %v1182 = vld [vmem:[#allocation8 + $0x2b8] sm:$0xff]
    %v1183 = vld [vmem:[#allocation8 + $0x2c0] sm:$0xff]
    %v1184 = vld [vmem:[#allocation8 + $0x2c8] sm:$0xff]
    %v1185 = vld [vmem:[#allocation8 + $0x2d0] sm:$0xff]
    %v1186 = vld [vmem:[#allocation8 + $0x2d8] sm:$0xff]
    %v1187 = vld [vmem:[#allocation8 + $0x2e0] sm:$0xff]
    %v1188 = vld [vmem:[#allocation8 + $0x2e8] sm:$0xff]
    %v1189 = vld [vmem:[#allocation8 + $0x2f0] sm:$0xff]
    %v1190 = vld [vmem:[#allocation8 + $0x2f8] sm:$0xff]
    %v1191 = vld [vmem:[#allocation8 + $0x300] sm:$0xff]
    %v1192 = vld [vmem:[#allocation8 + $0x308] sm:$0xff]
    %v1193 = vld [vmem:[#allocation8 + $0x310] sm:$0xff]
    %v1194 = vld [vmem:[#allocation8 + $0x318] sm:$0xff]
    %v1195 = vld [vmem:[#allocation8 + $0x320] sm:$0xff]
    %v1196 = vld [vmem:[#allocation8 + $0x328] sm:$0xff]
    %v1197 = vld [vmem:[#allocation8 + $0x330] sm:$0xff]
    %v1198 = vld [vmem:[#allocation8 + $0x338] sm:$0xff]
    %v1199 = vld [vmem:[#allocation8 + $0x340] sm:$0xff]
    %v1200 = vld [vmem:[#allocation8 + $0x348] sm:$0xff]
    %v1201 = vld [vmem:[#allocation8 + $0x350] sm:$0xff]
    %v1202 = vld [vmem:[#allocation8 + $0x358] sm:$0xff]
    %v1203 = vld [vmem:[#allocation8 + $0x360] sm:$0xff]
    %v1204 = vld [vmem:[#allocation8 + $0x368] sm:$0xff]
    %v1205 = vld [vmem:[#allocation8 + $0x370] sm:$0xff]
    %v1206 = vld [vmem:[#allocation8 + $0x378] sm:$0xff]
    %v1207 = vld [vmem:[#allocation8 + $0x380] sm:$0xff]
    %v1208 = vld [vmem:[#allocation8 + $0x388] sm:$0xff]
    %v1209 = vld [vmem:[#allocation8 + $0x390] sm:$0xff]
    %v1210 = vld [vmem:[#allocation8 + $0x398] sm:$0xff]
    %v1211 = vld [vmem:[#allocation8 + $0x3a0] sm:$0xff]
    %v1212 = vld [vmem:[#allocation8 + $0x3a8] sm:$0xff]
    %v1213 = vld [vmem:[#allocation8 + $0x3b0] sm:$0xff]
    %v1214 = vld [vmem:[#allocation8 + $0x3b8] sm:$0xff]
    %v1215 = vld [vmem:[#allocation8 + $0x3c0] sm:$0xff]
    %v1216 = vld [vmem:[#allocation8 + $0x3c8] sm:$0xff]
    %v1217 = vld [vmem:[#allocation8 + $0x3d0] sm:$0xff]
    %v1218 = vld [vmem:[#allocation8 + $0x3d8] sm:$0xff]
    %v1219 = vld [vmem:[#allocation8 + $0x3e0] sm:$0xff]
    %v1220 = vld [vmem:[#allocation8 + $0x3e8] sm:$0xff]
    %v1221 = vld [vmem:[#allocation8 + $0x3f0] sm:$0xff]
    %v1222 = vld [vmem:[#allocation8 + $0x3f8] sm:$0xff]
    %v1223 = vld [vmem:[#allocation8 + $0x400] sm:$0xff]
    %v1224 = vld [vmem:[#allocation8 + $0x408] sm:$0xff]
    %v1225 = vld [vmem:[#allocation8 + $0x410] sm:$0xff]
    %v1226 = vld [vmem:[#allocation8 + $0x418] sm:$0xff]
    %v1227 = vld [vmem:[#allocation8 + $0x420] sm:$0xff]
    %v1228 = vld [vmem:[#allocation8 + $0x428] sm:$0xff]
    %v1229 = vld [vmem:[#allocation8 + $0x430] sm:$0xff]
    %v1230 = vld [vmem:[#allocation8 + $0x438] sm:$0xff]
    %v1231 = vld [vmem:[#allocation8 + $0x440] sm:$0xff]
    %v1232 = vld [vmem:[#allocation8 + $0x448] sm:$0xff]
    %v1233 = vld [vmem:[#allocation8 + $0x450] sm:$0xff]
    %v1234 = vld [vmem:[#allocation8 + $0x458] sm:$0xff]
    %v1235 = vld [vmem:[#allocation8 + $0x460] sm:$0xff]
    %v1236 = vld [vmem:[#allocation8 + $0x468] sm:$0xff]
    %v1237 = vld [vmem:[#allocation8 + $0x470] sm:$0xff]
    %v1238 = vld [vmem:[#allocation8 + $0x478] sm:$0xff]
    %v1239 = vld [vmem:[#allocation8 + $0x480] sm:$0xff]
    %v1240 = vld [vmem:[#allocation8 + $0x488] sm:$0xff]
    %v1241 = vld [vmem:[#allocation8 + $0x490] sm:$0xff]
    %v1242 = vld [vmem:[#allocation8 + $0x498] sm:$0xff]
    %v1243 = vld [vmem:[#allocation8 + $0x4a0] sm:$0xff]
    %v1244 = vld [vmem:[#allocation8 + $0x4a8] sm:$0xff]
    %v1245 = vld [vmem:[#allocation8 + $0x4b0] sm:$0xff]
    %v1246 = vld [vmem:[#allocation8 + $0x4b8] sm:$0xff]
    %v1247 = vld [vmem:[#allocation8 + $0x4c0] sm:$0xff]
    %v1248 = vld [vmem:[#allocation8 + $0x4c8] sm:$0xff]
    %v1249 = vld [vmem:[#allocation8 + $0x4d0] sm:$0xff]
    %v1250 = vld [vmem:[#allocation8 + $0x4d8] sm:$0xff]
    %v1251 = vld [vmem:[#allocation8 + $0x4e0] sm:$0xff]
    %v1252 = vld [vmem:[#allocation8 + $0x4e8] sm:$0xff]
    %v1253 = vld [vmem:[#allocation8 + $0x4f0] sm:$0xff]
    %v1254 = vld [vmem:[#allocation8 + $0x4f8] sm:$0xff]
    %v1255 = vld [vmem:[#allocation8 + $0x500] sm:$0xff]
    %v1256 = vld [vmem:[#allocation8 + $0x508] sm:$0xff]
    %v1257 = vld [vmem:[#allocation8 + $0x510] sm:$0xff]
    %v1258 = vld [vmem:[#allocation8 + $0x518] sm:$0xff]
    %v1259 = vld [vmem:[#allocation8 + $0x520] sm:$0xff]
    %v1260 = vld [vmem:[#allocation8 + $0x528] sm:$0xff]
    %v1261 = vld [vmem:[#allocation8 + $0x530] sm:$0xff]
    %v1262 = vld [vmem:[#allocation8 + $0x538] sm:$0xff]
    %v1263 = vld [vmem:[#allocation8 + $0x540] sm:$0xff]
    %v1264 = vld [vmem:[#allocation8 + $0x548] sm:$0xff]
    %v1265 = vld [vmem:[#allocation8 + $0x550] sm:$0xff]
    %v1266 = vld [vmem:[#allocation8 + $0x558] sm:$0xff]
    %v1267 = vld [vmem:[#allocation8 + $0x560] sm:$0xff]
    %v1268 = vld [vmem:[#allocation8 + $0x568] sm:$0xff]
    %v1269 = vld [vmem:[#allocation8 + $0x570] sm:$0xff]
    %v1270 = vld [vmem:[#allocation8 + $0x578] sm:$0xff]
    %v1271 = vld [vmem:[#allocation8 + $0x580] sm:$0xff]
    %v1272 = vld [vmem:[#allocation8 + $0x588] sm:$0xff]
    %v1273 = vld [vmem:[#allocation8 + $0x590] sm:$0xff]
    %v1274 = vld [vmem:[#allocation8 + $0x598] sm:$0xff]
    %v1275 = vld [vmem:[#allocation8 + $0x5a0] sm:$0xff]
    %v1276 = vld [vmem:[#allocation8 + $0x5a8] sm:$0xff]
    %v1277 = vld [vmem:[#allocation8 + $0x5b0] sm:$0xff]
    %v1278 = vld [vmem:[#allocation8 + $0x5b8] sm:$0xff]
    %v1279 = vld [vmem:[#allocation8 + $0x5c0] sm:$0xff]
    %v1280 = vld [vmem:[#allocation8 + $0x5c8] sm:$0xff]
    %v1281 = vld [vmem:[#allocation8 + $0x5d0] sm:$0xff]
    %v1282 = vld [vmem:[#allocation8 + $0x5d8] sm:$0xff]
    %v1283 = vld [vmem:[#allocation8 + $0x5e0] sm:$0xff]
    %v1284 = vld [vmem:[#allocation8 + $0x5e8] sm:$0xff]
    %v1285 = vld [vmem:[#allocation8 + $0x5f0] sm:$0xff]
    %v1286 = vld [vmem:[#allocation8 + $0x5f8] sm:$0xff]
    %v1287 = vld [vmem:[#allocation8 + $0x600] sm:$0xff]
    %v1288 = vld [vmem:[#allocation8 + $0x608] sm:$0xff]
    %v1289 = vld [vmem:[#allocation8 + $0x610] sm:$0xff]
    %v1290 = vld [vmem:[#allocation8 + $0x618] sm:$0xff]
    %v1291 = vld [vmem:[#allocation8 + $0x620] sm:$0xff]
    %v1292 = vld [vmem:[#allocation8 + $0x628] sm:$0xff]
    %v1293 = vld [vmem:[#allocation8 + $0x630] sm:$0xff]
    %v1294 = vld [vmem:[#allocation8 + $0x638] sm:$0xff]
    %v1295 = vld [vmem:[#allocation8 + $0x640] sm:$0xff]
    %v1296 = vld [vmem:[#allocation8 + $0x648] sm:$0xff]
    %v1297 = vld [vmem:[#allocation8 + $0x650] sm:$0xff]
    %v1298 = vld [vmem:[#allocation8 + $0x658] sm:$0xff]
    %v1299 = vld [vmem:[#allocation8 + $0x660] sm:$0xff]
    %v1300 = vld [vmem:[#allocation8 + $0x668] sm:$0xff]
    %v1301 = vld [vmem:[#allocation8 + $0x670] sm:$0xff]
    %v1302 = vld [vmem:[#allocation8 + $0x678] sm:$0xff]
    %v1303 = vld [vmem:[#allocation8 + $0x680] sm:$0xff]
    %v1304 = vld [vmem:[#allocation8 + $0x688] sm:$0xff]
    %v1305 = vld [vmem:[#allocation8 + $0x690] sm:$0xff]
    %v1306 = vld [vmem:[#allocation8 + $0x698] sm:$0xff]
    %v1307 = vld [vmem:[#allocation8 + $0x6a0] sm:$0xff]
    %v1308 = vld [vmem:[#allocation8 + $0x6a8] sm:$0xff]
    %v1309 = vld [vmem:[#allocation8 + $0x6b0] sm:$0xff]
    %v1310 = vld [vmem:[#allocation8 + $0x6b8] sm:$0xff]
    %v1311 = vld [vmem:[#allocation8 + $0x6c0] sm:$0xff]
    %v1312 = vld [vmem:[#allocation8 + $0x6c8] sm:$0xff]
    %v1313 = vld [vmem:[#allocation8 + $0x6d0] sm:$0xff]
    %v1314 = vld [vmem:[#allocation8 + $0x6d8] sm:$0xff]
    %v1315 = vld [vmem:[#allocation8 + $0x6e0] sm:$0xff]
    %v1316 = vld [vmem:[#allocation8 + $0x6e8] sm:$0xff]
    %v1317 = vld [vmem:[#allocation8 + $0x6f0] sm:$0xff]
    %v1318 = vld [vmem:[#allocation8 + $0x6f8] sm:$0xff]
    %v1319 = vld [vmem:[#allocation8 + $0x700] sm:$0xff]
    %v1320 = vld [vmem:[#allocation8 + $0x708] sm:$0xff]
    %v1321 = vld [vmem:[#allocation8 + $0x710] sm:$0xff]
    %v1322 = vld [vmem:[#allocation8 + $0x718] sm:$0xff]
    %v1323 = vld [vmem:[#allocation8 + $0x720] sm:$0xff]
    %v1324 = vld [vmem:[#allocation8 + $0x728] sm:$0xff]
    %v1325 = vld [vmem:[#allocation8 + $0x730] sm:$0xff]
    %v1326 = vld [vmem:[#allocation8 + $0x738] sm:$0xff]
    %v1327 = vld [vmem:[#allocation8 + $0x740] sm:$0xff]
    %v1328 = vld [vmem:[#allocation8 + $0x748] sm:$0xff]
    %v1329 = vld [vmem:[#allocation8 + $0x750] sm:$0xff]
    %v1330 = vld [vmem:[#allocation8 + $0x758] sm:$0xff]
    %v1331 = vld [vmem:[#allocation8 + $0x760] sm:$0xff]
    %v1332 = vld [vmem:[#allocation8 + $0x768] sm:$0xff]
    %v1333 = vld [vmem:[#allocation8 + $0x770] sm:$0xff]
    %v1334 = vld [vmem:[#allocation8 + $0x778] sm:$0xff]
    %v1335 = vld [vmem:[#allocation8 + $0x780] sm:$0xff]
    %v1336 = vld [vmem:[#allocation8 + $0x788] sm:$0xff]
    %v1337 = vld [vmem:[#allocation8 + $0x790] sm:$0xff]
    %v1338 = vld [vmem:[#allocation8 + $0x798] sm:$0xff]
    %v1339 = vld [vmem:[#allocation8 + $0x7a0] sm:$0xff]
    %v1340 = vld [vmem:[#allocation8 + $0x7a8] sm:$0xff]
    %v1341 = vld [vmem:[#allocation8 + $0x7b0] sm:$0xff]
    %v1342 = vld [vmem:[#allocation8 + $0x7b8] sm:$0xff]
    %v1343 = vld [vmem:[#allocation8 + $0x7c0] sm:$0xff]
    %v1344 = vld [vmem:[#allocation8 + $0x7c8] sm:$0xff]
    %v1345 = vld [vmem:[#allocation8 + $0x7d0] sm:$0xff]
    %v1346 = vld [vmem:[#allocation8 + $0x7d8] sm:$0xff]
    %v1347 = vld [vmem:[#allocation8 + $0x7e0] sm:$0xff]
    %v1348 = vld [vmem:[#allocation8 + $0x7e8] sm:$0xff]
    %v1349 = vld [vmem:[#allocation8 + $0x7f0] sm:$0xff]
    %v1350 = vld [vmem:[#allocation8 + $0x7f8] sm:$0xff]
    %v1351 = vld [vmem:[#allocation10] sm:$0xff]
    %v1353 = vperm.slane %v1351, 0
    %v1354 = vperm.slane %v1351, 1
    %v1355 = vperm.slane %v1351, 2
    %v1356 = vperm.slane %v1351, 3
    %v1357 = vperm.slane %v1351, 4
    %v1358 = vperm.slane %v1351, 5
    %v1359 = vperm.slane %v1351, 6
    %v1360 = vperm.slane %v1351, 7
    %v1625 = vunpack.c.l.b16 %v1095
    %v1626 = vunpack.c.h.b16 %v1095
    %v1627 = vunpack.c.l.b16 %v1096
    %v1628 = vunpack.c.h.b16 %v1096
    %v1629 = vunpack.c.l.b16 %v1097
    %v1630 = vunpack.c.h.b16 %v1097
    %v1631 = vunpack.c.l.b16 %v1098
    %v1632 = vunpack.c.h.b16 %v1098
    %v1633 = vunpack.c.l.b16 %v1099
    %v1634 = vunpack.c.h.b16 %v1099
    %v1635 = vunpack.c.l.b16 %v1100
    %v1636 = vunpack.c.h.b16 %v1100
    %v1637 = vunpack.c.l.b16 %v1101
    %v1638 = vunpack.c.h.b16 %v1101
    %v1639 = vunpack.c.l.b16 %v1102
    %v1640 = vunpack.c.h.b16 %v1102
    %v1641 = vunpack.c.l.b16 %v1103
    %v1642 = vunpack.c.h.b16 %v1103
    %v1643 = vunpack.c.l.b16 %v1104
    %v1644 = vunpack.c.h.b16 %v1104
    %v1645 = vunpack.c.l.b16 %v1105
    %v1646 = vunpack.c.h.b16 %v1105
    %v1647 = vunpack.c.l.b16 %v1106
    %v1648 = vunpack.c.h.b16 %v1106
    %v1649 = vunpack.c.l.b16 %v1107
    %v1650 = vunpack.c.h.b16 %v1107
    %v1651 = vunpack.c.l.b16 %v1108
    %v1652 = vunpack.c.h.b16 %v1108
    %v1653 = vunpack.c.l.b16 %v1109
    %v1654 = vunpack.c.h.b16 %v1109
    %v1655 = vunpack.c.l.b16 %v1110
    %v1656 = vunpack.c.h.b16 %v1110
    %v1657 = vunpack.c.l.b16 %v1111
    %v1658 = vunpack.c.h.b16 %v1111
    %v1659 = vunpack.c.l.b16 %v1112
    %v1660 = vunpack.c.h.b16 %v1112
    %v1661 = vunpack.c.l.b16 %v1113
    %v1662 = vunpack.c.h.b16 %v1113
    %v1663 = vunpack.c.l.b16 %v1114
    %v1664 = vunpack.c.h.b16 %v1114
    %v1665 = vunpack.c.l.b16 %v1115
    %v1666 = vunpack.c.h.b16 %v1115
    %v1667 = vunpack.c.l.b16 %v1116
    %v1668 = vunpack.c.h.b16 %v1116
    %v1669 = vunpack.c.l.b16 %v1117
    %v1670 = vunpack.c.h.b16 %v1117
    %v1671 = vunpack.c.l.b16 %v1118
    %v1672 = vunpack.c.h.b16 %v1118
    %v1673 = vunpack.c.l.b16 %v1119
    %v1674 = vunpack.c.h.b16 %v1119
    %v1675 = vunpack.c.l.b16 %v1120
    %v1676 = vunpack.c.h.b16 %v1120
    %v1677 = vunpack.c.l.b16 %v1121
    %v1678 = vunpack.c.h.b16 %v1121
    %v1679 = vunpack.c.l.b16 %v1122
    %v1680 = vunpack.c.h.b16 %v1122
    %v1681 = vunpack.c.l.b16 %v1123
    %v1682 = vunpack.c.h.b16 %v1123
    %v1683 = vunpack.c.l.b16 %v1124
    %v1684 = vunpack.c.h.b16 %v1124
    %v1685 = vunpack.c.l.b16 %v1125
    %v1686 = vunpack.c.h.b16 %v1125
    %v1687 = vunpack.c.l.b16 %v1126
    %v1688 = vunpack.c.h.b16 %v1126
    %v1689 = vunpack.c.l.b16 %v1127
    %v1690 = vunpack.c.h.b16 %v1127
    %v1691 = vunpack.c.l.b16 %v1128
    %v1692 = vunpack.c.h.b16 %v1128
    %v1693 = vunpack.c.l.b16 %v1129
    %v1694 = vunpack.c.h.b16 %v1129
    %v1695 = vunpack.c.l.b16 %v1130
    %v1696 = vunpack.c.h.b16 %v1130
    %v1697 = vunpack.c.l.b16 %v1131
    %v1698 = vunpack.c.h.b16 %v1131
    %v1699 = vunpack.c.l.b16 %v1132
    %v1700 = vunpack.c.h.b16 %v1132
    %v1701 = vunpack.c.l.b16 %v1133
    %v1702 = vunpack.c.h.b16 %v1133
    %v1703 = vunpack.c.l.b16 %v1134
    %v1704 = vunpack.c.h.b16 %v1134
    %v1705 = vunpack.c.l.b16 %v1135
    %v1706 = vunpack.c.h.b16 %v1135
    %v1707 = vunpack.c.l.b16 %v1136
    %v1708 = vunpack.c.h.b16 %v1136
    %v1709 = vunpack.c.l.b16 %v1137
    %v1710 = vunpack.c.h.b16 %v1137
    %v1711 = vunpack.c.l.b16 %v1138
    %v1712 = vunpack.c.h.b16 %v1138
    %v1713 = vunpack.c.l.b16 %v1139
    %v1714 = vunpack.c.h.b16 %v1139
    %v1715 = vunpack.c.l.b16 %v1140
    %v1716 = vunpack.c.h.b16 %v1140
    %v1717 = vunpack.c.l.b16 %v1141
    %v1718 = vunpack.c.h.b16 %v1141
    %v1719 = vunpack.c.l.b16 %v1142
    %v1720 = vunpack.c.h.b16 %v1142
    %v1721 = vunpack.c.l.b16 %v1143
    %v1722 = vunpack.c.h.b16 %v1143
    %v1723 = vunpack.c.l.b16 %v1144
    %v1724 = vunpack.c.h.b16 %v1144
    %v1725 = vunpack.c.l.b16 %v1145
    %v1726 = vunpack.c.h.b16 %v1145
    %v1727 = vunpack.c.l.b16 %v1146
    %v1728 = vunpack.c.h.b16 %v1146
    %v1729 = vunpack.c.l.b16 %v1147
    %v1730 = vunpack.c.h.b16 %v1147
    %v1731 = vunpack.c.l.b16 %v1148
    %v1732 = vunpack.c.h.b16 %v1148
    %v1733 = vunpack.c.l.b16 %v1149
    %v1734 = vunpack.c.h.b16 %v1149
    %v1735 = vunpack.c.l.b16 %v1150
    %v1736 = vunpack.c.h.b16 %v1150
    %v1737 = vunpack.c.l.b16 %v1151
    %v1738 = vunpack.c.h.b16 %v1151
    %v1739 = vunpack.c.l.b16 %v1152
    %v1740 = vunpack.c.h.b16 %v1152
    %v1741 = vunpack.c.l.b16 %v1153
    %v1742 = vunpack.c.h.b16 %v1153
    %v1743 = vunpack.c.l.b16 %v1154
    %v1744 = vunpack.c.h.b16 %v1154
    %v1745 = vunpack.c.l.b16 %v1155
    %v1746 = vunpack.c.h.b16 %v1155
    %v1747 = vunpack.c.l.b16 %v1156
    %v1748 = vunpack.c.h.b16 %v1156
    %v1749 = vunpack.c.l.b16 %v1157
    %v1750 = vunpack.c.h.b16 %v1157
    %v1751 = vunpack.c.l.b16 %v1158
    %v1752 = vunpack.c.h.b16 %v1158
    %v1753 = vunpack.c.l.b16 %v1159
    %v1754 = vunpack.c.h.b16 %v1159
    %v1755 = vunpack.c.l.b16 %v1160
    %v1756 = vunpack.c.h.b16 %v1160
    %v1757 = vunpack.c.l.b16 %v1161
    %v1758 = vunpack.c.h.b16 %v1161
    %v1759 = vunpack.c.l.b16 %v1162
    %v1760 = vunpack.c.h.b16 %v1162
    %v1761 = vunpack.c.l.b16 %v1163
    %v1762 = vunpack.c.h.b16 %v1163
    %v1763 = vunpack.c.l.b16 %v1164
    %v1764 = vunpack.c.h.b16 %v1164
    %v1765 = vunpack.c.l.b16 %v1165
    %v1766 = vunpack.c.h.b16 %v1165
    %v1767 = vunpack.c.l.b16 %v1166
    %v1768 = vunpack.c.h.b16 %v1166
    %v1769 = vunpack.c.l.b16 %v1167
    %v1770 = vunpack.c.h.b16 %v1167
    %v1771 = vunpack.c.l.b16 %v1168
    %v1772 = vunpack.c.h.b16 %v1168
    %v1773 = vunpack.c.l.b16 %v1169
    %v1774 = vunpack.c.h.b16 %v1169
    %v1775 = vunpack.c.l.b16 %v1170
    %v1776 = vunpack.c.h.b16 %v1170
    %v1777 = vunpack.c.l.b16 %v1171
    %v1778 = vunpack.c.h.b16 %v1171
    %v1779 = vunpack.c.l.b16 %v1172
    %v1780 = vunpack.c.h.b16 %v1172
    %v1781 = vunpack.c.l.b16 %v1173
    %v1782 = vunpack.c.h.b16 %v1173
    %v1783 = vunpack.c.l.b16 %v1174
    %v1784 = vunpack.c.h.b16 %v1174
    %v1785 = vunpack.c.l.b16 %v1175
    %v1786 = vunpack.c.h.b16 %v1175
    %v1787 = vunpack.c.l.b16 %v1176
    %v1788 = vunpack.c.h.b16 %v1176
    %v1789 = vunpack.c.l.b16 %v1177
    %v1790 = vunpack.c.h.b16 %v1177
    %v1791 = vunpack.c.l.b16 %v1178
    %v1792 = vunpack.c.h.b16 %v1178
    %v1793 = vunpack.c.l.b16 %v1179
    %v1794 = vunpack.c.h.b16 %v1179
    %v1795 = vunpack.c.l.b16 %v1180
    %v1796 = vunpack.c.h.b16 %v1180
    %v1797 = vunpack.c.l.b16 %v1181
    %v1798 = vunpack.c.h.b16 %v1181
    %v1799 = vunpack.c.l.b16 %v1182
    %v1800 = vunpack.c.h.b16 %v1182
    %v1801 = vunpack.c.l.b16 %v1183
    %v1802 = vunpack.c.h.b16 %v1183
    %v1803 = vunpack.c.l.b16 %v1184
    %v1804 = vunpack.c.h.b16 %v1184
    %v1805 = vunpack.c.l.b16 %v1185
    %v1806 = vunpack.c.h.b16 %v1185
    %v1807 = vunpack.c.l.b16 %v1186
    %v1808 = vunpack.c.h.b16 %v1186
    %v1809 = vunpack.c.l.b16 %v1187
    %v1810 = vunpack.c.h.b16 %v1187
    %v1811 = vunpack.c.l.b16 %v1188
    %v1812 = vunpack.c.h.b16 %v1188
    %v1813 = vunpack.c.l.b16 %v1189
    %v1814 = vunpack.c.h.b16 %v1189
    %v1815 = vunpack.c.l.b16 %v1190
    %v1816 = vunpack.c.h.b16 %v1190
    %v1817 = vunpack.c.l.b16 %v1191
    %v1818 = vunpack.c.h.b16 %v1191
    %v1819 = vunpack.c.l.b16 %v1192
    %v1820 = vunpack.c.h.b16 %v1192
    %v1821 = vunpack.c.l.b16 %v1193
    %v1822 = vunpack.c.h.b16 %v1193
    %v1823 = vunpack.c.l.b16 %v1194
    %v1824 = vunpack.c.h.b16 %v1194
    %v1825 = vunpack.c.l.b16 %v1195
    %v1826 = vunpack.c.h.b16 %v1195
    %v1827 = vunpack.c.l.b16 %v1196
    %v1828 = vunpack.c.h.b16 %v1196
    %v1829 = vunpack.c.l.b16 %v1197
    %v1830 = vunpack.c.h.b16 %v1197
    %v1831 = vunpack.c.l.b16 %v1198
    %v1832 = vunpack.c.h.b16 %v1198
    %v1833 = vunpack.c.l.b16 %v1199
    %v1834 = vunpack.c.h.b16 %v1199
    %v1835 = vunpack.c.l.b16 %v1200
    %v1836 = vunpack.c.h.b16 %v1200
    %v1837 = vunpack.c.l.b16 %v1201
    %v1838 = vunpack.c.h.b16 %v1201
    %v1839 = vunpack.c.l.b16 %v1202
    %v1840 = vunpack.c.h.b16 %v1202
    %v1841 = vunpack.c.l.b16 %v1203
    %v1842 = vunpack.c.h.b16 %v1203
    %v1843 = vunpack.c.l.b16 %v1204
    %v1844 = vunpack.c.h.b16 %v1204
    %v1845 = vunpack.c.l.b16 %v1205
    %v1846 = vunpack.c.h.b16 %v1205
    %v1847 = vunpack.c.l.b16 %v1206
    %v1848 = vunpack.c.h.b16 %v1206
    %v1849 = vunpack.c.l.b16 %v1207
    %v1850 = vunpack.c.h.b16 %v1207
    %v1851 = vunpack.c.l.b16 %v1208
    %v1852 = vunpack.c.h.b16 %v1208
    %v1853 = vunpack.c.l.b16 %v1209
    %v1854 = vunpack.c.h.b16 %v1209
    %v1855 = vunpack.c.l.b16 %v1210
    %v1856 = vunpack.c.h.b16 %v1210
    %v1857 = vunpack.c.l.b16 %v1211
    %v1858 = vunpack.c.h.b16 %v1211
    %v1859 = vunpack.c.l.b16 %v1212
    %v1860 = vunpack.c.h.b16 %v1212
    %v1861 = vunpack.c.l.b16 %v1213
    %v1862 = vunpack.c.h.b16 %v1213
    %v1863 = vunpack.c.l.b16 %v1214
    %v1864 = vunpack.c.h.b16 %v1214
    %v1865 = vunpack.c.l.b16 %v1215
    %v1866 = vunpack.c.h.b16 %v1215
    %v1867 = vunpack.c.l.b16 %v1216
    %v1868 = vunpack.c.h.b16 %v1216
    %v1869 = vunpack.c.l.b16 %v1217
    %v1870 = vunpack.c.h.b16 %v1217
    %v1871 = vunpack.c.l.b16 %v1218
    %v1872 = vunpack.c.h.b16 %v1218
    %v1873 = vunpack.c.l.b16 %v1219
    %v1874 = vunpack.c.h.b16 %v1219
    %v1875 = vunpack.c.l.b16 %v1220
    %v1876 = vunpack.c.h.b16 %v1220
    %v1877 = vunpack.c.l.b16 %v1221
    %v1878 = vunpack.c.h.b16 %v1221
    %v1879 = vunpack.c.l.b16 %v1222
    %v1880 = vunpack.c.h.b16 %v1222
    %v1881 = vunpack.c.l.b16 %v1223
    %v1882 = vunpack.c.h.b16 %v1223
    %v1883 = vunpack.c.l.b16 %v1224
    %v1884 = vunpack.c.h.b16 %v1224
    %v1885 = vunpack.c.l.b16 %v1225
    %v1886 = vunpack.c.h.b16 %v1225
    %v1887 = vunpack.c.l.b16 %v1226
    %v1888 = vunpack.c.h.b16 %v1226
    %v1889 = vunpack.c.l.b16 %v1227
    %v1890 = vunpack.c.h.b16 %v1227
    %v1891 = vunpack.c.l.b16 %v1228
    %v1892 = vunpack.c.h.b16 %v1228
    %v1893 = vunpack.c.l.b16 %v1229
    %v1894 = vunpack.c.h.b16 %v1229
    %v1895 = vunpack.c.l.b16 %v1230
    %v1896 = vunpack.c.h.b16 %v1230
    %v1897 = vunpack.c.l.b16 %v1231
    %v1898 = vunpack.c.h.b16 %v1231
    %v1899 = vunpack.c.l.b16 %v1232
    %v1900 = vunpack.c.h.b16 %v1232
    %v1901 = vunpack.c.l.b16 %v1233
    %v1902 = vunpack.c.h.b16 %v1233
    %v1903 = vunpack.c.l.b16 %v1234
    %v1904 = vunpack.c.h.b16 %v1234
    %v1905 = vunpack.c.l.b16 %v1235
    %v1906 = vunpack.c.h.b16 %v1235
    %v1907 = vunpack.c.l.b16 %v1236
    %v1908 = vunpack.c.h.b16 %v1236
    %v1909 = vunpack.c.l.b16 %v1237
    %v1910 = vunpack.c.h.b16 %v1237
    %v1911 = vunpack.c.l.b16 %v1238
    %v1912 = vunpack.c.h.b16 %v1238
    %v1913 = vunpack.c.l.b16 %v1239
    %v1914 = vunpack.c.h.b16 %v1239
    %v1915 = vunpack.c.l.b16 %v1240
    %v1916 = vunpack.c.h.b16 %v1240
    %v1917 = vunpack.c.l.b16 %v1241
    %v1918 = vunpack.c.h.b16 %v1241
    %v1919 = vunpack.c.l.b16 %v1242
    %v1920 = vunpack.c.h.b16 %v1242
    %v1921 = vunpack.c.l.b16 %v1243
    %v1922 = vunpack.c.h.b16 %v1243
    %v1923 = vunpack.c.l.b16 %v1244
    %v1924 = vunpack.c.h.b16 %v1244
    %v1925 = vunpack.c.l.b16 %v1245
    %v1926 = vunpack.c.h.b16 %v1245
    %v1927 = vunpack.c.l.b16 %v1246
    %v1928 = vunpack.c.h.b16 %v1246
    %v1929 = vunpack.c.l.b16 %v1247
    %v1930 = vunpack.c.h.b16 %v1247
    %v1931 = vunpack.c.l.b16 %v1248
    %v1932 = vunpack.c.h.b16 %v1248
    %v1933 = vunpack.c.l.b16 %v1249
    %v1934 = vunpack.c.h.b16 %v1249
    %v1935 = vunpack.c.l.b16 %v1250
    %v1936 = vunpack.c.h.b16 %v1250
    %v1937 = vunpack.c.l.b16 %v1251
    %v1938 = vunpack.c.h.b16 %v1251
    %v1939 = vunpack.c.l.b16 %v1252
    %v1940 = vunpack.c.h.b16 %v1252
    %v1941 = vunpack.c.l.b16 %v1253
    %v1942 = vunpack.c.h.b16 %v1253
    %v1943 = vunpack.c.l.b16 %v1254
    %v1944 = vunpack.c.h.b16 %v1254
    %v1945 = vunpack.c.l.b16 %v1255
    %v1946 = vunpack.c.h.b16 %v1255
    %v1947 = vunpack.c.l.b16 %v1256
    %v1948 = vunpack.c.h.b16 %v1256
    %v1949 = vunpack.c.l.b16 %v1257
    %v1950 = vunpack.c.h.b16 %v1257
    %v1951 = vunpack.c.l.b16 %v1258
    %v1952 = vunpack.c.h.b16 %v1258
    %v1953 = vunpack.c.l.b16 %v1259
    %v1954 = vunpack.c.h.b16 %v1259
    %v1955 = vunpack.c.l.b16 %v1260
    %v1956 = vunpack.c.h.b16 %v1260
    %v1957 = vunpack.c.l.b16 %v1261
    %v1958 = vunpack.c.h.b16 %v1261
    %v1959 = vunpack.c.l.b16 %v1262
    %v1960 = vunpack.c.h.b16 %v1262
    %v1961 = vunpack.c.l.b16 %v1263
    %v1962 = vunpack.c.h.b16 %v1263
    %v1963 = vunpack.c.l.b16 %v1264
    %v1964 = vunpack.c.h.b16 %v1264
    %v1965 = vunpack.c.l.b16 %v1265
    %v1966 = vunpack.c.h.b16 %v1265
    %v1967 = vunpack.c.l.b16 %v1266
    %v1968 = vunpack.c.h.b16 %v1266
    %v1969 = vunpack.c.l.b16 %v1267
    %v1970 = vunpack.c.h.b16 %v1267
    %v1971 = vunpack.c.l.b16 %v1268
    %v1972 = vunpack.c.h.b16 %v1268
    %v1973 = vunpack.c.l.b16 %v1269
    %v1974 = vunpack.c.h.b16 %v1269
    %v1975 = vunpack.c.l.b16 %v1270
    %v1976 = vunpack.c.h.b16 %v1270
    %v1977 = vunpack.c.l.b16 %v1271
    %v1978 = vunpack.c.h.b16 %v1271
    %v1979 = vunpack.c.l.b16 %v1272
    %v1980 = vunpack.c.h.b16 %v1272
    %v1981 = vunpack.c.l.b16 %v1273
    %v1982 = vunpack.c.h.b16 %v1273
    %v1983 = vunpack.c.l.b16 %v1274
    %v1984 = vunpack.c.h.b16 %v1274
    %v1985 = vunpack.c.l.b16 %v1275
    %v1986 = vunpack.c.h.b16 %v1275
    %v1987 = vunpack.c.l.b16 %v1276
    %v1988 = vunpack.c.h.b16 %v1276
    %v1989 = vunpack.c.l.b16 %v1277
    %v1990 = vunpack.c.h.b16 %v1277
    %v1991 = vunpack.c.l.b16 %v1278
    %v1992 = vunpack.c.h.b16 %v1278
    %v1993 = vunpack.c.l.b16 %v1279
    %v1994 = vunpack.c.h.b16 %v1279
    %v1995 = vunpack.c.l.b16 %v1280
    %v1996 = vunpack.c.h.b16 %v1280
    %v1997 = vunpack.c.l.b16 %v1281
    %v1998 = vunpack.c.h.b16 %v1281
    %v1999 = vunpack.c.l.b16 %v1282
    %v2000 = vunpack.c.h.b16 %v1282
    %v2001 = vunpack.c.l.b16 %v1283
    %v2002 = vunpack.c.h.b16 %v1283
    %v2003 = vunpack.c.l.b16 %v1284
    %v2004 = vunpack.c.h.b16 %v1284
    %v2005 = vunpack.c.l.b16 %v1285
    %v2006 = vunpack.c.h.b16 %v1285
    %v2007 = vunpack.c.l.b16 %v1286
    %v2008 = vunpack.c.h.b16 %v1286
    %v2009 = vunpack.c.l.b16 %v1287
    %v2010 = vunpack.c.h.b16 %v1287
    %v2011 = vunpack.c.l.b16 %v1288
    %v2012 = vunpack.c.h.b16 %v1288
    %v2013 = vunpack.c.l.b16 %v1289
    %v2014 = vunpack.c.h.b16 %v1289
    %v2015 = vunpack.c.l.b16 %v1290
    %v2016 = vunpack.c.h.b16 %v1290
    %v2017 = vunpack.c.l.b16 %v1291
    %v2018 = vunpack.c.h.b16 %v1291
    %v2019 = vunpack.c.l.b16 %v1292
    %v2020 = vunpack.c.h.b16 %v1292
    %v2021 = vunpack.c.l.b16 %v1293
    %v2022 = vunpack.c.h.b16 %v1293
    %v2023 = vunpack.c.l.b16 %v1294
    %v2024 = vunpack.c.h.b16 %v1294
    %v2025 = vunpack.c.l.b16 %v1295
    %v2026 = vunpack.c.h.b16 %v1295
    %v2027 = vunpack.c.l.b16 %v1296
    %v2028 = vunpack.c.h.b16 %v1296
    %v2029 = vunpack.c.l.b16 %v1297
    %v2030 = vunpack.c.h.b16 %v1297
    %v2031 = vunpack.c.l.b16 %v1298
    %v2032 = vunpack.c.h.b16 %v1298
    %v2033 = vunpack.c.l.b16 %v1299
    %v2034 = vunpack.c.h.b16 %v1299
    %v2035 = vunpack.c.l.b16 %v1300
    %v2036 = vunpack.c.h.b16 %v1300
    %v2037 = vunpack.c.l.b16 %v1301
    %v2038 = vunpack.c.h.b16 %v1301
    %v2039 = vunpack.c.l.b16 %v1302
    %v2040 = vunpack.c.h.b16 %v1302
    %v2041 = vunpack.c.l.b16 %v1303
    %v2042 = vunpack.c.h.b16 %v1303
    %v2043 = vunpack.c.l.b16 %v1304
    %v2044 = vunpack.c.h.b16 %v1304
    %v2045 = vunpack.c.l.b16 %v1305
    %v2046 = vunpack.c.h.b16 %v1305
    %v2047 = vunpack.c.l.b16 %v1306
    %v2048 = vunpack.c.h.b16 %v1306
    %v2049 = vunpack.c.l.b16 %v1307
    %v2050 = vunpack.c.h.b16 %v1307
    %v2051 = vunpack.c.l.b16 %v1308
    %v2052 = vunpack.c.h.b16 %v1308
    %v2053 = vunpack.c.l.b16 %v1309
    %v2054 = vunpack.c.h.b16 %v1309
    %v2055 = vunpack.c.l.b16 %v1310
    %v2056 = vunpack.c.h.b16 %v1310
    %v2057 = vunpack.c.l.b16 %v1311
    %v2058 = vunpack.c.h.b16 %v1311
    %v2059 = vunpack.c.l.b16 %v1312
    %v2060 = vunpack.c.h.b16 %v1312
    %v2061 = vunpack.c.l.b16 %v1313
    %v2062 = vunpack.c.h.b16 %v1313
    %v2063 = vunpack.c.l.b16 %v1314
    %v2064 = vunpack.c.h.b16 %v1314
    %v2065 = vunpack.c.l.b16 %v1315
    %v2066 = vunpack.c.h.b16 %v1315
    %v2067 = vunpack.c.l.b16 %v1316
    %v2068 = vunpack.c.h.b16 %v1316
    %v2069 = vunpack.c.l.b16 %v1317
    %v2070 = vunpack.c.h.b16 %v1317
    %v2071 = vunpack.c.l.b16 %v1318
    %v2072 = vunpack.c.h.b16 %v1318
    %v2073 = vunpack.c.l.b16 %v1319
    %v2074 = vunpack.c.h.b16 %v1319
    %v2075 = vunpack.c.l.b16 %v1320
    %v2076 = vunpack.c.h.b16 %v1320
    %v2077 = vunpack.c.l.b16 %v1321
    %v2078 = vunpack.c.h.b16 %v1321
    %v2079 = vunpack.c.l.b16 %v1322
    %v2080 = vunpack.c.h.b16 %v1322
    %v2081 = vunpack.c.l.b16 %v1323
    %v2082 = vunpack.c.h.b16 %v1323
    %v2083 = vunpack.c.l.b16 %v1324
    %v2084 = vunpack.c.h.b16 %v1324
    %v2085 = vunpack.c.l.b16 %v1325
    %v2086 = vunpack.c.h.b16 %v1325
    %v2087 = vunpack.c.l.b16 %v1326
    %v2088 = vunpack.c.h.b16 %v1326
    %v2089 = vunpack.c.l.b16 %v1327
    %v2090 = vunpack.c.h.b16 %v1327
    %v2091 = vunpack.c.l.b16 %v1328
    %v2092 = vunpack.c.h.b16 %v1328
    %v2093 = vunpack.c.l.b16 %v1329
    %v2094 = vunpack.c.h.b16 %v1329
    %v2095 = vunpack.c.l.b16 %v1330
    %v2096 = vunpack.c.h.b16 %v1330
    %v2097 = vunpack.c.l.b16 %v1331
    %v2098 = vunpack.c.h.b16 %v1331
    %v2099 = vunpack.c.l.b16 %v1332
    %v2100 = vunpack.c.h.b16 %v1332
    %v2101 = vunpack.c.l.b16 %v1333
    %v2102 = vunpack.c.h.b16 %v1333
    %v2103 = vunpack.c.l.b16 %v1334
    %v2104 = vunpack.c.h.b16 %v1334
    %v2105 = vunpack.c.l.b16 %v1335
    %v2106 = vunpack.c.h.b16 %v1335
    %v2107 = vunpack.c.l.b16 %v1336
    %v2108 = vunpack.c.h.b16 %v1336
    %v2109 = vunpack.c.l.b16 %v1337
    %v2110 = vunpack.c.h.b16 %v1337
    %v2111 = vunpack.c.l.b16 %v1338
    %v2112 = vunpack.c.h.b16 %v1338
    %v2113 = vunpack.c.l.b16 %v1339
    %v2114 = vunpack.c.h.b16 %v1339
    %v2115 = vunpack.c.l.b16 %v1340
    %v2116 = vunpack.c.h.b16 %v1340
    %v2117 = vunpack.c.l.b16 %v1341
    %v2118 = vunpack.c.h.b16 %v1341
    %v2119 = vunpack.c.l.b16 %v1342
    %v2120 = vunpack.c.h.b16 %v1342
    %v2121 = vunpack.c.l.b16 %v1343
    %v2122 = vunpack.c.h.b16 %v1343
    %v2123 = vunpack.c.l.b16 %v1344
    %v2124 = vunpack.c.h.b16 %v1344
    %v2125 = vunpack.c.l.b16 %v1345
    %v2126 = vunpack.c.h.b16 %v1345
    %v2127 = vunpack.c.l.b16 %v1346
    %v2128 = vunpack.c.h.b16 %v1346
    %v2129 = vunpack.c.l.b16 %v1347
    %v2130 = vunpack.c.h.b16 %v1347
    %v2131 = vunpack.c.l.b16 %v1348
    %v2132 = vunpack.c.h.b16 %v1348
    %v2133 = vunpack.c.l.b16 %v1349
    %v2134 = vunpack.c.h.b16 %v1349
    %v2135 = vunpack.c.l.b16 %v1350
    %v2136 = vunpack.c.h.b16 %v1350
    %v2137 = vpack.c.b16 %v1633, %v1625
    %v2138 = vpack.c.b16 %v1634, %v1626
    %v2139 = vpack.c.b16 %v1635, %v1627
    %v2140 = vpack.c.b16 %v1636, %v1628
    %v2141 = vpack.c.b16 %v1637, %v1629
    %v2142 = vpack.c.b16 %v1638, %v1630
    %v2143 = vpack.c.b16 %v1639, %v1631
    %v2144 = vpack.c.b16 %v1640, %v1632
    %v2145 = vpack.c.b16 %v1649, %v1641
    %v2146 = vpack.c.b16 %v1650, %v1642
    %v2147 = vpack.c.b16 %v1651, %v1643
    %v2148 = vpack.c.b16 %v1652, %v1644
    %v2149 = vpack.c.b16 %v1653, %v1645
    %v2150 = vpack.c.b16 %v1654, %v1646
    %v2151 = vpack.c.b16 %v1655, %v1647
    %v2152 = vpack.c.b16 %v1656, %v1648
    %v2153 = vpack.c.b16 %v1665, %v1657
    %v2154 = vpack.c.b16 %v1666, %v1658
    %v2155 = vpack.c.b16 %v1667, %v1659
    %v2156 = vpack.c.b16 %v1668, %v1660
    %v2157 = vpack.c.b16 %v1669, %v1661
    %v2158 = vpack.c.b16 %v1670, %v1662
    %v2159 = vpack.c.b16 %v1671, %v1663
    %v2160 = vpack.c.b16 %v1672, %v1664
    %v2161 = vpack.c.b16 %v1681, %v1673
    %v2162 = vpack.c.b16 %v1682, %v1674
    %v2163 = vpack.c.b16 %v1683, %v1675
    %v2164 = vpack.c.b16 %v1684, %v1676
    %v2165 = vpack.c.b16 %v1685, %v1677
    %v2166 = vpack.c.b16 %v1686, %v1678
    %v2167 = vpack.c.b16 %v1687, %v1679
    %v2168 = vpack.c.b16 %v1688, %v1680
    %v2169 = vpack.c.b16 %v1697, %v1689
    %v2170 = vpack.c.b16 %v1698, %v1690
    %v2171 = vpack.c.b16 %v1699, %v1691
    %v2172 = vpack.c.b16 %v1700, %v1692
    %v2173 = vpack.c.b16 %v1701, %v1693
    %v2174 = vpack.c.b16 %v1702, %v1694
    %v2175 = vpack.c.b16 %v1703, %v1695
    %v2176 = vpack.c.b16 %v1704, %v1696
    %v2177 = vpack.c.b16 %v1713, %v1705
    %v2178 = vpack.c.b16 %v1714, %v1706
    %v2179 = vpack.c.b16 %v1715, %v1707
    %v2180 = vpack.c.b16 %v1716, %v1708
    %v2181 = vpack.c.b16 %v1717, %v1709
    %v2182 = vpack.c.b16 %v1718, %v1710
    %v2183 = vpack.c.b16 %v1719, %v1711
    %v2184 = vpack.c.b16 %v1720, %v1712
    %v2185 = vpack.c.b16 %v1729, %v1721
    %v2186 = vpack.c.b16 %v1730, %v1722
    %v2187 = vpack.c.b16 %v1731, %v1723
    %v2188 = vpack.c.b16 %v1732, %v1724
    %v2189 = vpack.c.b16 %v1733, %v1725
    %v2190 = vpack.c.b16 %v1734, %v1726
    %v2191 = vpack.c.b16 %v1735, %v1727
    %v2192 = vpack.c.b16 %v1736, %v1728
    %v2193 = vpack.c.b16 %v1745, %v1737
    %v2194 = vpack.c.b16 %v1746, %v1738
    %v2195 = vpack.c.b16 %v1747, %v1739
    %v2196 = vpack.c.b16 %v1748, %v1740
    %v2197 = vpack.c.b16 %v1749, %v1741
    %v2198 = vpack.c.b16 %v1750, %v1742
    %v2199 = vpack.c.b16 %v1751, %v1743
    %v2200 = vpack.c.b16 %v1752, %v1744
    %v2201 = vpack.c.b16 %v1761, %v1753
    %v2202 = vpack.c.b16 %v1762, %v1754
    %v2203 = vpack.c.b16 %v1763, %v1755
    %v2204 = vpack.c.b16 %v1764, %v1756
    %v2205 = vpack.c.b16 %v1765, %v1757
    %v2206 = vpack.c.b16 %v1766, %v1758
    %v2207 = vpack.c.b16 %v1767, %v1759
    %v2208 = vpack.c.b16 %v1768, %v1760
    %v2209 = vpack.c.b16 %v1777, %v1769
    %v2210 = vpack.c.b16 %v1778, %v1770
    %v2211 = vpack.c.b16 %v1779, %v1771
    %v2212 = vpack.c.b16 %v1780, %v1772
    %v2213 = vpack.c.b16 %v1781, %v1773
    %v2214 = vpack.c.b16 %v1782, %v1774
    %v2215 = vpack.c.b16 %v1783, %v1775
    %v2216 = vpack.c.b16 %v1784, %v1776
    %v2217 = vpack.c.b16 %v1793, %v1785
    %v2218 = vpack.c.b16 %v1794, %v1786
    %v2219 = vpack.c.b16 %v1795, %v1787
    %v2220 = vpack.c.b16 %v1796, %v1788
    %v2221 = vpack.c.b16 %v1797, %v1789
    %v2222 = vpack.c.b16 %v1798, %v1790
    %v2223 = vpack.c.b16 %v1799, %v1791
    %v2224 = vpack.c.b16 %v1800, %v1792
    %v2225 = vpack.c.b16 %v1809, %v1801
    %v2226 = vpack.c.b16 %v1810, %v1802
    %v2227 = vpack.c.b16 %v1811, %v1803
    %v2228 = vpack.c.b16 %v1812, %v1804
    %v2229 = vpack.c.b16 %v1813, %v1805
    %v2230 = vpack.c.b16 %v1814, %v1806
    %v2231 = vpack.c.b16 %v1815, %v1807
    %v2232 = vpack.c.b16 %v1816, %v1808
    %v2233 = vpack.c.b16 %v1825, %v1817
    %v2234 = vpack.c.b16 %v1826, %v1818
    %v2235 = vpack.c.b16 %v1827, %v1819
    %v2236 = vpack.c.b16 %v1828, %v1820
    %v2237 = vpack.c.b16 %v1829, %v1821
    %v2238 = vpack.c.b16 %v1830, %v1822
    %v2239 = vpack.c.b16 %v1831, %v1823
    %v2240 = vpack.c.b16 %v1832, %v1824
    %v2241 = vpack.c.b16 %v1841, %v1833
    %v2242 = vpack.c.b16 %v1842, %v1834
    %v2243 = vpack.c.b16 %v1843, %v1835
    %v2244 = vpack.c.b16 %v1844, %v1836
    %v2245 = vpack.c.b16 %v1845, %v1837
    %v2246 = vpack.c.b16 %v1846, %v1838
    %v2247 = vpack.c.b16 %v1847, %v1839
    %v2248 = vpack.c.b16 %v1848, %v1840
    %v2249 = vpack.c.b16 %v1857, %v1849
    %v2250 = vpack.c.b16 %v1858, %v1850
    %v2251 = vpack.c.b16 %v1859, %v1851
    %v2252 = vpack.c.b16 %v1860, %v1852
    %v2253 = vpack.c.b16 %v1861, %v1853
    %v2254 = vpack.c.b16 %v1862, %v1854
    %v2255 = vpack.c.b16 %v1863, %v1855
    %v2256 = vpack.c.b16 %v1864, %v1856
    %v2257 = vpack.c.b16 %v1873, %v1865
    %v2258 = vpack.c.b16 %v1874, %v1866
    %v2259 = vpack.c.b16 %v1875, %v1867
    %v2260 = vpack.c.b16 %v1876, %v1868
    %v2261 = vpack.c.b16 %v1877, %v1869
    %v2262 = vpack.c.b16 %v1878, %v1870
    %v2263 = vpack.c.b16 %v1879, %v1871
    %v2264 = vpack.c.b16 %v1880, %v1872
    %v2265 = vpack.c.b16 %v1889, %v1881
    %v2266 = vpack.c.b16 %v1890, %v1882
    %v2267 = vpack.c.b16 %v1891, %v1883
    %v2268 = vpack.c.b16 %v1892, %v1884
    %v2269 = vpack.c.b16 %v1893, %v1885
    %v2270 = vpack.c.b16 %v1894, %v1886
    %v2271 = vpack.c.b16 %v1895, %v1887
    %v2272 = vpack.c.b16 %v1896, %v1888
    %v2273 = vpack.c.b16 %v1905, %v1897
    %v2274 = vpack.c.b16 %v1906, %v1898
    %v2275 = vpack.c.b16 %v1907, %v1899
    %v2276 = vpack.c.b16 %v1908, %v1900
    %v2277 = vpack.c.b16 %v1909, %v1901
    %v2278 = vpack.c.b16 %v1910, %v1902
    %v2279 = vpack.c.b16 %v1911, %v1903
    %v2280 = vpack.c.b16 %v1912, %v1904
    %v2281 = vpack.c.b16 %v1921, %v1913
    %v2282 = vpack.c.b16 %v1922, %v1914
    %v2283 = vpack.c.b16 %v1923, %v1915
    %v2284 = vpack.c.b16 %v1924, %v1916
    %v2285 = vpack.c.b16 %v1925, %v1917
    %v2286 = vpack.c.b16 %v1926, %v1918
    %v2287 = vpack.c.b16 %v1927, %v1919
    %v2288 = vpack.c.b16 %v1928, %v1920
    %v2289 = vpack.c.b16 %v1937, %v1929
    %v2290 = vpack.c.b16 %v1938, %v1930
    %v2291 = vpack.c.b16 %v1939, %v1931
    %v2292 = vpack.c.b16 %v1940, %v1932
    %v2293 = vpack.c.b16 %v1941, %v1933
    %v2294 = vpack.c.b16 %v1942, %v1934
    %v2295 = vpack.c.b16 %v1943, %v1935
    %v2296 = vpack.c.b16 %v1944, %v1936
    %v2297 = vpack.c.b16 %v1953, %v1945
    %v2298 = vpack.c.b16 %v1954, %v1946
    %v2299 = vpack.c.b16 %v1955, %v1947
    %v2300 = vpack.c.b16 %v1956, %v1948
    %v2301 = vpack.c.b16 %v1957, %v1949
    %v2302 = vpack.c.b16 %v1958, %v1950
    %v2303 = vpack.c.b16 %v1959, %v1951
    %v2304 = vpack.c.b16 %v1960, %v1952
    %v2305 = vpack.c.b16 %v1969, %v1961
    %v2306 = vpack.c.b16 %v1970, %v1962
    %v2307 = vpack.c.b16 %v1971, %v1963
    %v2308 = vpack.c.b16 %v1972, %v1964
    %v2309 = vpack.c.b16 %v1973, %v1965
    %v2310 = vpack.c.b16 %v1974, %v1966
    %v2311 = vpack.c.b16 %v1975, %v1967
    %v2312 = vpack.c.b16 %v1976, %v1968
    %v2313 = vpack.c.b16 %v1985, %v1977
    %v2314 = vpack.c.b16 %v1986, %v1978
    %v2315 = vpack.c.b16 %v1987, %v1979
    %v2316 = vpack.c.b16 %v1988, %v1980
    %v2317 = vpack.c.b16 %v1989, %v1981
    %v2318 = vpack.c.b16 %v1990, %v1982
    %v2319 = vpack.c.b16 %v1991, %v1983
    %v2320 = vpack.c.b16 %v1992, %v1984
    %v2321 = vpack.c.b16 %v2001, %v1993
    %v2322 = vpack.c.b16 %v2002, %v1994
    %v2323 = vpack.c.b16 %v2003, %v1995
    %v2324 = vpack.c.b16 %v2004, %v1996
    %v2325 = vpack.c.b16 %v2005, %v1997
    %v2326 = vpack.c.b16 %v2006, %v1998
    %v2327 = vpack.c.b16 %v2007, %v1999
    %v2328 = vpack.c.b16 %v2008, %v2000
    %v2329 = vpack.c.b16 %v2017, %v2009
    %v2330 = vpack.c.b16 %v2018, %v2010
    %v2331 = vpack.c.b16 %v2019, %v2011
    %v2332 = vpack.c.b16 %v2020, %v2012
    %v2333 = vpack.c.b16 %v2021, %v2013
    %v2334 = vpack.c.b16 %v2022, %v2014
    %v2335 = vpack.c.b16 %v2023, %v2015
    %v2336 = vpack.c.b16 %v2024, %v2016
    %v2337 = vpack.c.b16 %v2033, %v2025
    %v2338 = vpack.c.b16 %v2034, %v2026
    %v2339 = vpack.c.b16 %v2035, %v2027
    %v2340 = vpack.c.b16 %v2036, %v2028
    %v2341 = vpack.c.b16 %v2037, %v2029
    %v2342 = vpack.c.b16 %v2038, %v2030
    %v2343 = vpack.c.b16 %v2039, %v2031
    %v2344 = vpack.c.b16 %v2040, %v2032
    %v2345 = vpack.c.b16 %v2049, %v2041
    %v2346 = vpack.c.b16 %v2050, %v2042
    %v2347 = vpack.c.b16 %v2051, %v2043
    %v2348 = vpack.c.b16 %v2052, %v2044
    %v2349 = vpack.c.b16 %v2053, %v2045
    %v2350 = vpack.c.b16 %v2054, %v2046
    %v2351 = vpack.c.b16 %v2055, %v2047
    %v2352 = vpack.c.b16 %v2056, %v2048
    %v2353 = vpack.c.b16 %v2065, %v2057
    %v2354 = vpack.c.b16 %v2066, %v2058
    %v2355 = vpack.c.b16 %v2067, %v2059
    %v2356 = vpack.c.b16 %v2068, %v2060
    %v2357 = vpack.c.b16 %v2069, %v2061
    %v2358 = vpack.c.b16 %v2070, %v2062
    %v2359 = vpack.c.b16 %v2071, %v2063
    %v2360 = vpack.c.b16 %v2072, %v2064
    %v2361 = vpack.c.b16 %v2081, %v2073
    %v2362 = vpack.c.b16 %v2082, %v2074
    %v2363 = vpack.c.b16 %v2083, %v2075
    %v2364 = vpack.c.b16 %v2084, %v2076
    %v2365 = vpack.c.b16 %v2085, %v2077
    %v2366 = vpack.c.b16 %v2086, %v2078
    %v2367 = vpack.c.b16 %v2087, %v2079
    %v2368 = vpack.c.b16 %v2088, %v2080
    %v2369 = vpack.c.b16 %v2097, %v2089
    %v2370 = vpack.c.b16 %v2098, %v2090
    %v2371 = vpack.c.b16 %v2099, %v2091
    %v2372 = vpack.c.b16 %v2100, %v2092
    %v2373 = vpack.c.b16 %v2101, %v2093
    %v2374 = vpack.c.b16 %v2102, %v2094
    %v2375 = vpack.c.b16 %v2103, %v2095
    %v2376 = vpack.c.b16 %v2104, %v2096
    %v2377 = vpack.c.b16 %v2113, %v2105
    %v2378 = vpack.c.b16 %v2114, %v2106
    %v2379 = vpack.c.b16 %v2115, %v2107
    %v2380 = vpack.c.b16 %v2116, %v2108
    %v2381 = vpack.c.b16 %v2117, %v2109
    %v2382 = vpack.c.b16 %v2118, %v2110
    %v2383 = vpack.c.b16 %v2119, %v2111
    %v2384 = vpack.c.b16 %v2120, %v2112
    %v2385 = vpack.c.b16 %v2129, %v2121
    %v2386 = vpack.c.b16 %v2130, %v2122
    %v2387 = vpack.c.b16 %v2131, %v2123
    %v2388 = vpack.c.b16 %v2132, %v2124
    %v2389 = vpack.c.b16 %v2133, %v2125
    %v2390 = vpack.c.b16 %v2134, %v2126
    %v2391 = vpack.c.b16 %v2135, %v2127
    %v2392 = vpack.c.b16 %v2136, %v2128
    %2649 = vmatpush.bf16.msra.mxu0 %v2193
    %2650 = vmatpush.bf16.msra.mxu0 %v2185
    %2651 = vmatpush.bf16.msra.mxu0 %v2177
    %2652 = vmatpush.bf16.msra.mxu0 %v2169
    %2653 = vmatpush.bf16.msra.mxu0 %v2161
    %2654 = vmatpush.bf16.msra.mxu0 %v2153
    %2655 = vmatpush.bf16.msra.mxu0 %v2145
    %2656 = vmatpush.bf16.msra.mxu0 %v2137
    %2657 = vmatmul.bf16.gmra.mxu0 %v1091
    %v2658 = vpop.f32.mrf.mxu0
    %v2659 = vadd.f32 %v1353, %v2658
    %v2660 = vpop.f32.mrf.mxu0
    %2661 = vdwg.mxu0
    %2662 = vmatpush.bf16.msra.mxu0 %v2257
    %2663 = vmatpush.bf16.msra.mxu0 %v2249
    %2664 = vmatpush.bf16.msra.mxu0 %v2241
    %2665 = vmatpush.bf16.msra.mxu0 %v2233
    %2666 = vmatpush.bf16.msra.mxu0 %v2225
    %2667 = vmatpush.bf16.msra.mxu0 %v2217
    %2668 = vmatpush.bf16.msra.mxu0 %v2209
    %2669 = vmatpush.bf16.msra.mxu0 %v2201
    %2670 = vmatmul.bf16.gmra.mxu0 %v1092
    %v2671 = vpop.f32.mrf.mxu0
    %v2672 = vadd.f32 %v2659, %v2671
    %v2673 = vpop.f32.mrf.mxu0
    %2674 = vdwg.mxu0
    %2675 = vmatpush.bf16.msra.mxu0 %v2321
    %2676 = vmatpush.bf16.msra.mxu0 %v2313
    %2677 = vmatpush.bf16.msra.mxu0 %v2305
    %2678 = vmatpush.bf16.msra.mxu0 %v2297
    %2679 = vmatpush.bf16.msra.mxu0 %v2289
    %2680 = vmatpush.bf16.msra.mxu0 %v2281
    %2681 = vmatpush.bf16.msra.mxu0 %v2273
    %2682 = vmatpush.bf16.msra.mxu0 %v2265
    %2683 = vmatmul.bf16.gmra.mxu0 %v1093
    %v2684 = vpop.f32.mrf.mxu0
    %v2685 = vadd.f32 %v2672, %v2684
    %v2686 = vpop.f32.mrf.mxu0
    %2687 = vdwg.mxu0
    %2688 = vmatpush.bf16.msra.mxu0 %v2385
    %2689 = vmatpush.bf16.msra.mxu0 %v2377
    %2690 = vmatpush.bf16.msra.mxu0 %v2369
    %2691 = vmatpush.bf16.msra.mxu0 %v2361
    %2692 = vmatpush.bf16.msra.mxu0 %v2353
    %2693 = vmatpush.bf16.msra.mxu0 %v2345
    %2694 = vmatpush.bf16.msra.mxu0 %v2337
    %2695 = vmatpush.bf16.msra.mxu0 %v2329
    %2696 = vmatmul.bf16.gmra.mxu0 %v1094
    %v2697 = vpop.f32.mrf.mxu0
    %v2698 = vadd.f32 %v2685, %v2697
    %v2699 = vpop.f32.mrf.mxu0
    %2700 = vdwg.mxu0
    %2701 = vmatpush.bf16.msra.mxu0 %v2194
    %2702 = vmatpush.bf16.msra.mxu0 %v2186
    %2703 = vmatpush.bf16.msra.mxu0 %v2178
    %2704 = vmatpush.bf16.msra.mxu0 %v2170
    %2705 = vmatpush.bf16.msra.mxu0 %v2162
    %2706 = vmatpush.bf16.msra.mxu0 %v2154
    %2707 = vmatpush.bf16.msra.mxu0 %v2146
    %2708 = vmatpush.bf16.msra.mxu0 %v2138
    %2709 = vmatmul.bf16.gmra.mxu0 %v1091
    %v2710 = vpop.f32.mrf.mxu0
    %v2711 = vadd.f32 %v1354, %v2710
    %v2712 = vpop.f32.mrf.mxu0
    %2713 = vdwg.mxu0
    %2714 = vmatpush.bf16.msra.mxu0 %v2258
    %2715 = vmatpush.bf16.msra.mxu0 %v2250
    %2716 = vmatpush.bf16.msra.mxu0 %v2242
    %2717 = vmatpush.bf16.msra.mxu0 %v2234
    %2718 = vmatpush.bf16.msra.mxu0 %v2226
    %2719 = vmatpush.bf16.msra.mxu0 %v2218
    %2720 = vmatpush.bf16.msra.mxu0 %v2210
    %2721 = vmatpush.bf16.msra.mxu0 %v2202
    %2722 = vmatmul.bf16.gmra.mxu0 %v1092
    %v2723 = vpop.f32.mrf.mxu0
    %v2724 = vadd.f32 %v2711, %v2723
    %v2725 = vpop.f32.mrf.mxu0
    %2726 = vdwg.mxu0
    %2727 = vmatpush.bf16.msra.mxu0 %v2322
    %2728 = vmatpush.bf16.msra.mxu0 %v2314
    %2729 = vmatpush.bf16.msra.mxu0 %v2306
    %2730 = vmatpush.bf16.msra.mxu0 %v2298
    %2731 = vmatpush.bf16.msra.mxu0 %v2290
    %2732 = vmatpush.bf16.msra.mxu0 %v2282
    %2733 = vmatpush.bf16.msra.mxu0 %v2274
    %2734 = vmatpush.bf16.msra.mxu0 %v2266
    %2735 = vmatmul.bf16.gmra.mxu0 %v1093
    %v2736 = vpop.f32.mrf.mxu0
    %v2737 = vadd.f32 %v2724, %v2736
    %v2738 = vpop.f32.mrf.mxu0
    %2739 = vdwg.mxu0
    %2740 = vmatpush.bf16.msra.mxu0 %v2386
    %2741 = vmatpush.bf16.msra.mxu0 %v2378
    %2742 = vmatpush.bf16.msra.mxu0 %v2370
    %2743 = vmatpush.bf16.msra.mxu0 %v2362
    %2744 = vmatpush.bf16.msra.mxu0 %v2354
    %2745 = vmatpush.bf16.msra.mxu0 %v2346
    %2746 = vmatpush.bf16.msra.mxu0 %v2338
    %2747 = vmatpush.bf16.msra.mxu0 %v2330
    %2748 = vmatmul.bf16.gmra.mxu0 %v1094
    %v2749 = vpop.f32.mrf.mxu0
    %v2750 = vadd.f32 %v2737, %v2749
    %v2751 = vpop.f32.mrf.mxu0
    %2752 = vdwg.mxu0
    %2753 = vmatpush.bf16.msra.mxu0 %v2195
    %2754 = vmatpush.bf16.msra.mxu0 %v2187
    %2755 = vmatpush.bf16.msra.mxu0 %v2179
    %2756 = vmatpush.bf16.msra.mxu0 %v2171
    %2757 = vmatpush.bf16.msra.mxu0 %v2163
    %2758 = vmatpush.bf16.msra.mxu0 %v2155
    %2759 = vmatpush.bf16.msra.mxu0 %v2147
    %2760 = vmatpush.bf16.msra.mxu0 %v2139
    %2761 = vmatmul.bf16.gmra.mxu0 %v1091
    %v2762 = vpop.f32.mrf.mxu0
    %v2763 = vadd.f32 %v1355, %v2762
    %v2764 = vpop.f32.mrf.mxu0
    %2765 = vdwg.mxu0
    %2766 = vmatpush.bf16.msra.mxu0 %v2259
    %2767 = vmatpush.bf16.msra.mxu0 %v2251
    %2768 = vmatpush.bf16.msra.mxu0 %v2243
    %2769 = vmatpush.bf16.msra.mxu0 %v2235
    %2770 = vmatpush.bf16.msra.mxu0 %v2227
    %2771 = vmatpush.bf16.msra.mxu0 %v2219
    %2772 = vmatpush.bf16.msra.mxu0 %v2211
    %2773 = vmatpush.bf16.msra.mxu0 %v2203
    %2774 = vmatmul.bf16.gmra.mxu0 %v1092
    %v2775 = vpop.f32.mrf.mxu0
    %v2776 = vadd.f32 %v2763, %v2775
    %v2777 = vpop.f32.mrf.mxu0
    %2778 = vdwg.mxu0
    %2779 = vmatpush.bf16.msra.mxu0 %v2323
    %2780 = vmatpush.bf16.msra.mxu0 %v2315
    %2781 = vmatpush.bf16.msra.mxu0 %v2307
    %2782 = vmatpush.bf16.msra.mxu0 %v2299
    %2783 = vmatpush.bf16.msra.mxu0 %v2291
    %2784 = vmatpush.bf16.msra.mxu0 %v2283
    %2785 = vmatpush.bf16.msra.mxu0 %v2275
    %2786 = vmatpush.bf16.msra.mxu0 %v2267
    %2787 = vmatmul.bf16.gmra.mxu0 %v1093
    %v2788 = vpop.f32.mrf.mxu0
    %v2789 = vadd.f32 %v2776, %v2788
    %v2790 = vpop.f32.mrf.mxu0
    %2791 = vdwg.mxu0
    %2792 = vmatpush.bf16.msra.mxu0 %v2387
    %2793 = vmatpush.bf16.msra.mxu0 %v2379
    %2794 = vmatpush.bf16.msra.mxu0 %v2371
    %2795 = vmatpush.bf16.msra.mxu0 %v2363
    %2796 = vmatpush.bf16.msra.mxu0 %v2355
    %2797 = vmatpush.bf16.msra.mxu0 %v2347
    %2798 = vmatpush.bf16.msra.mxu0 %v2339
    %2799 = vmatpush.bf16.msra.mxu0 %v2331
    %2800 = vmatmul.bf16.gmra.mxu0 %v1094
    %v2801 = vpop.f32.mrf.mxu0
    %v2802 = vadd.f32 %v2789, %v2801
    %v2803 = vpop.f32.mrf.mxu0
    %2804 = vdwg.mxu0
    %2805 = vmatpush.bf16.msra.mxu0 %v2196
    %2806 = vmatpush.bf16.msra.mxu0 %v2188
    %2807 = vmatpush.bf16.msra.mxu0 %v2180
    %2808 = vmatpush.bf16.msra.mxu0 %v2172
    %2809 = vmatpush.bf16.msra.mxu0 %v2164
    %2810 = vmatpush.bf16.msra.mxu0 %v2156
    %2811 = vmatpush.bf16.msra.mxu0 %v2148
    %2812 = vmatpush.bf16.msra.mxu0 %v2140
    %2813 = vmatmul.bf16.gmra.mxu0 %v1091
    %v2814 = vpop.f32.mrf.mxu0
    %v2815 = vadd.f32 %v1356, %v2814
    %v2816 = vpop.f32.mrf.mxu0
    %2817 = vdwg.mxu0
    %2818 = vmatpush.bf16.msra.mxu0 %v2260
    %2819 = vmatpush.bf16.msra.mxu0 %v2252
    %2820 = vmatpush.bf16.msra.mxu0 %v2244
    %2821 = vmatpush.bf16.msra.mxu0 %v2236
    %2822 = vmatpush.bf16.msra.mxu0 %v2228
    %2823 = vmatpush.bf16.msra.mxu0 %v2220
    %2824 = vmatpush.bf16.msra.mxu0 %v2212
    %2825 = vmatpush.bf16.msra.mxu0 %v2204
    %2826 = vmatmul.bf16.gmra.mxu0 %v1092
    %v2827 = vpop.f32.mrf.mxu0
    %v2828 = vadd.f32 %v2815, %v2827
    %v2829 = vpop.f32.mrf.mxu0
    %2830 = vdwg.mxu0
    %2831 = vmatpush.bf16.msra.mxu0 %v2324
    %2832 = vmatpush.bf16.msra.mxu0 %v2316
    %2833 = vmatpush.bf16.msra.mxu0 %v2308
    %2834 = vmatpush.bf16.msra.mxu0 %v2300
    %2835 = vmatpush.bf16.msra.mxu0 %v2292
    %2836 = vmatpush.bf16.msra.mxu0 %v2284
    %2837 = vmatpush.bf16.msra.mxu0 %v2276
    %2838 = vmatpush.bf16.msra.mxu0 %v2268
    %2839 = vmatmul.bf16.gmra.mxu0 %v1093
    %v2840 = vpop.f32.mrf.mxu0
    %v2841 = vadd.f32 %v2828, %v2840
    %v2842 = vpop.f32.mrf.mxu0
    %2843 = vdwg.mxu0
    %2844 = vmatpush.bf16.msra.mxu0 %v2388
    %2845 = vmatpush.bf16.msra.mxu0 %v2380
    %2846 = vmatpush.bf16.msra.mxu0 %v2372
    %2847 = vmatpush.bf16.msra.mxu0 %v2364
    %2848 = vmatpush.bf16.msra.mxu0 %v2356
    %2849 = vmatpush.bf16.msra.mxu0 %v2348
    %2850 = vmatpush.bf16.msra.mxu0 %v2340
    %2851 = vmatpush.bf16.msra.mxu0 %v2332
    %2852 = vmatmul.bf16.gmra.mxu0 %v1094
    %v2853 = vpop.f32.mrf.mxu0
    %v2854 = vadd.f32 %v2841, %v2853
    %v2855 = vpop.f32.mrf.mxu0
    %2856 = vdwg.mxu0
    %2857 = vmatpush.bf16.msra.mxu0 %v2197
    %2858 = vmatpush.bf16.msra.mxu0 %v2189
    %2859 = vmatpush.bf16.msra.mxu0 %v2181
    %2860 = vmatpush.bf16.msra.mxu0 %v2173
    %2861 = vmatpush.bf16.msra.mxu0 %v2165
    %2862 = vmatpush.bf16.msra.mxu0 %v2157
    %2863 = vmatpush.bf16.msra.mxu0 %v2149
    %2864 = vmatpush.bf16.msra.mxu0 %v2141
    %2865 = vmatmul.bf16.gmra.mxu0 %v1091
    %v2866 = vpop.f32.mrf.mxu0
    %v2867 = vadd.f32 %v1357, %v2866
    %v2868 = vpop.f32.mrf.mxu0
    %2869 = vdwg.mxu0
    %2870 = vmatpush.bf16.msra.mxu0 %v2261
    %2871 = vmatpush.bf16.msra.mxu0 %v2253
    %2872 = vmatpush.bf16.msra.mxu0 %v2245
    %2873 = vmatpush.bf16.msra.mxu0 %v2237
    %2874 = vmatpush.bf16.msra.mxu0 %v2229
    %2875 = vmatpush.bf16.msra.mxu0 %v2221
    %2876 = vmatpush.bf16.msra.mxu0 %v2213
    %2877 = vmatpush.bf16.msra.mxu0 %v2205
    %2878 = vmatmul.bf16.gmra.mxu0 %v1092
    %v2879 = vpop.f32.mrf.mxu0
    %v2880 = vadd.f32 %v2867, %v2879
    %v2881 = vpop.f32.mrf.mxu0
    %2882 = vdwg.mxu0
    %2883 = vmatpush.bf16.msra.mxu0 %v2325
    %2884 = vmatpush.bf16.msra.mxu0 %v2317
    %2885 = vmatpush.bf16.msra.mxu0 %v2309
    %2886 = vmatpush.bf16.msra.mxu0 %v2301
    %2887 = vmatpush.bf16.msra.mxu0 %v2293
    %2888 = vmatpush.bf16.msra.mxu0 %v2285
    %2889 = vmatpush.bf16.msra.mxu0 %v2277
    %2890 = vmatpush.bf16.msra.mxu0 %v2269
    %2891 = vmatmul.bf16.gmra.mxu0 %v1093
    %v2892 = vpop.f32.mrf.mxu0
    %v2893 = vadd.f32 %v2880, %v2892
    %v2894 = vpop.f32.mrf.mxu0
    %2895 = vdwg.mxu0
    %2896 = vmatpush.bf16.msra.mxu0 %v2389
    %2897 = vmatpush.bf16.msra.mxu0 %v2381
    %2898 = vmatpush.bf16.msra.mxu0 %v2373
    %2899 = vmatpush.bf16.msra.mxu0 %v2365
    %2900 = vmatpush.bf16.msra.mxu0 %v2357
    %2901 = vmatpush.bf16.msra.mxu0 %v2349
    %2902 = vmatpush.bf16.msra.mxu0 %v2341
    %2903 = vmatpush.bf16.msra.mxu0 %v2333
    %2904 = vmatmul.bf16.gmra.mxu0 %v1094
    %v2905 = vpop.f32.mrf.mxu0
    %v2906 = vadd.f32 %v2893, %v2905
    %v2907 = vpop.f32.mrf.mxu0
    %2908 = vdwg.mxu0
    %2909 = vmatpush.bf16.msra.mxu0 %v2198
    %2910 = vmatpush.bf16.msra.mxu0 %v2190
    %2911 = vmatpush.bf16.msra.mxu0 %v2182
    %2912 = vmatpush.bf16.msra.mxu0 %v2174
    %2913 = vmatpush.bf16.msra.mxu0 %v2166
    %2914 = vmatpush.bf16.msra.mxu0 %v2158
    %2915 = vmatpush.bf16.msra.mxu0 %v2150
    %2916 = vmatpush.bf16.msra.mxu0 %v2142
    %2917 = vmatmul.bf16.gmra.mxu0 %v1091
    %v2918 = vpop.f32.mrf.mxu0
    %v2919 = vadd.f32 %v1358, %v2918
    %v2920 = vpop.f32.mrf.mxu0
    %2921 = vdwg.mxu0
    %2922 = vmatpush.bf16.msra.mxu0 %v2262
    %2923 = vmatpush.bf16.msra.mxu0 %v2254
    %2924 = vmatpush.bf16.msra.mxu0 %v2246
    %2925 = vmatpush.bf16.msra.mxu0 %v2238
    %2926 = vmatpush.bf16.msra.mxu0 %v2230
    %2927 = vmatpush.bf16.msra.mxu0 %v2222
    %2928 = vmatpush.bf16.msra.mxu0 %v2214
    %2929 = vmatpush.bf16.msra.mxu0 %v2206
    %2930 = vmatmul.bf16.gmra.mxu0 %v1092
    %v2931 = vpop.f32.mrf.mxu0
    %v2932 = vadd.f32 %v2919, %v2931
    %v2933 = vpop.f32.mrf.mxu0
    %2934 = vdwg.mxu0
    %2935 = vmatpush.bf16.msra.mxu0 %v2326
    %2936 = vmatpush.bf16.msra.mxu0 %v2318
    %2937 = vmatpush.bf16.msra.mxu0 %v2310
    %2938 = vmatpush.bf16.msra.mxu0 %v2302
    %2939 = vmatpush.bf16.msra.mxu0 %v2294
    %2940 = vmatpush.bf16.msra.mxu0 %v2286
    %2941 = vmatpush.bf16.msra.mxu0 %v2278
    %2942 = vmatpush.bf16.msra.mxu0 %v2270
    %2943 = vmatmul.bf16.gmra.mxu0 %v1093
    %v2944 = vpop.f32.mrf.mxu0
    %v2945 = vadd.f32 %v2932, %v2944
    %v2946 = vpop.f32.mrf.mxu0
    %2947 = vdwg.mxu0
    %2948 = vmatpush.bf16.msra.mxu0 %v2390
    %2949 = vmatpush.bf16.msra.mxu0 %v2382
    %2950 = vmatpush.bf16.msra.mxu0 %v2374
    %2951 = vmatpush.bf16.msra.mxu0 %v2366
    %2952 = vmatpush.bf16.msra.mxu0 %v2358
    %2953 = vmatpush.bf16.msra.mxu0 %v2350
    %2954 = vmatpush.bf16.msra.mxu0 %v2342
    %2955 = vmatpush.bf16.msra.mxu0 %v2334
    %2956 = vmatmul.bf16.gmra.mxu0 %v1094
    %v2957 = vpop.f32.mrf.mxu0
    %v2958 = vadd.f32 %v2945, %v2957
    %v2959 = vpop.f32.mrf.mxu0
    %2960 = vdwg.mxu0
    %2961 = vmatpush.bf16.msra.mxu0 %v2199
    %2962 = vmatpush.bf16.msra.mxu0 %v2191
    %2963 = vmatpush.bf16.msra.mxu0 %v2183
    %2964 = vmatpush.bf16.msra.mxu0 %v2175
    %2965 = vmatpush.bf16.msra.mxu0 %v2167
    %2966 = vmatpush.bf16.msra.mxu0 %v2159
    %2967 = vmatpush.bf16.msra.mxu0 %v2151
    %2968 = vmatpush.bf16.msra.mxu0 %v2143
    %2969 = vmatmul.bf16.gmra.mxu0 %v1091
    %v2970 = vpop.f32.mrf.mxu0
    %v2971 = vadd.f32 %v1359, %v2970
    %v2972 = vpop.f32.mrf.mxu0
    %2973 = vdwg.mxu0
    %2974 = vmatpush.bf16.msra.mxu0 %v2263
    %2975 = vmatpush.bf16.msra.mxu0 %v2255
    %2976 = vmatpush.bf16.msra.mxu0 %v2247
    %2977 = vmatpush.bf16.msra.mxu0 %v2239
    %2978 = vmatpush.bf16.msra.mxu0 %v2231
    %2979 = vmatpush.bf16.msra.mxu0 %v2223
    %2980 = vmatpush.bf16.msra.mxu0 %v2215
    %2981 = vmatpush.bf16.msra.mxu0 %v2207
    %2982 = vmatmul.bf16.gmra.mxu0 %v1092
    %v2983 = vpop.f32.mrf.mxu0
    %v2984 = vadd.f32 %v2971, %v2983
    %v2985 = vpop.f32.mrf.mxu0
    %2986 = vdwg.mxu0
    %2987 = vmatpush.bf16.msra.mxu0 %v2327
    %2988 = vmatpush.bf16.msra.mxu0 %v2319
    %2989 = vmatpush.bf16.msra.mxu0 %v2311
    %2990 = vmatpush.bf16.msra.mxu0 %v2303
    %2991 = vmatpush.bf16.msra.mxu0 %v2295
    %2992 = vmatpush.bf16.msra.mxu0 %v2287
    %2993 = vmatpush.bf16.msra.mxu0 %v2279
    %2994 = vmatpush.bf16.msra.mxu0 %v2271
    %2995 = vmatmul.bf16.gmra.mxu0 %v1093
    %v2996 = vpop.f32.mrf.mxu0
    %v2997 = vadd.f32 %v2984, %v2996
    %v2998 = vpop.f32.mrf.mxu0
    %2999 = vdwg.mxu0
    %3000 = vmatpush.bf16.msra.mxu0 %v2391
    %3001 = vmatpush.bf16.msra.mxu0 %v2383
    %3002 = vmatpush.bf16.msra.mxu0 %v2375
    %3003 = vmatpush.bf16.msra.mxu0 %v2367
    %3004 = vmatpush.bf16.msra.mxu0 %v2359
    %3005 = vmatpush.bf16.msra.mxu0 %v2351
    %3006 = vmatpush.bf16.msra.mxu0 %v2343
    %3007 = vmatpush.bf16.msra.mxu0 %v2335
    %3008 = vmatmul.bf16.gmra.mxu0 %v1094
    %v3009 = vpop.f32.mrf.mxu0
    %v3010 = vadd.f32 %v2997, %v3009
    %v3011 = vpop.f32.mrf.mxu0
    %3012 = vdwg.mxu0
    %3013 = vmatpush.bf16.msra.mxu0 %v2200
    %3014 = vmatpush.bf16.msra.mxu0 %v2192
    %3015 = vmatpush.bf16.msra.mxu0 %v2184
    %3016 = vmatpush.bf16.msra.mxu0 %v2176
    %3017 = vmatpush.bf16.msra.mxu0 %v2168
    %3018 = vmatpush.bf16.msra.mxu0 %v2160
    %3019 = vmatpush.bf16.msra.mxu0 %v2152
    %3020 = vmatpush.bf16.msra.mxu0 %v2144
    %3021 = vmatmul.bf16.gmra.mxu0 %v1091
    %v3022 = vpop.f32.mrf.mxu0
    %v3023 = vadd.f32 %v1360, %v3022
    %v3024 = vpop.f32.mrf.mxu0
    %3025 = vdwg.mxu0
    %3026 = vmatpush.bf16.msra.mxu0 %v2264
    %3027 = vmatpush.bf16.msra.mxu0 %v2256
    %3028 = vmatpush.bf16.msra.mxu0 %v2248
    %3029 = vmatpush.bf16.msra.mxu0 %v2240
    %3030 = vmatpush.bf16.msra.mxu0 %v2232
    %3031 = vmatpush.bf16.msra.mxu0 %v2224
    %3032 = vmatpush.bf16.msra.mxu0 %v2216
    %3033 = vmatpush.bf16.msra.mxu0 %v2208
    %3034 = vmatmul.bf16.gmra.mxu0 %v1092
    %v3035 = vpop.f32.mrf.mxu0
    %v3036 = vadd.f32 %v3023, %v3035
    %v3037 = vpop.f32.mrf.mxu0
    %3038 = vdwg.mxu0
    %3039 = vmatpush.bf16.msra.mxu0 %v2328
    %3040 = vmatpush.bf16.msra.mxu0 %v2320
    %3041 = vmatpush.bf16.msra.mxu0 %v2312
    %3042 = vmatpush.bf16.msra.mxu0 %v2304
    %3043 = vmatpush.bf16.msra.mxu0 %v2296
    %3044 = vmatpush.bf16.msra.mxu0 %v2288
    %3045 = vmatpush.bf16.msra.mxu0 %v2280
    %3046 = vmatpush.bf16.msra.mxu0 %v2272
    %3047 = vmatmul.bf16.gmra.mxu0 %v1093
    %v3048 = vpop.f32.mrf.mxu0
    %v3049 = vadd.f32 %v3036, %v3048
    %v3050 = vpop.f32.mrf.mxu0
    %3051 = vdwg.mxu0
    %3052 = vmatpush.bf16.msra.mxu0 %v2392
    %3053 = vmatpush.bf16.msra.mxu0 %v2384
    %3054 = vmatpush.bf16.msra.mxu0 %v2376
    %3055 = vmatpush.bf16.msra.mxu0 %v2368
    %3056 = vmatpush.bf16.msra.mxu0 %v2360
    %3057 = vmatpush.bf16.msra.mxu0 %v2352
    %3058 = vmatpush.bf16.msra.mxu0 %v2344
    %3059 = vmatpush.bf16.msra.mxu0 %v2336
    %3060 = vmatmul.bf16.gmra.mxu0 %v1094
    %v3061 = vpop.f32.mrf.mxu0
    %v3062 = vadd.f32 %v3049, %v3061
    %v3063 = vpop.f32.mrf.mxu0
    %3064 = vdwg.mxu0
    %3065 = vst [vmem:[#allocation11] sm:$0xff] %v2698
    %3066 = vst [vmem:[#allocation11 + $0x8] sm:$0xff] %v2750
    %3067 = vst [vmem:[#allocation11 + $0x10] sm:$0xff] %v2802
    %3068 = vst [vmem:[#allocation11 + $0x18] sm:$0xff] %v2854
    %3069 = vst [vmem:[#allocation11 + $0x20] sm:$0xff] %v2906
    %3070 = vst [vmem:[#allocation11 + $0x28] sm:$0xff] %v2958
    %3071 = vst [vmem:[#allocation11 + $0x30] sm:$0xff] %v3010
    %3072 = vst [vmem:[#allocation11 + $0x38] sm:$0xff] %v3062
    // Predicated region
    $region42: #{tpu_custom_call.1} parent=1 // pred_check
      _
    $region43: #{tpu_custom_call.1} parent=1 // pred_check_branch
      %3074 = sbr.rel (0) target = $region45
    $region44: #{tpu_custom_call.1} parent=1 // pred_region
      %3076 = vsyncadd [#allocation4], 0
      %s3078 = sshll.u32 [#allocation11], 4
      %s3079 = int_to_ptr.vmem [resolvable:$true] %s3078
      %s3080 = sshll.u32 %s5, 4
      %s3081 = int_to_ptr.hbm [resolvable:$true] %s3080
      %3083 = dma.vmem_to_hbm [thread:$0]  %s3079, 1024, %s3081, [#allocation4]
    $region45: #{tpu_custom_call.1} parent=1 // pred_fallthru
      _
    // Predicated region
    $region46: #{tpu_custom_call.1} parent=1 // pred_check
      _
    $region47: #{tpu_custom_call.1} parent=1 // pred_check_branch
      %3085 = sbr.rel (0) target = $region49
    $region48: #{tpu_custom_call.1} parent=1 // pred_region
      %3087 = dma.done [#allocation4], 1024
    $region49: #{tpu_custom_call.1} parent=1 // pred_fallthru
      _
    %3088 = vsyncpa [#allocation3], 1
    %3089 = vsyncpa [#allocation6], 1
    %3090 = vsyncpa [#allocation9], 1
    %3091 = vsyncpa [#allocation4], 1

// kernel: tpu_custom_call.1
$region0: #{tpu_custom_call.1}
  #allocation0 [shape = 'u32[]', space=smem, size = 0x4, offset = 0x4, fixed_abs, tag = 'smem constant byte address 0x4 - core index']
  #allocation1 [shape = 'u32[72,128]{1,0:T(1,128)}', space=vmem, size = 0x9000, scoped, tag = 'internal scratch']
  %s0 = inlined_call_operand.hbm [shape: f32[8,512], index: 0, kind: input, shape index: {}]
  %s1 = inlined_call_operand.hbm [shape: bf16[512,512], index: 1, kind: input, shape index: {}]
  %s2 = inlined_call_operand.hbm [shape: f32[1,512], index: 2, kind: input, shape index: {}]
  %s3 = inlined_call_operand.hbm [shape: bf16[512,1024], index: 3, kind: input, shape index: {}]
  %s4 = inlined_call_operand.hbm [shape: f32[1,1024], index: 4, kind: input, shape index: {}]
  %s5 = inlined_call_operand.hbm [shape: f32[8,1024], index: 5, kind: output, shape index: {}]
  %s6 = sld [smem:[#allocation0]]
  $region50: #{tpu_custom_call.1} parent=0
    _
  %s8 = ssub.s32 1, %s6
  %s9 = scalar_select 0, %s8, %s6
  $region1: #{tpu_custom_call.1} parent=0
    #allocation2 [shape = 'u8[16384]{0}', space=vmem, size = 0x4000, scoped, tag = 'input window, operand 0, single buffered']
    #allocation3 [shape = 's32[1]{0}', space=sflag, size = 0x4, scoped, tag = 'scoped memory for tpu_custom_call.1']
    #allocation4 [shape = 's32[1]{0}', space=sflag, size = 0x4, scoped, tag = 'scoped memory for tpu_custom_call.1']
    #allocation5 [shape = 'u8[524288]{0}', space=vmem, size = 0x80000, scoped, tag = 'input window, operand 1, single buffered']
    #allocation6 [shape = 's32[1]{0}', space=sflag, size = 0x4, scoped, tag = 'scoped memory for tpu_custom_call.1']
    #allocation7 [shape = 'u8[2048]{0}', space=vmem, size = 0x800, scoped, tag = 'input window, operand 2, single buffered']
    #allocation8 [shape = 'u8[1048576]{0}', space=vmem, size = 0x100000, scoped, tag = 'input window, operand 3, single buffered']
    #allocation9 [shape = 's32[1]{0}', space=sflag, size = 0x4, scoped, tag = 'scoped memory for tpu_custom_call.1']
    #allocation10 [shape = 'u8[4096]{0}', space=vmem, size = 0x1000, scoped, tag = 'input window, operand 4, single buffered']
    #allocation11 [shape = 'u8[32768]{0}', space=vmem, size = 0x8000, scoped, tag = 'output window, operand 0, single buffered']
    %10 = vsyncpa [#allocation3], 0
    %11 = vsyncpa [#allocation6], 0
    %12 = vsyncpa [#allocation9], 0
    %13 = vsyncpa [#allocation4], 0
    // Predicated region
    $region2: #{tpu_custom_call.1} parent=1 // pred_check
      _
    $region3: #{tpu_custom_call.1} parent=1 // pred_check_branch
      %15 = sbr.rel (0) target = $region5
    $region4: #{tpu_custom_call.1} parent=1 // pred_region
      %17 = vsyncadd [#allocation3], 0
      %s19 = sshll.u32 %s0, 4
      %s20 = int_to_ptr.hbm [resolvable:$true] %s19
      %s21 = sshll.u32 [#allocation2], 4
      %s22 = int_to_ptr.vmem [resolvable:$true] %s21
      %24 = dma.hbm_to_vmem [thread:$0]  %s20, 512, %s22, [#allocation3]
    $region5: #{tpu_custom_call.1} parent=1 // pred_fallthru
      _
    // Predicated region
    $region6: #{tpu_custom_call.1} parent=1 // pred_check
      _
    $region7: #{tpu_custom_call.1} parent=1 // pred_check_branch
      %26 = sbr.rel (0) target = $region9
    $region8: #{tpu_custom_call.1} parent=1 // pred_region
      %28 = vsyncadd [#allocation6], 0
      %s29 = sshll.u32 %s1, 4
      %s30 = int_to_ptr.hbm [resolvable:$true] %s29
      %s31 = sshll.u32 [#allocation5], 4
      %s32 = int_to_ptr.vmem [resolvable:$true] %s31
      %37 = dma.hbm_to_vmem [thread:$0]  %s30, 16384, %s32, [#allocation6], 256, 256, 16
    $region9: #{tpu_custom_call.1} parent=1 // pred_fallthru
      _
    // Predicated region
    $region10: #{tpu_custom_call.1} parent=1 // pred_check
      _
    $region11: #{tpu_custom_call.1} parent=1 // pred_check_branch
      %39 = sbr.rel (0) target = $region13
    $region12: #{tpu_custom_call.1} parent=1 // pred_region
      %41 = vsyncadd [#allocation6], 0
      %s43 = sshll.u32 %s2, 4
      %s44 = int_to_ptr.hbm [resolvable:$true] %s43
      %s45 = sshll.u32 [#allocation7], 4
      %s46 = int_to_ptr.vmem [resolvable:$true] %s45
      %48 = dma.hbm_to_vmem [thread:$0]  %s44, 64, %s46, [#allocation6]
    $region13: #{tpu_custom_call.1} parent=1 // pred_fallthru
      _
    // Predicated region
    $region14: #{tpu_custom_call.1} parent=1 // pred_check
      _
    $region15: #{tpu_custom_call.1} parent=1 // pred_check_branch
      %50 = sbr.rel (0) target = $region17
    $region16: #{tpu_custom_call.1} parent=1 // pred_region
      %52 = vsyncadd [#allocation9], 0
      %s53 = sshll.u32 %s3, 4
      %s54 = int_to_ptr.hbm [resolvable:$true] %s53
      %s55 = sshll.u32 [#allocation8], 4
      %s56 = int_to_ptr.vmem [resolvable:$true] %s55
      %61 = dma.hbm_to_vmem [thread:$0]  %s54, 32768, %s56, [#allocation9], 512, 512, 32
    $region17: #{tpu_custom_call.1} parent=1 // pred_fallthru
      _
    // Predicated region
    $region18: #{tpu_custom_call.1} parent=1 // pred_check
      _
    $region19: #{tpu_custom_call.1} parent=1 // pred_check_branch
      %63 = sbr.rel (0) target = $region21
    $region20: #{tpu_custom_call.1} parent=1 // pred_region
      %65 = vsyncadd [#allocation9], 0
      %s67 = sshll.u32 %s4, 4
      %s68 = int_to_ptr.hbm [resolvable:$true] %s67
      %s69 = sshll.u32 [#allocation10], 4
      %s70 = int_to_ptr.vmem [resolvable:$true] %s69
      %72 = dma.hbm_to_vmem [thread:$0]  %s68, 128, %s70, [#allocation9]
    $region21: #{tpu_custom_call.1} parent=1 // pred_fallthru
      _
    // Predicated region
    $region22: #{tpu_custom_call.1} parent=1 // pred_check
      _
    $region23: #{tpu_custom_call.1} parent=1 // pred_check_branch
      %74 = sbr.rel (0) target = $region25
    $region24: #{tpu_custom_call.1} parent=1 // pred_region
      %76 = dma.done [#allocation3], 512
    $region25: #{tpu_custom_call.1} parent=1 // pred_fallthru
      _
    // Predicated region
    $region26: #{tpu_custom_call.1} parent=1 // pred_check
      _
    $region27: #{tpu_custom_call.1} parent=1 // pred_check_branch
      %78 = sbr.rel (0) target = $region29
    $region28: #{tpu_custom_call.1} parent=1 // pred_region
      %80 = dma.done [#allocation6], 16384
    $region29: #{tpu_custom_call.1} parent=1 // pred_fallthru
      _
    // Predicated region
    $region30: #{tpu_custom_call.1} parent=1 // pred_check
      _
    $region31: #{tpu_custom_call.1} parent=1 // pred_check_branch
      %82 = sbr.rel (0) target = $region33
    $region32: #{tpu_custom_call.1} parent=1 // pred_region
      %84 = dma.done [#allocation6], 64
    $region33: #{tpu_custom_call.1} parent=1 // pred_fallthru
      _
    // Predicated region
    $region34: #{tpu_custom_call.1} parent=1 // pred_check
      _
    $region35: #{tpu_custom_call.1} parent=1 // pred_check_branch
      %86 = sbr.rel (0) target = $region37
    $region36: #{tpu_custom_call.1} parent=1 // pred_region
      %88 = dma.done [#allocation9], 32768
    $region37: #{tpu_custom_call.1} parent=1 // pred_fallthru
      _
    // Predicated region
    $region38: #{tpu_custom_call.1} parent=1 // pred_check
      _
    $region39: #{tpu_custom_call.1} parent=1 // pred_check_branch
      %90 = sbr.rel (0) target = $region41
    $region40: #{tpu_custom_call.1} parent=1 // pred_region
      %92 = dma.done [#allocation9], 128
    $region41: #{tpu_custom_call.1} parent=1 // pred_fallthru
      _
    %v93 = vld [vmem:[#allocation2] sm:$0xff]
    %v94 = vld [vmem:[#allocation2 + $0x8] sm:$0xff]
    %v95 = vld [vmem:[#allocation2 + $0x10] sm:$0xff]
    %v96 = vld [vmem:[#allocation2 + $0x18] sm:$0xff]
    %v97 = vpack.c.bf16 %v93, %v93
    %v98 = vpack.c.bf16 %v94, %v94
    %v99 = vpack.c.bf16 %v95, %v95
    %v100 = vpack.c.bf16 %v96, %v96
    %v101 = vld [vmem:[#allocation5] sm:$0xff]
    %v102 = vld [vmem:[#allocation5 + $0x8] sm:$0xff]
    %v103 = vld [vmem:[#allocation5 + $0x10] sm:$0xff]
    %v104 = vld [vmem:[#allocation5 + $0x18] sm:$0xff]
    %v105 = vld [vmem:[#allocation5 + $0x20] sm:$0xff]
    %v106 = vld [vmem:[#allocation5 + $0x28] sm:$0xff]
    %v107 = vld [vmem:[#allocation5 + $0x30] sm:$0xff]
    %v108 = vld [vmem:[#allocation5 + $0x38] sm:$0xff]
    %v109 = vld [vmem:[#allocation5 + $0x40] sm:$0xff]
    %v110 = vld [vmem:[#allocation5 + $0x48] sm:$0xff]
    %v111 = vld [vmem:[#allocation5 + $0x50] sm:$0xff]
    %v112 = vld [vmem:[#allocation5 + $0x58] sm:$0xff]
    %v113 = vld [vmem:[#allocation5 + $0x60] sm:$0xff]
    %v114 = vld [vmem:[#allocation5 + $0x68] sm:$0xff]
    %v115 = vld [vmem:[#allocation5 + $0x70] sm:$0xff]
    %v116 = vld [vmem:[#allocation5 + $0x78] sm:$0xff]
    %v117 = vld [vmem:[#allocation5 + $0x80] sm:$0xff]
    %v118 = vld [vmem:[#allocation5 + $0x88] sm:$0xff]
    %v119 = vld [vmem:[#allocation5 + $0x90] sm:$0xff]
    %v120 = vld [vmem:[#allocation5 + $0x98] sm:$0xff]
    %v121 = vld [vmem:[#allocation5 + $0xa0] sm:$0xff]
    %v122 = vld [vmem:[#allocation5 + $0xa8] sm:$0xff]
    %v123 = vld [vmem:[#allocation5 + $0xb0] sm:$0xff]
    %v124 = vld [vmem:[#allocation5 + $0xb8] sm:$0xff]
    %v125 = vld [vmem:[#allocation5 + $0xc0] sm:$0xff]
    %v126 = vld [vmem:[#allocation5 + $0xc8] sm:$0xff]
    %v127 = vld [vmem:[#allocation5 + $0xd0] sm:$0xff]
    %v128 = vld [vmem:[#allocation5 + $0xd8] sm:$0xff]
    %v129 = vld [vmem:[#allocation5 + $0xe0] sm:$0xff]
    %v130 = vld [vmem:[#allocation5 + $0xe8] sm:$0xff]
    %v131 = vld [vmem:[#allocation5 + $0xf0] sm:$0xff]
    %v132 = vld [vmem:[#allocation5 + $0xf8] sm:$0xff]
    %v133 = vld [vmem:[#allocation5 + $0x100] sm:$0xff]
    %v134 = vld [vmem:[#allocation5 + $0x108] sm:$0xff]
    %v135 = vld [vmem:[#allocation5 + $0x110] sm:$0xff]
    %v136 = vld [vmem:[#allocation5 + $0x118] sm:$0xff]
    %v137 = vld [vmem:[#allocation5 + $0x120] sm:$0xff]
    %v138 = vld [vmem:[#allocation5 + $0x128] sm:$0xff]
    %v139 = vld [vmem:[#allocation5 + $0x130] sm:$0xff]
    %v140 = vld [vmem:[#allocation5 + $0x138] sm:$0xff]
    %v141 = vld [vmem:[#allocation5 + $0x140] sm:$0xff]
    %v142 = vld [vmem:[#allocation5 + $0x148] sm:$0xff]
    %v143 = vld [vmem:[#allocation5 + $0x150] sm:$0xff]
    %v144 = vld [vmem:[#allocation5 + $0x158] sm:$0xff]
    %v145 = vld [vmem:[#allocation5 + $0x160] sm:$0xff]
    %v146 = vld [vmem:[#allocation5 + $0x168] sm:$0xff]
    %v147 = vld [vmem:[#allocation5 + $0x170] sm:$0xff]
    %v148 = vld [vmem:[#allocation5 + $0x178] sm:$0xff]
    %v149 = vld [vmem:[#allocation5 + $0x180] sm:$0xff]
    %v150 = vld [vmem:[#allocation5 + $0x188] sm:$0xff]
    %v151 = vld [vmem:[#allocation5 + $0x190] sm:$0xff]
    %v152 = vld [vmem:[#allocation5 + $0x198] sm:$0xff]
    %v153 = vld [vmem:[#allocation5 + $0x1a0] sm:$0xff]
    %v154 = vld [vmem:[#allocation5 + $0x1a8] sm:$0xff]
    %v155 = vld [vmem:[#allocation5 + $0x1b0] sm:$0xff]
    %v156 = vld [vmem:[#allocation5 + $0x1b8] sm:$0xff]
    %v157 = vld [vmem:[#allocation5 + $0x1c0] sm:$0xff]
    %v158 = vld [vmem:[#allocation5 + $0x1c8] sm:$0xff]
    %v159 = vld [vmem:[#allocation5 + $0x1d0] sm:$0xff]
    %v160 = vld [vmem:[#allocation5 + $0x1d8] sm:$0xff]
    %v161 = vld [vmem:[#allocation5 + $0x1e0] sm:$0xff]
    %v162 = vld [vmem:[#allocation5 + $0x1e8] sm:$0xff]
    %v163 = vld [vmem:[#allocation5 + $0x1f0] sm:$0xff]
    %v164 = vld [vmem:[#allocation5 + $0x1f8] sm:$0xff]
    %v165 = vld [vmem:[#allocation5 + $0x200] sm:$0xff]
    %v166 = vld [vmem:[#allocation5 + $0x208] sm:$0xff]
    %v167 = vld [vmem:[#allocation5 + $0x210] sm:$0xff]
    %v168 = vld [vmem:[#allocation5 + $0x218] sm:$0xff]
    %v169 = vld [vmem:[#allocation5 + $0x220] sm:$0xff]
    %v170 = vld [vmem:[#allocation5 + $0x228] sm:$0xff]
    %v171 = vld [vmem:[#allocation5 + $0x230] sm:$0xff]
    %v172 = vld [vmem:[#allocation5 + $0x238] sm:$0xff]
    %v173 = vld [vmem:[#allocation5 + $0x240] sm:$0xff]
    %v174 = vld [vmem:[#allocation5 + $0x248] sm:$0xff]
    %v175 = vld [vmem:[#allocation5 + $0x250] sm:$0xff]
    %v176 = vld [vmem:[#allocation5 + $0x258] sm:$0xff]
    %v177 = vld [vmem:[#allocation5 + $0x260] sm:$0xff]
    %v178 = vld [vmem:[#allocation5 + $0x268] sm:$0xff]
    %v179 = vld [vmem:[#allocation5 + $0x270] sm:$0xff]
    %v180 = vld [vmem:[#allocation5 + $0x278] sm:$0xff]
    %v181 = vld [vmem:[#allocation5 + $0x280] sm:$0xff]
    %v182 = vld [vmem:[#allocation5 + $0x288] sm:$0xff]
    %v183 = vld [vmem:[#allocation5 + $0x290] sm:$0xff]
    %v184 = vld [vmem:[#allocation5 + $0x298] sm:$0xff]
    %v185 = vld [vmem:[#allocation5 + $0x2a0] sm:$0xff]
    %v186 = vld [vmem:[#allocation5 + $0x2a8] sm:$0xff]
    %v187 = vld [vmem:[#allocation5 + $0x2b0] sm:$0xff]
    %v188 = vld [vmem:[#allocation5 + $0x2b8] sm:$0xff]
    %v189 = vld [vmem:[#allocation5 + $0x2c0] sm:$0xff]
    %v190 = vld [vmem:[#allocation5 + $0x2c8] sm:$0xff]
    %v191 = vld [vmem:[#allocation5 + $0x2d0] sm:$0xff]
    %v192 = vld [vmem:[#allocation5 + $0x2d8] sm:$0xff]
    %v193 = vld [vmem:[#allocation5 + $0x2e0] sm:$0xff]
    %v194 = vld [vmem:[#allocation5 + $0x2e8] sm:$0xff]
    %v195 = vld [vmem:[#allocation5 + $0x2f0] sm:$0xff]
    %v196 = vld [vmem:[#allocation5 + $0x2f8] sm:$0xff]
    %v197 = vld [vmem:[#allocation5 + $0x300] sm:$0xff]
    %v198 = vld [vmem:[#allocation5 + $0x308] sm:$0xff]
    %v199 = vld [vmem:[#allocation5 + $0x310] sm:$0xff]
    %v200 = vld [vmem:[#allocation5 + $0x318] sm:$0xff]
    %v201 = vld [vmem:[#allocation5 + $0x320] sm:$0xff]
    %v202 = vld [vmem:[#allocation5 + $0x328] sm:$0xff]
    %v203 = vld [vmem:[#allocation5 + $0x330] sm:$0xff]
    %v204 = vld [vmem:[#allocation5 + $0x338] sm:$0xff]
    %v205 = vld [vmem:[#allocation5 + $0x340] sm:$0xff]
    %v206 = vld [vmem:[#allocation5 + $0x348] sm:$0xff]
    %v207 = vld [vmem:[#allocation5 + $0x350] sm:$0xff]
    %v208 = vld [vmem:[#allocation5 + $0x358] sm:$0xff]
    %v209 = vld [vmem:[#allocation5 + $0x360] sm:$0xff]
    %v210 = vld [vmem:[#allocation5 + $0x368] sm:$0xff]
    %v211 = vld [vmem:[#allocation5 + $0x370] sm:$0xff]
    %v212 = vld [vmem:[#allocation5 + $0x378] sm:$0xff]
    %v213 = vld [vmem:[#allocation5 + $0x380] sm:$0xff]
    %v214 = vld [vmem:[#allocation5 + $0x388] sm:$0xff]
    %v215 = vld [vmem:[#allocation5 + $0x390] sm:$0xff]
    %v216 = vld [vmem:[#allocation5 + $0x398] sm:$0xff]
    %v217 = vld [vmem:[#allocation5 + $0x3a0] sm:$0xff]
    %v218 = vld [vmem:[#allocation5 + $0x3a8] sm:$0xff]
    %v219 = vld [vmem:[#allocation5 + $0x3b0] sm:$0xff]
    %v220 = vld [vmem:[#allocation5 + $0x3b8] sm:$0xff]
    %v221 = vld [vmem:[#allocation5 + $0x3c0] sm:$0xff]
    %v222 = vld [vmem:[#allocation5 + $0x3c8] sm:$0xff]
    %v223 = vld [vmem:[#allocation5 + $0x3d0] sm:$0xff]
    %v224 = vld [vmem:[#allocation5 + $0x3d8] sm:$0xff]
    %v225 = vld [vmem:[#allocation5 + $0x3e0] sm:$0xff]
    %v226 = vld [vmem:[#allocation5 + $0x3e8] sm:$0xff]
    %v227 = vld [vmem:[#allocation5 + $0x3f0] sm:$0xff]
    %v228 = vld [vmem:[#allocation5 + $0x3f8] sm:$0xff]
    %v229 = vld [vmem:[#allocation7] sm:$0xf]
    %v231 = vperm.slane %v229, 0
    %v232 = vperm.slane %v229, 1
    %v233 = vperm.slane %v229, 2
    %v234 = vperm.slane %v229, 3
    %v367 = vunpack.c.l.b16 %v101
    %v368 = vunpack.c.h.b16 %v101
    %v369 = vunpack.c.l.b16 %v102
    %v370 = vunpack.c.h.b16 %v102
    %v371 = vunpack.c.l.b16 %v103
    %v372 = vunpack.c.h.b16 %v103
    %v373 = vunpack.c.l.b16 %v104
    %v374 = vunpack.c.h.b16 %v104
    %v375 = vunpack.c.l.b16 %v105
    %v376 = vunpack.c.h.b16 %v105
    %v377 = vunpack.c.l.b16 %v106
    %v378 = vunpack.c.h.b16 %v106
    %v379 = vunpack.c.l.b16 %v107
    %v380 = vunpack.c.h.b16 %v107
    %v381 = vunpack.c.l.b16 %v108
    %v382 = vunpack.c.h.b16 %v108
    %v383 = vunpack.c.l.b16 %v109
    %v384 = vunpack.c.h.b16 %v109
    %v385 = vunpack.c.l.b16 %v110
    %v386 = vunpack.c.h.b16 %v110
    %v387 = vunpack.c.l.b16 %v111
    %v388 = vunpack.c.h.b16 %v111
    %v389 = vunpack.c.l.b16 %v112
    %v390 = vunpack.c.h.b16 %v112
    %v391 = vunpack.c.l.b16 %v113
    %v392 = vunpack.c.h.b16 %v113
    %v393 = vunpack.c.l.b16 %v114
    %v394 = vunpack.c.h.b16 %v114
    %v395 = vunpack.c.l.b16 %v115
    %v396 = vunpack.c.h.b16 %v115
    %v397 = vunpack.c.l.b16 %v116
    %v398 = vunpack.c.h.b16 %v116
    %v399 = vunpack.c.l.b16 %v117
    %v400 = vunpack.c.h.b16 %v117
    %v401 = vunpack.c.l.b16 %v118
    %v402 = vunpack.c.h.b16 %v118
    %v403 = vunpack.c.l.b16 %v119
    %v404 = vunpack.c.h.b16 %v119
    %v405 = vunpack.c.l.b16 %v120
    %v406 = vunpack.c.h.b16 %v120
    %v407 = vunpack.c.l.b16 %v121
    %v408 = vunpack.c.h.b16 %v121
    %v409 = vunpack.c.l.b16 %v122
    %v410 = vunpack.c.h.b16 %v122
    %v411 = vunpack.c.l.b16 %v123
    %v412 = vunpack.c.h.b16 %v123
    %v413 = vunpack.c.l.b16 %v124
    %v414 = vunpack.c.h.b16 %v124
    %v415 = vunpack.c.l.b16 %v125
    %v416 = vunpack.c.h.b16 %v125
    %v417 = vunpack.c.l.b16 %v126
    %v418 = vunpack.c.h.b16 %v126
    %v419 = vunpack.c.l.b16 %v127
    %v420 = vunpack.c.h.b16 %v127
    %v421 = vunpack.c.l.b16 %v128
    %v422 = vunpack.c.h.b16 %v128
    %v423 = vunpack.c.l.b16 %v129
    %v424 = vunpack.c.h.b16 %v129
    %v425 = vunpack.c.l.b16 %v130
    %v426 = vunpack.c.h.b16 %v130
    %v427 = vunpack.c.l.b16 %v131
    %v428 = vunpack.c.h.b16 %v131
    %v429 = vunpack.c.l.b16 %v132
    %v430 = vunpack.c.h.b16 %v132
    %v431 = vunpack.c.l.b16 %v133
    %v432 = vunpack.c.h.b16 %v133
    %v433 = vunpack.c.l.b16 %v134
    %v434 = vunpack.c.h.b16 %v134
    %v435 = vunpack.c.l.b16 %v135
    %v436 = vunpack.c.h.b16 %v135
    %v437 = vunpack.c.l.b16 %v136
    %v438 = vunpack.c.h.b16 %v136
    %v439 = vunpack.c.l.b16 %v137
    %v440 = vunpack.c.h.b16 %v137
    %v441 = vunpack.c.l.b16 %v138
    %v442 = vunpack.c.h.b16 %v138
    %v443 = vunpack.c.l.b16 %v139
    %v444 = vunpack.c.h.b16 %v139
    %v445 = vunpack.c.l.b16 %v140
    %v446 = vunpack.c.h.b16 %v140
    %v447 = vunpack.c.l.b16 %v141
    %v448 = vunpack.c.h.b16 %v141
    %v449 = vunpack.c.l.b16 %v142
    %v450 = vunpack.c.h.b16 %v142
    %v451 = vunpack.c.l.b16 %v143
    %v452 = vunpack.c.h.b16 %v143
    %v453 = vunpack.c.l.b16 %v144
    %v454 = vunpack.c.h.b16 %v144
    %v455 = vunpack.c.l.b16 %v145
    %v456 = vunpack.c.h.b16 %v145
    %v457 = vunpack.c.l.b16 %v146
    %v458 = vunpack.c.h.b16 %v146
    %v459 = vunpack.c.l.b16 %v147
    %v460 = vunpack.c.h.b16 %v147
    %v461 = vunpack.c.l.b16 %v148
    %v462 = vunpack.c.h.b16 %v148
    %v463 = vunpack.c.l.b16 %v149
    %v464 = vunpack.c.h.b16 %v149
    %v465 = vunpack.c.l.b16 %v150
    %v466 = vunpack.c.h.b16 %v150
    %v467 = vunpack.c.l.b16 %v151
    %v468 = vunpack.c.h.b16 %v151
    %v469 = vunpack.c.l.b16 %v152
    %v470 = vunpack.c.h.b16 %v152
    %v471 = vunpack.c.l.b16 %v153
    %v472 = vunpack.c.h.b16 %v153
    %v473 = vunpack.c.l.b16 %v154
    %v474 = vunpack.c.h.b16 %v154
    %v475 = vunpack.c.l.b16 %v155
    %v476 = vunpack.c.h.b16 %v155
    %v477 = vunpack.c.l.b16 %v156
    %v478 = vunpack.c.h.b16 %v156
    %v479 = vunpack.c.l.b16 %v157
    %v480 = vunpack.c.h.b16 %v157
    %v481 = vunpack.c.l.b16 %v158
    %v482 = vunpack.c.h.b16 %v158
    %v483 = vunpack.c.l.b16 %v159
    %v484 = vunpack.c.h.b16 %v159
    %v485 = vunpack.c.l.b16 %v160
    %v486 = vunpack.c.h.b16 %v160
    %v487 = vunpack.c.l.b16 %v161
    %v488 = vunpack.c.h.b16 %v161
    %v489 = vunpack.c.l.b16 %v162
    %v490 = vunpack.c.h.b16 %v162
    %v491 = vunpack.c.l.b16 %v163
    %v492 = vunpack.c.h.b16 %v163
    %v493 = vunpack.c.l.b16 %v164
    %v494 = vunpack.c.h.b16 %v164
    %v495 = vunpack.c.l.b16 %v165
    %v496 = vunpack.c.h.b16 %v165
    %v497 = vunpack.c.l.b16 %v166
    %v498 = vunpack.c.h.b16 %v166
    %v499 = vunpack.c.l.b16 %v167
    %v500 = vunpack.c.h.b16 %v167
    %v501 = vunpack.c.l.b16 %v168
    %v502 = vunpack.c.h.b16 %v168
    %v503 = vunpack.c.l.b16 %v169
    %v504 = vunpack.c.h.b16 %v169
    %v505 = vunpack.c.l.b16 %v170
    %v506 = vunpack.c.h.b16 %v170
    %v507 = vunpack.c.l.b16 %v171
    %v508 = vunpack.c.h.b16 %v171
    %v509 = vunpack.c.l.b16 %v172
    %v510 = vunpack.c.h.b16 %v172
    %v511 = vunpack.c.l.b16 %v173
    %v512 = vunpack.c.h.b16 %v173
    %v513 = vunpack.c.l.b16 %v174
    %v514 = vunpack.c.h.b16 %v174
    %v515 = vunpack.c.l.b16 %v175
    %v516 = vunpack.c.h.b16 %v175
    %v517 = vunpack.c.l.b16 %v176
    %v518 = vunpack.c.h.b16 %v176
    %v519 = vunpack.c.l.b16 %v177
    %v520 = vunpack.c.h.b16 %v177
    %v521 = vunpack.c.l.b16 %v178
    %v522 = vunpack.c.h.b16 %v178
    %v523 = vunpack.c.l.b16 %v179
    %v524 = vunpack.c.h.b16 %v179
    %v525 = vunpack.c.l.b16 %v180
    %v526 = vunpack.c.h.b16 %v180
    %v527 = vunpack.c.l.b16 %v181
    %v528 = vunpack.c.h.b16 %v181
    %v529 = vunpack.c.l.b16 %v182
    %v530 = vunpack.c.h.b16 %v182
    %v531 = vunpack.c.l.b16 %v183
    %v532 = vunpack.c.h.b16 %v183
    %v533 = vunpack.c.l.b16 %v184
    %v534 = vunpack.c.h.b16 %v184
    %v535 = vunpack.c.l.b16 %v185
    %v536 = vunpack.c.h.b16 %v185
    %v537 = vunpack.c.l.b16 %v186
    %v538 = vunpack.c.h.b16 %v186
    %v539 = vunpack.c.l.b16 %v187
    %v540 = vunpack.c.h.b16 %v187
    %v541 = vunpack.c.l.b16 %v188
    %v542 = vunpack.c.h.b16 %v188
    %v543 = vunpack.c.l.b16 %v189
    %v544 = vunpack.c.h.b16 %v189
    %v545 = vunpack.c.l.b16 %v190
    %v546 = vunpack.c.h.b16 %v190
    %v547 = vunpack.c.l.b16 %v191
    %v548 = vunpack.c.h.b16 %v191
    %v549 = vunpack.c.l.b16 %v192
    %v550 = vunpack.c.h.b16 %v192
    %v551 = vunpack.c.l.b16 %v193
    %v552 = vunpack.c.h.b16 %v193
    %v553 = vunpack.c.l.b16 %v194
    %v554 = vunpack.c.h.b16 %v194
    %v555 = vunpack.c.l.b16 %v195
    %v556 = vunpack.c.h.b16 %v195
    %v557 = vunpack.c.l.b16 %v196
    %v558 = vunpack.c.h.b16 %v196
    %v559 = vunpack.c.l.b16 %v197
    %v560 = vunpack.c.h.b16 %v197
    %v561 = vunpack.c.l.b16 %v198
    %v562 = vunpack.c.h.b16 %v198
    %v563 = vunpack.c.l.b16 %v199
    %v564 = vunpack.c.h.b16 %v199
    %v565 = vunpack.c.l.b16 %v200
    %v566 = vunpack.c.h.b16 %v200
    %v567 = vunpack.c.l.b16 %v201
    %v568 = vunpack.c.h.b16 %v201
    %v569 = vunpack.c.l.b16 %v202
    %v570 = vunpack.c.h.b16 %v202
    %v571 = vunpack.c.l.b16 %v203
    %v572 = vunpack.c.h.b16 %v203
    %v573 = vunpack.c.l.b16 %v204
    %v574 = vunpack.c.h.b16 %v204
    %v575 = vunpack.c.l.b16 %v205
    %v576 = vunpack.c.h.b16 %v205
    %v577 = vunpack.c.l.b16 %v206
    %v578 = vunpack.c.h.b16 %v206
    %v579 = vunpack.c.l.b16 %v207
    %v580 = vunpack.c.h.b16 %v207
    %v581 = vunpack.c.l.b16 %v208
    %v582 = vunpack.c.h.b16 %v208
    %v583 = vunpack.c.l.b16 %v209
    %v584 = vunpack.c.h.b16 %v209
    %v585 = vunpack.c.l.b16 %v210
    %v586 = vunpack.c.h.b16 %v210
    %v587 = vunpack.c.l.b16 %v211
    %v588 = vunpack.c.h.b16 %v211
    %v589 = vunpack.c.l.b16 %v212
    %v590 = vunpack.c.h.b16 %v212
    %v591 = vunpack.c.l.b16 %v213
    %v592 = vunpack.c.h.b16 %v213
    %v593 = vunpack.c.l.b16 %v214
    %v594 = vunpack.c.h.b16 %v214
    %v595 = vunpack.c.l.b16 %v215
    %v596 = vunpack.c.h.b16 %v215
    %v597 = vunpack.c.l.b16 %v216
    %v598 = vunpack.c.h.b16 %v216
    %v599 = vunpack.c.l.b16 %v217
    %v600 = vunpack.c.h.b16 %v217
    %v601 = vunpack.c.l.b16 %v218
    %v602 = vunpack.c.h.b16 %v218
    %v603 = vunpack.c.l.b16 %v219
    %v604 = vunpack.c.h.b16 %v219
    %v605 = vunpack.c.l.b16 %v220
    %v606 = vunpack.c.h.b16 %v220
    %v607 = vunpack.c.l.b16 %v221
    %v608 = vunpack.c.h.b16 %v221
    %v609 = vunpack.c.l.b16 %v222
    %v610 = vunpack.c.h.b16 %v222
    %v611 = vunpack.c.l.b16 %v223
    %v612 = vunpack.c.h.b16 %v223
    %v613 = vunpack.c.l.b16 %v224
    %v614 = vunpack.c.h.b16 %v224
    %v615 = vunpack.c.l.b16 %v225
    %v616 = vunpack.c.h.b16 %v225
    %v617 = vunpack.c.l.b16 %v226
    %v618 = vunpack.c.h.b16 %v226
    %v619 = vunpack.c.l.b16 %v227
    %v620 = vunpack.c.h.b16 %v227
    %v621 = vunpack.c.l.b16 %v228
    %v622 = vunpack.c.h.b16 %v228
    %v623 = vpack.c.b16 %v371, %v367
    %v624 = vpack.c.b16 %v372, %v368
    %v625 = vpack.c.b16 %v373, %v369
    %v626 = vpack.c.b16 %v374, %v370
    %v627 = vpack.c.b16 %v379, %v375
    %v628 = vpack.c.b16 %v380, %v376
    %v629 = vpack.c.b16 %v381, %v377
    %v630 = vpack.c.b16 %v382, %v378
    %v631 = vpack.c.b16 %v387, %v383
    %v632 = vpack.c.b16 %v388, %v384
    %v633 = vpack.c.b16 %v389, %v385
    %v634 = vpack.c.b16 %v390, %v386
    %v635 = vpack.c.b16 %v395, %v391
    %v636 = vpack.c.b16 %v396, %v392
    %v637 = vpack.c.b16 %v397, %v393
    %v638 = vpack.c.b16 %v398, %v394
    %v639 = vpack.c.b16 %v403, %v399
    %v640 = vpack.c.b16 %v404, %v400
    %v641 = vpack.c.b16 %v405, %v401
    %v642 = vpack.c.b16 %v406, %v402
    %v643 = vpack.c.b16 %v411, %v407
    %v644 = vpack.c.b16 %v412, %v408
    %v645 = vpack.c.b16 %v413, %v409
    %v646 = vpack.c.b16 %v414, %v410
    %v647 = vpack.c.b16 %v419, %v415
    %v648 = vpack.c.b16 %v420, %v416
    %v649 = vpack.c.b16 %v421, %v417
    %v650 = vpack.c.b16 %v422, %v418
    %v651 = vpack.c.b16 %v427, %v423
    %v652 = vpack.c.b16 %v428, %v424
    %v653 = vpack.c.b16 %v429, %v425
    %v654 = vpack.c.b16 %v430, %v426
    %v655 = vpack.c.b16 %v435, %v431
    %v656 = vpack.c.b16 %v436, %v432
    %v657 = vpack.c.b16 %v437, %v433
    %v658 = vpack.c.b16 %v438, %v434
    %v659 = vpack.c.b16 %v443, %v439
    %v660 = vpack.c.b16 %v444, %v440
    %v661 = vpack.c.b16 %v445, %v441
    %v662 = vpack.c.b16 %v446, %v442
    %v663 = vpack.c.b16 %v451, %v447
    %v664 = vpack.c.b16 %v452, %v448
    %v665 = vpack.c.b16 %v453, %v449
    %v666 = vpack.c.b16 %v454, %v450
    %v667 = vpack.c.b16 %v459, %v455
    %v668 = vpack.c.b16 %v460, %v456
    %v669 = vpack.c.b16 %v461, %v457
    %v670 = vpack.c.b16 %v462, %v458
    %v671 = vpack.c.b16 %v467, %v463
    %v672 = vpack.c.b16 %v468, %v464
    %v673 = vpack.c.b16 %v469, %v465
    %v674 = vpack.c.b16 %v470, %v466
    %v675 = vpack.c.b16 %v475, %v471
    %v676 = vpack.c.b16 %v476, %v472
    %v677 = vpack.c.b16 %v477, %v473
    %v678 = vpack.c.b16 %v478, %v474
    %v679 = vpack.c.b16 %v483, %v479
    %v680 = vpack.c.b16 %v484, %v480
    %v681 = vpack.c.b16 %v485, %v481
    %v682 = vpack.c.b16 %v486, %v482
    %v683 = vpack.c.b16 %v491, %v487
    %v684 = vpack.c.b16 %v492, %v488
    %v685 = vpack.c.b16 %v493, %v489
    %v686 = vpack.c.b16 %v494, %v490
    %v687 = vpack.c.b16 %v499, %v495
    %v688 = vpack.c.b16 %v500, %v496
    %v689 = vpack.c.b16 %v501, %v497
    %v690 = vpack.c.b16 %v502, %v498
    %v691 = vpack.c.b16 %v507, %v503
    %v692 = vpack.c.b16 %v508, %v504
    %v693 = vpack.c.b16 %v509, %v505
    %v694 = vpack.c.b16 %v510, %v506
    %v695 = vpack.c.b16 %v515, %v511
    %v696 = vpack.c.b16 %v516, %v512
    %v697 = vpack.c.b16 %v517, %v513
    %v698 = vpack.c.b16 %v518, %v514
    %v699 = vpack.c.b16 %v523, %v519
    %v700 = vpack.c.b16 %v524, %v520
    %v701 = vpack.c.b16 %v525, %v521
    %v702 = vpack.c.b16 %v526, %v522
    %v703 = vpack.c.b16 %v531, %v527
    %v704 = vpack.c.b16 %v532, %v528
    %v705 = vpack.c.b16 %v533, %v529
    %v706 = vpack.c.b16 %v534, %v530
    %v707 = vpack.c.b16 %v539, %v535
    %v708 = vpack.c.b16 %v540, %v536
    %v709 = vpack.c.b16 %v541, %v537
    %v710 = vpack.c.b16 %v542, %v538
    %v711 = vpack.c.b16 %v547, %v543
    %v712 = vpack.c.b16 %v548, %v544
    %v713 = vpack.c.b16 %v549, %v545
    %v714 = vpack.c.b16 %v550, %v546
    %v715 = vpack.c.b16 %v555, %v551
    %v716 = vpack.c.b16 %v556, %v552
    %v717 = vpack.c.b16 %v557, %v553
    %v718 = vpack.c.b16 %v558, %v554
    %v719 = vpack.c.b16 %v563, %v559
    %v720 = vpack.c.b16 %v564, %v560
    %v721 = vpack.c.b16 %v565, %v561
    %v722 = vpack.c.b16 %v566, %v562
    %v723 = vpack.c.b16 %v571, %v567
    %v724 = vpack.c.b16 %v572, %v568
    %v725 = vpack.c.b16 %v573, %v569
    %v726 = vpack.c.b16 %v574, %v570
    %v727 = vpack.c.b16 %v579, %v575
    %v728 = vpack.c.b16 %v580, %v576
    %v729 = vpack.c.b16 %v581, %v577
    %v730 = vpack.c.b16 %v582, %v578
    %v731 = vpack.c.b16 %v587, %v583
    %v732 = vpack.c.b16 %v588, %v584
    %v733 = vpack.c.b16 %v589, %v585
    %v734 = vpack.c.b16 %v590, %v586
    %v735 = vpack.c.b16 %v595, %v591
    %v736 = vpack.c.b16 %v596, %v592
    %v737 = vpack.c.b16 %v597, %v593
    %v738 = vpack.c.b16 %v598, %v594
    %v739 = vpack.c.b16 %v603, %v599
    %v740 = vpack.c.b16 %v604, %v600
    %v741 = vpack.c.b16 %v605, %v601
    %v742 = vpack.c.b16 %v606, %v602
    %v743 = vpack.c.b16 %v611, %v607
    %v744 = vpack.c.b16 %v612, %v608
    %v745 = vpack.c.b16 %v613, %v609
    %v746 = vpack.c.b16 %v614, %v610
    %v747 = vpack.c.b16 %v619, %v615
    %v748 = vpack.c.b16 %v620, %v616
    %v749 = vpack.c.b16 %v621, %v617
    %v750 = vpack.c.b16 %v622, %v618
    %879 = vmatpush.bf16.msra.mxu0 %v651
    %880 = vmatpush.bf16.msra.mxu0 %v647
    %881 = vmatpush.bf16.msra.mxu0 %v643
    %882 = vmatpush.bf16.msra.mxu0 %v639
    %883 = vmatpush.bf16.msra.mxu0 %v635
    %884 = vmatpush.bf16.msra.mxu0 %v631
    %885 = vmatpush.bf16.msra.mxu0 %v627
    %886 = vmatpush.bf16.msra.mxu0 %v623
    %887 = vmatmul.bf16.gmra.mxu0 %v97
    %v888 = vpop.f32.mrf.mxu0
    %v889 = vadd.f32 %v231, %v888
    %v890 = vpop.f32.mrf.mxu0
    %891 = vdwg.mxu0
    %892 = vmatpush.bf16.msra.mxu0 %v683
    %893 = vmatpush.bf16.msra.mxu0 %v679
    %894 = vmatpush.bf16.msra.mxu0 %v675
    %895 = vmatpush.bf16.msra.mxu0 %v671
    %896 = vmatpush.bf16.msra.mxu0 %v667
    %897 = vmatpush.bf16.msra.mxu0 %v663
    %898 = vmatpush.bf16.msra.mxu0 %v659
    %899 = vmatpush.bf16.msra.mxu0 %v655
    %900 = vmatmul.bf16.gmra.mxu0 %v98
    %v901 = vpop.f32.mrf.mxu0
    %v902 = vadd.f32 %v889, %v901
    %v903 = vpop.f32.mrf.mxu0
    %904 = vdwg.mxu0
    %905 = vmatpush.bf16.msra.mxu0 %v715
    %906 = vmatpush.bf16.msra.mxu0 %v711
    %907 = vmatpush.bf16.msra.mxu0 %v707
    %908 = vmatpush.bf16.msra.mxu0 %v703
    %909 = vmatpush.bf16.msra.mxu0 %v699
    %910 = vmatpush.bf16.msra.mxu0 %v695
    %911 = vmatpush.bf16.msra.mxu0 %v691
    %912 = vmatpush.bf16.msra.mxu0 %v687
    %913 = vmatmul.bf16.gmra.mxu0 %v99
    %v914 = vpop.f32.mrf.mxu0
    %v915 = vadd.f32 %v902, %v914
    %v916 = vpop.f32.mrf.mxu0
    %917 = vdwg.mxu0
    %918 = vmatpush.bf16.msra.mxu0 %v747
    %919 = vmatpush.bf16.msra.mxu0 %v743
    %920 = vmatpush.bf16.msra.mxu0 %v739
    %921 = vmatpush.bf16.msra.mxu0 %v735
    %922 = vmatpush.bf16.msra.mxu0 %v731
    %923 = vmatpush.bf16.msra.mxu0 %v727
    %924 = vmatpush.bf16.msra.mxu0 %v723
    %925 = vmatpush.bf16.msra.mxu0 %v719
    %926 = vmatmul.bf16.gmra.mxu0 %v100
    %v927 = vpop.f32.mrf.mxu0
    %v928 = vadd.f32 %v915, %v927
    %v929 = vpop.f32.mrf.mxu0
    %930 = vdwg.mxu0
    %931 = vmatpush.bf16.msra.mxu0 %v652
    %932 = vmatpush.bf16.msra.mxu0 %v648
    %933 = vmatpush.bf16.msra.mxu0 %v644
    %934 = vmatpush.bf16.msra.mxu0 %v640
    %935 = vmatpush.bf16.msra.mxu0 %v636
    %936 = vmatpush.bf16.msra.mxu0 %v632
    %937 = vmatpush.bf16.msra.mxu0 %v628
    %938 = vmatpush.bf16.msra.mxu0 %v624
    %939 = vmatmul.bf16.gmra.mxu0 %v97
    %v940 = vpop.f32.mrf.mxu0
    %v941 = vadd.f32 %v232, %v940
    %v942 = vpop.f32.mrf.mxu0
    %943 = vdwg.mxu0
    %944 = vmatpush.bf16.msra.mxu0 %v684
    %945 = vmatpush.bf16.msra.mxu0 %v680
    %946 = vmatpush.bf16.msra.mxu0 %v676
    %947 = vmatpush.bf16.msra.mxu0 %v672
    %948 = vmatpush.bf16.msra.mxu0 %v668
    %949 = vmatpush.bf16.msra.mxu0 %v664
    %950 = vmatpush.bf16.msra.mxu0 %v660
    %951 = vmatpush.bf16.msra.mxu0 %v656
    %952 = vmatmul.bf16.gmra.mxu0 %v98
    %v953 = vpop.f32.mrf.mxu0
    %v954 = vadd.f32 %v941, %v953
    %v955 = vpop.f32.mrf.mxu0
    %956 = vdwg.mxu0
    %957 = vmatpush.bf16.msra.mxu0 %v716
    %958 = vmatpush.bf16.msra.mxu0 %v712
    %959 = vmatpush.bf16.msra.mxu0 %v708
    %960 = vmatpush.bf16.msra.mxu0 %v704
    %961 = vmatpush.bf16.msra.mxu0 %v700
    %962 = vmatpush.bf16.msra.mxu0 %v696
    %963 = vmatpush.bf16.msra.mxu0 %v692
    %964 = vmatpush.bf16.msra.mxu0 %v688
    %965 = vmatmul.bf16.gmra.mxu0 %v99
    %v966 = vpop.f32.mrf.mxu0
    %v967 = vadd.f32 %v954, %v966
    %v968 = vpop.f32.mrf.mxu0
    %969 = vdwg.mxu0
    %970 = vmatpush.bf16.msra.mxu0 %v748
    %971 = vmatpush.bf16.msra.mxu0 %v744
    %972 = vmatpush.bf16.msra.mxu0 %v740
    %973 = vmatpush.bf16.msra.mxu0 %v736
    %974 = vmatpush.bf16.msra.mxu0 %v732
    %975 = vmatpush.bf16.msra.mxu0 %v728
    %976 = vmatpush.bf16.msra.mxu0 %v724
    %977 = vmatpush.bf16.msra.mxu0 %v720
    %978 = vmatmul.bf16.gmra.mxu0 %v100
    %v979 = vpop.f32.mrf.mxu0
    %v980 = vadd.f32 %v967, %v979
    %v981 = vpop.f32.mrf.mxu0
    %982 = vdwg.mxu0
    %983 = vmatpush.bf16.msra.mxu0 %v653
    %984 = vmatpush.bf16.msra.mxu0 %v649
    %985 = vmatpush.bf16.msra.mxu0 %v645
    %986 = vmatpush.bf16.msra.mxu0 %v641
    %987 = vmatpush.bf16.msra.mxu0 %v637
    %988 = vmatpush.bf16.msra.mxu0 %v633
    %989 = vmatpush.bf16.msra.mxu0 %v629
    %990 = vmatpush.bf16.msra.mxu0 %v625
    %991 = vmatmul.bf16.gmra.mxu0 %v97
    %v992 = vpop.f32.mrf.mxu0
    %v993 = vadd.f32 %v233, %v992
    %v994 = vpop.f32.mrf.mxu0
    %995 = vdwg.mxu0
    %996 = vmatpush.bf16.msra.mxu0 %v685
    %997 = vmatpush.bf16.msra.mxu0 %v681
    %998 = vmatpush.bf16.msra.mxu0 %v677
    %999 = vmatpush.bf16.msra.mxu0 %v673
    %1000 = vmatpush.bf16.msra.mxu0 %v669
    %1001 = vmatpush.bf16.msra.mxu0 %v665
    %1002 = vmatpush.bf16.msra.mxu0 %v661
    %1003 = vmatpush.bf16.msra.mxu0 %v657
    %1004 = vmatmul.bf16.gmra.mxu0 %v98
    %v1005 = vpop.f32.mrf.mxu0
    %v1006 = vadd.f32 %v993, %v1005
    %v1007 = vpop.f32.mrf.mxu0
    %1008 = vdwg.mxu0
    %1009 = vmatpush.bf16.msra.mxu0 %v717
    %1010 = vmatpush.bf16.msra.mxu0 %v713
    %1011 = vmatpush.bf16.msra.mxu0 %v709
    %1012 = vmatpush.bf16.msra.mxu0 %v705
    %1013 = vmatpush.bf16.msra.mxu0 %v701
    %1014 = vmatpush.bf16.msra.mxu0 %v697
    %1015 = vmatpush.bf16.msra.mxu0 %v693
    %1016 = vmatpush.bf16.msra.mxu0 %v689
    %1017 = vmatmul.bf16.gmra.mxu0 %v99
    %v1018 = vpop.f32.mrf.mxu0
    %v1019 = vadd.f32 %v1006, %v1018
    %v1020 = vpop.f32.mrf.mxu0
    %1021 = vdwg.mxu0
    %1022 = vmatpush.bf16.msra.mxu0 %v749
    %1023 = vmatpush.bf16.msra.mxu0 %v745
    %1024 = vmatpush.bf16.msra.mxu0 %v741
    %1025 = vmatpush.bf16.msra.mxu0 %v737
    %1026 = vmatpush.bf16.msra.mxu0 %v733
    %1027 = vmatpush.bf16.msra.mxu0 %v729
    %1028 = vmatpush.bf16.msra.mxu0 %v725
    %1029 = vmatpush.bf16.msra.mxu0 %v721
    %1030 = vmatmul.bf16.gmra.mxu0 %v100
    %v1031 = vpop.f32.mrf.mxu0
    %v1032 = vadd.f32 %v1019, %v1031
    %v1033 = vpop.f32.mrf.mxu0
    %1034 = vdwg.mxu0
    %1035 = vmatpush.bf16.msra.mxu0 %v654
    %1036 = vmatpush.bf16.msra.mxu0 %v650
    %1037 = vmatpush.bf16.msra.mxu0 %v646
    %1038 = vmatpush.bf16.msra.mxu0 %v642
    %1039 = vmatpush.bf16.msra.mxu0 %v638
    %1040 = vmatpush.bf16.msra.mxu0 %v634
    %1041 = vmatpush.bf16.msra.mxu0 %v630
    %1042 = vmatpush.bf16.msra.mxu0 %v626
    %1043 = vmatmul.bf16.gmra.mxu0 %v97
    %v1044 = vpop.f32.mrf.mxu0
    %v1045 = vadd.f32 %v234, %v1044
    %v1046 = vpop.f32.mrf.mxu0
    %1047 = vdwg.mxu0
    %1048 = vmatpush.bf16.msra.mxu0 %v686
    %1049 = vmatpush.bf16.msra.mxu0 %v682
    %1050 = vmatpush.bf16.msra.mxu0 %v678
    %1051 = vmatpush.bf16.msra.mxu0 %v674
    %1052 = vmatpush.bf16.msra.mxu0 %v670
    %1053 = vmatpush.bf16.msra.mxu0 %v666
    %1054 = vmatpush.bf16.msra.mxu0 %v662
    %1055 = vmatpush.bf16.msra.mxu0 %v658
    %1056 = vmatmul.bf16.gmra.mxu0 %v98
    %v1057 = vpop.f32.mrf.mxu0
    %v1058 = vadd.f32 %v1045, %v1057
    %v1059 = vpop.f32.mrf.mxu0
    %1060 = vdwg.mxu0
    %1061 = vmatpush.bf16.msra.mxu0 %v718
    %1062 = vmatpush.bf16.msra.mxu0 %v714
    %1063 = vmatpush.bf16.msra.mxu0 %v710
    %1064 = vmatpush.bf16.msra.mxu0 %v706
    %1065 = vmatpush.bf16.msra.mxu0 %v702
    %1066 = vmatpush.bf16.msra.mxu0 %v698
    %1067 = vmatpush.bf16.msra.mxu0 %v694
    %1068 = vmatpush.bf16.msra.mxu0 %v690
    %1069 = vmatmul.bf16.gmra.mxu0 %v99
    %v1070 = vpop.f32.mrf.mxu0
    %v1071 = vadd.f32 %v1058, %v1070
    %v1072 = vpop.f32.mrf.mxu0
    %1073 = vdwg.mxu0
    %1074 = vmatpush.bf16.msra.mxu0 %v750
    %1075 = vmatpush.bf16.msra.mxu0 %v746
    %1076 = vmatpush.bf16.msra.mxu0 %v742
    %1077 = vmatpush.bf16.msra.mxu0 %v738
    %1078 = vmatpush.bf16.msra.mxu0 %v734
    %1079 = vmatpush.bf16.msra.mxu0 %v730
    %1080 = vmatpush.bf16.msra.mxu0 %v726
    %1081 = vmatpush.bf16.msra.mxu0 %v722
    %1082 = vmatmul.bf16.gmra.mxu0 %v100
    %v1083 = vpop.f32.mrf.mxu0
    %v1084 = vadd.f32 %v1071, %v1083
    %v1085 = vpop.f32.mrf.mxu0
    %1086 = vdwg.mxu0
    %v1087 = vmax.f32 %v928, 0.0
    %v1088 = vmax.f32 %v980, 0.0
    %v1089 = vmax.f32 %v1032, 0.0
    %v1090 = vmax.f32 %v1084, 0.0
    %v1091 = vpack.c.bf16 %v1087, %v1087
    %v1092 = vpack.c.bf16 %v1088, %v1088
    %v1093 = vpack.c.bf16 %v1089, %v1089
    %v1094 = vpack.c.bf16 %v1090, %v1090
    %v1095 = vld [vmem:[#allocation8] sm:$0xff]
    %v1096 = vld [vmem:[#allocation8 + $0x8] sm:$0xff]
    %v1097 = vld [vmem:[#allocation8 + $0x10] sm:$0xff]
    %v1098 = vld [vmem:[#allocation8 + $0x18] sm:$0xff]
    %v1099 = vld [vmem:[#allocation8 + $0x20] sm:$0xff]
    %v1100 = vld [vmem:[#allocation8 + $0x28] sm:$0xff]
    %v1101 = vld [vmem:[#allocation8 + $0x30] sm:$0xff]
    %v1102 = vld [vmem:[#allocation8 + $0x38] sm:$0xff]
    %v1103 = vld [vmem:[#allocation8 + $0x40] sm:$0xff]
    %v1104 = vld [vmem:[#allocation8 + $0x48] sm:$0xff]
    %v1105 = vld [vmem:[#allocation8 + $0x50] sm:$0xff]
    %v1106 = vld [vmem:[#allocation8 + $0x58] sm:$0xff]
    %v1107 = vld [vmem:[#allocation8 + $0x60] sm:$0xff]
    %v1108 = vld [vmem:[#allocation8 + $0x68] sm:$0xff]
    %v1109 = vld [vmem:[#allocation8 + $0x70] sm:$0xff]
    %v1110 = vld [vmem:[#allocation8 + $0x78] sm:$0xff]
    %v1111 = vld [vmem:[#allocation8 + $0x80] sm:$0xff]
    %v1112 = vld [vmem:[#allocation8 + $0x88] sm:$0xff]
    %v1113 = vld [vmem:[#allocation8 + $0x90] sm:$0xff]
    %v1114 = vld [vmem:[#allocation8 + $0x98] sm:$0xff]
    %v1115 = vld [vmem:[#allocation8 + $0xa0] sm:$0xff]
    %v1116 = vld [vmem:[#allocation8 + $0xa8] sm:$0xff]
    %v1117 = vld [vmem:[#allocation8 + $0xb0] sm:$0xff]
    %v1118 = vld [vmem:[#allocation8 + $0xb8] sm:$0xff]
    %v1119 = vld [vmem:[#allocation8 + $0xc0] sm:$0xff]
    %v1120 = vld [vmem:[#allocation8 + $0xc8] sm:$0xff]
    %v1121 = vld [vmem:[#allocation8 + $0xd0] sm:$0xff]
    %v1122 = vld [vmem:[#allocation8 + $0xd8] sm:$0xff]
    %v1123 = vld [vmem:[#allocation8 + $0xe0] sm:$0xff]
    %v1124 = vld [vmem:[#allocation8 + $0xe8] sm:$0xff]
    %v1125 = vld [vmem:[#allocation8 + $0xf0] sm:$0xff]
    %v1126 = vld [vmem:[#allocation8 + $0xf8] sm:$0xff]
    %v1127 = vld [vmem:[#allocation8 + $0x100] sm:$0xff]
    %v1128 = vld [vmem:[#allocation8 + $0x108] sm:$0xff]
    %v1129 = vld [vmem:[#allocation8 + $0x110] sm:$0xff]
    %v1130 = vld [vmem:[#allocation8 + $0x118] sm:$0xff]
    %v1131 = vld [vmem:[#allocation8 + $0x120] sm:$0xff]
    %v1132 = vld [vmem:[#allocation8 + $0x128] sm:$0xff]
    %v1133 = vld [vmem:[#allocation8 + $0x130] sm:$0xff]
    %v1134 = vld [vmem:[#allocation8 + $0x138] sm:$0xff]
    %v1135 = vld [vmem:[#allocation8 + $0x140] sm:$0xff]
    %v1136 = vld [vmem:[#allocation8 + $0x148] sm:$0xff]
    %v1137 = vld [vmem:[#allocation8 + $0x150] sm:$0xff]
    %v1138 = vld [vmem:[#allocation8 + $0x158] sm:$0xff]
    %v1139 = vld [vmem:[#allocation8 + $0x160] sm:$0xff]
    %v1140 = vld [vmem:[#allocation8 + $0x168] sm:$0xff]
    %v1141 = vld [vmem:[#allocation8 + $0x170] sm:$0xff]
    %v1142 = vld [vmem:[#allocation8 + $0x178] sm:$0xff]
    %v1143 = vld [vmem:[#allocation8 + $0x180] sm:$0xff]
    %v1144 = vld [vmem:[#allocation8 + $0x188] sm:$0xff]
    %v1145 = vld [vmem:[#allocation8 + $0x190] sm:$0xff]
    %v1146 = vld [vmem:[#allocation8 + $0x198] sm:$0xff]
    %v1147 = vld [vmem:[#allocation8 + $0x1a0] sm:$0xff]
    %v1148 = vld [vmem:[#allocation8 + $0x1a8] sm:$0xff]
    %v1149 = vld [vmem:[#allocation8 + $0x1b0] sm:$0xff]
    %v1150 = vld [vmem:[#allocation8 + $0x1b8] sm:$0xff]
    %v1151 = vld [vmem:[#allocation8 + $0x1c0] sm:$0xff]
    %v1152 = vld [vmem:[#allocation8 + $0x1c8] sm:$0xff]
    %v1153 = vld [vmem:[#allocation8 + $0x1d0] sm:$0xff]
    %v1154 = vld [vmem:[#allocation8 + $0x1d8] sm:$0xff]
    %v1155 = vld [vmem:[#allocation8 + $0x1e0] sm:$0xff]
    %v1156 = vld [vmem:[#allocation8 + $0x1e8] sm:$0xff]
    %v1157 = vld [vmem:[#allocation8 + $0x1f0] sm:$0xff]
    %v1158 = vld [vmem:[#allocation8 + $0x1f8] sm:$0xff]
    %v1159 = vld [vmem:[#allocation8 + $0x200] sm:$0xff]
    %v1160 = vld [vmem:[#allocation8 + $0x208] sm:$0xff]
    %v1161 = vld [vmem:[#allocation8 + $0x210] sm:$0xff]
    %v1162 = vld [vmem:[#allocation8 + $0x218] sm:$0xff]
    %v1163 = vld [vmem:[#allocation8 + $0x220] sm:$0xff]
    %v1164 = vld [vmem:[#allocation8 + $0x228] sm:$0xff]
    %v1165 = vld [vmem:[#allocation8 + $0x230] sm:$0xff]
    %v1166 = vld [vmem:[#allocation8 + $0x238] sm:$0xff]
    %v1167 = vld [vmem:[#allocation8 + $0x240] sm:$0xff]
    %v1168 = vld [vmem:[#allocation8 + $0x248] sm:$0xff]
    %v1169 = vld [vmem:[#allocation8 + $0x250] sm:$0xff]
    %v1170 = vld [vmem:[#allocation8 + $0x258] sm:$0xff]
    %v1171 = vld [vmem:[#allocation8 + $0x260] sm:$0xff]
    %v1172 = vld [vmem:[#allocation8 + $0x268] sm:$0xff]
    %v1173 = vld [vmem:[#allocation8 + $0x270] sm:$0xff]
    %v1174 = vld [vmem:[#allocation8 + $0x278] sm:$0xff]
    %v1175 = vld [vmem:[#allocation8 + $0x280] sm:$0xff]
    %v1176 = vld [vmem:[#allocation8 + $0x288] sm:$0xff]
    %v1177 = vld [vmem:[#allocation8 + $0x290] sm:$0xff]
    %v1178 = vld [vmem:[#allocation8 + $0x298] sm:$0xff]
    %v1179 = vld [vmem:[#allocation8 + $0x2a0] sm:$0xff]
    %v1180 = vld [vmem:[#allocation8 + $0x2a8] sm:$0xff]
    %v1181 = vld [vmem:[#allocation8 + $0x2b0] sm:$0xff]
    %v1182 = vld [vmem:[#allocation8 + $0x2b8] sm:$0xff]
    %v1183 = vld [vmem:[#allocation8 + $0x2c0] sm:$0xff]
    %v1184 = vld [vmem:[#allocation8 + $0x2c8] sm:$0xff]
    %v1185 = vld [vmem:[#allocation8 + $0x2d0] sm:$0xff]
    %v1186 = vld [vmem:[#allocation8 + $0x2d8] sm:$0xff]
    %v1187 = vld [vmem:[#allocation8 + $0x2e0] sm:$0xff]
    %v1188 = vld [vmem:[#allocation8 + $0x2e8] sm:$0xff]
    %v1189 = vld [vmem:[#allocation8 + $0x2f0] sm:$0xff]
    %v1190 = vld [vmem:[#allocation8 + $0x2f8] sm:$0xff]
    %v1191 = vld [vmem:[#allocation8 + $0x300] sm:$0xff]
    %v1192 = vld [vmem:[#allocation8 + $0x308] sm:$0xff]
    %v1193 = vld [vmem:[#allocation8 + $0x310] sm:$0xff]
    %v1194 = vld [vmem:[#allocation8 + $0x318] sm:$0xff]
    %v1195 = vld [vmem:[#allocation8 + $0x320] sm:$0xff]
    %v1196 = vld [vmem:[#allocation8 + $0x328] sm:$0xff]
    %v1197 = vld [vmem:[#allocation8 + $0x330] sm:$0xff]
    %v1198 = vld [vmem:[#allocation8 + $0x338] sm:$0xff]
    %v1199 = vld [vmem:[#allocation8 + $0x340] sm:$0xff]
    %v1200 = vld [vmem:[#allocation8 + $0x348] sm:$0xff]
    %v1201 = vld [vmem:[#allocation8 + $0x350] sm:$0xff]
    %v1202 = vld [vmem:[#allocation8 + $0x358] sm:$0xff]
    %v1203 = vld [vmem:[#allocation8 + $0x360] sm:$0xff]
    %v1204 = vld [vmem:[#allocation8 + $0x368] sm:$0xff]
    %v1205 = vld [vmem:[#allocation8 + $0x370] sm:$0xff]
    %v1206 = vld [vmem:[#allocation8 + $0x378] sm:$0xff]
    %v1207 = vld [vmem:[#allocation8 + $0x380] sm:$0xff]
    %v1208 = vld [vmem:[#allocation8 + $0x388] sm:$0xff]
    %v1209 = vld [vmem:[#allocation8 + $0x390] sm:$0xff]
    %v1210 = vld [vmem:[#allocation8 + $0x398] sm:$0xff]
    %v1211 = vld [vmem:[#allocation8 + $0x3a0] sm:$0xff]
    %v1212 = vld [vmem:[#allocation8 + $0x3a8] sm:$0xff]
    %v1213 = vld [vmem:[#allocation8 + $0x3b0] sm:$0xff]
    %v1214 = vld [vmem:[#allocation8 + $0x3b8] sm:$0xff]
    %v1215 = vld [vmem:[#allocation8 + $0x3c0] sm:$0xff]
    %v1216 = vld [vmem:[#allocation8 + $0x3c8] sm:$0xff]
    %v1217 = vld [vmem:[#allocation8 + $0x3d0] sm:$0xff]
    %v1218 = vld [vmem:[#allocation8 + $0x3d8] sm:$0xff]
    %v1219 = vld [vmem:[#allocation8 + $0x3e0] sm:$0xff]
    %v1220 = vld [vmem:[#allocation8 + $0x3e8] sm:$0xff]
    %v1221 = vld [vmem:[#allocation8 + $0x3f0] sm:$0xff]
    %v1222 = vld [vmem:[#allocation8 + $0x3f8] sm:$0xff]
    %v1223 = vld [vmem:[#allocation8 + $0x400] sm:$0xff]
    %v1224 = vld [vmem:[#allocation8 + $0x408] sm:$0xff]
    %v1225 = vld [vmem:[#allocation8 + $0x410] sm:$0xff]
    %v1226 = vld [vmem:[#allocation8 + $0x418] sm:$0xff]
    %v1227 = vld [vmem:[#allocation8 + $0x420] sm:$0xff]
    %v1228 = vld [vmem:[#allocation8 + $0x428] sm:$0xff]
    %v1229 = vld [vmem:[#allocation8 + $0x430] sm:$0xff]
    %v1230 = vld [vmem:[#allocation8 + $0x438] sm:$0xff]
    %v1231 = vld [vmem:[#allocation8 + $0x440] sm:$0xff]
    %v1232 = vld [vmem:[#allocation8 + $0x448] sm:$0xff]
    %v1233 = vld [vmem:[#allocation8 + $0x450] sm:$0xff]
    %v1234 = vld [vmem:[#allocation8 + $0x458] sm:$0xff]
    %v1235 = vld [vmem:[#allocation8 + $0x460] sm:$0xff]
    %v1236 = vld [vmem:[#allocation8 + $0x468] sm:$0xff]
    %v1237 = vld [vmem:[#allocation8 + $0x470] sm:$0xff]
    %v1238 = vld [vmem:[#allocation8 + $0x478] sm:$0xff]
    %v1239 = vld [vmem:[#allocation8 + $0x480] sm:$0xff]
    %v1240 = vld [vmem:[#allocation8 + $0x488] sm:$0xff]
    %v1241 = vld [vmem:[#allocation8 + $0x490] sm:$0xff]
    %v1242 = vld [vmem:[#allocation8 + $0x498] sm:$0xff]
    %v1243 = vld [vmem:[#allocation8 + $0x4a0] sm:$0xff]
    %v1244 = vld [vmem:[#allocation8 + $0x4a8] sm:$0xff]
    %v1245 = vld [vmem:[#allocation8 + $0x4b0] sm:$0xff]
    %v1246 = vld [vmem:[#allocation8 + $0x4b8] sm:$0xff]
    %v1247 = vld [vmem:[#allocation8 + $0x4c0] sm:$0xff]
    %v1248 = vld [vmem:[#allocation8 + $0x4c8] sm:$0xff]
    %v1249 = vld [vmem:[#allocation8 + $0x4d0] sm:$0xff]
    %v1250 = vld [vmem:[#allocation8 + $0x4d8] sm:$0xff]
    %v1251 = vld [vmem:[#allocation8 + $0x4e0] sm:$0xff]
    %v1252 = vld [vmem:[#allocation8 + $0x4e8] sm:$0xff]
    %v1253 = vld [vmem:[#allocation8 + $0x4f0] sm:$0xff]
    %v1254 = vld [vmem:[#allocation8 + $0x4f8] sm:$0xff]
    %v1255 = vld [vmem:[#allocation8 + $0x500] sm:$0xff]
    %v1256 = vld [vmem:[#allocation8 + $0x508] sm:$0xff]
    %v1257 = vld [vmem:[#allocation8 + $0x510] sm:$0xff]
    %v1258 = vld [vmem:[#allocation8 + $0x518] sm:$0xff]
    %v1259 = vld [vmem:[#allocation8 + $0x520] sm:$0xff]
    %v1260 = vld [vmem:[#allocation8 + $0x528] sm:$0xff]
    %v1261 = vld [vmem:[#allocation8 + $0x530] sm:$0xff]
    %v1262 = vld [vmem:[#allocation8 + $0x538] sm:$0xff]
    %v1263 = vld [vmem:[#allocation8 + $0x540] sm:$0xff]
    %v1264 = vld [vmem:[#allocation8 + $0x548] sm:$0xff]
    %v1265 = vld [vmem:[#allocation8 + $0x550] sm:$0xff]
    %v1266 = vld [vmem:[#allocation8 + $0x558] sm:$0xff]
    %v1267 = vld [vmem:[#allocation8 + $0x560] sm:$0xff]
    %v1268 = vld [vmem:[#allocation8 + $0x568] sm:$0xff]
    %v1269 = vld [vmem:[#allocation8 + $0x570] sm:$0xff]
    %v1270 = vld [vmem:[#allocation8 + $0x578] sm:$0xff]
    %v1271 = vld [vmem:[#allocation8 + $0x580] sm:$0xff]
    %v1272 = vld [vmem:[#allocation8 + $0x588] sm:$0xff]
    %v1273 = vld [vmem:[#allocation8 + $0x590] sm:$0xff]
    %v1274 = vld [vmem:[#allocation8 + $0x598] sm:$0xff]
    %v1275 = vld [vmem:[#allocation8 + $0x5a0] sm:$0xff]
    %v1276 = vld [vmem:[#allocation8 + $0x5a8] sm:$0xff]
    %v1277 = vld [vmem:[#allocation8 + $0x5b0] sm:$0xff]
    %v1278 = vld [vmem:[#allocation8 + $0x5b8] sm:$0xff]
    %v1279 = vld [vmem:[#allocation8 + $0x5c0] sm:$0xff]
    %v1280 = vld [vmem:[#allocation8 + $0x5c8] sm:$0xff]
    %v1281 = vld [vmem:[#allocation8 + $0x5d0] sm:$0xff]
    %v1282 = vld [vmem:[#allocation8 + $0x5d8] sm:$0xff]
    %v1283 = vld [vmem:[#allocation8 + $0x5e0] sm:$0xff]
    %v1284 = vld [vmem:[#allocation8 + $0x5e8] sm:$0xff]
    %v1285 = vld [vmem:[#allocation8 + $0x5f0] sm:$0xff]
    %v1286 = vld [vmem:[#allocation8 + $0x5f8] sm:$0xff]
    %v1287 = vld [vmem:[#allocation8 + $0x600] sm:$0xff]
    %v1288 = vld [vmem:[#allocation8 + $0x608] sm:$0xff]
    %v1289 = vld [vmem:[#allocation8 + $0x610] sm:$0xff]
    %v1290 = vld [vmem:[#allocation8 + $0x618] sm:$0xff]
    %v1291 = vld [vmem:[#allocation8 + $0x620] sm:$0xff]
    %v1292 = vld [vmem:[#allocation8 + $0x628] sm:$0xff]
    %v1293 = vld [vmem:[#allocation8 + $0x630] sm:$0xff]
    %v1294 = vld [vmem:[#allocation8 + $0x638] sm:$0xff]
    %v1295 = vld [vmem:[#allocation8 + $0x640] sm:$0xff]
    %v1296 = vld [vmem:[#allocation8 + $0x648] sm:$0xff]
    %v1297 = vld [vmem:[#allocation8 + $0x650] sm:$0xff]
    %v1298 = vld [vmem:[#allocation8 + $0x658] sm:$0xff]
    %v1299 = vld [vmem:[#allocation8 + $0x660] sm:$0xff]
    %v1300 = vld [vmem:[#allocation8 + $0x668] sm:$0xff]
    %v1301 = vld [vmem:[#allocation8 + $0x670] sm:$0xff]
    %v1302 = vld [vmem:[#allocation8 + $0x678] sm:$0xff]
    %v1303 = vld [vmem:[#allocation8 + $0x680] sm:$0xff]
    %v1304 = vld [vmem:[#allocation8 + $0x688] sm:$0xff]
    %v1305 = vld [vmem:[#allocation8 + $0x690] sm:$0xff]
    %v1306 = vld [vmem:[#allocation8 + $0x698] sm:$0xff]
    %v1307 = vld [vmem:[#allocation8 + $0x6a0] sm:$0xff]
    %v1308 = vld [vmem:[#allocation8 + $0x6a8] sm:$0xff]
    %v1309 = vld [vmem:[#allocation8 + $0x6b0] sm:$0xff]
    %v1310 = vld [vmem:[#allocation8 + $0x6b8] sm:$0xff]
    %v1311 = vld [vmem:[#allocation8 + $0x6c0] sm:$0xff]
    %v1312 = vld [vmem:[#allocation8 + $0x6c8] sm:$0xff]
    %v1313 = vld [vmem:[#allocation8 + $0x6d0] sm:$0xff]
    %v1314 = vld [vmem:[#allocation8 + $0x6d8] sm:$0xff]
    %v1315 = vld [vmem:[#allocation8 + $0x6e0] sm:$0xff]
    %v1316 = vld [vmem:[#allocation8 + $0x6e8] sm:$0xff]
    %v1317 = vld [vmem:[#allocation8 + $0x6f0] sm:$0xff]
    %v1318 = vld [vmem:[#allocation8 + $0x6f8] sm:$0xff]
    %v1319 = vld [vmem:[#allocation8 + $0x700] sm:$0xff]
    %v1320 = vld [vmem:[#allocation8 + $0x708] sm:$0xff]
    %v1321 = vld [vmem:[#allocation8 + $0x710] sm:$0xff]
    %v1322 = vld [vmem:[#allocation8 + $0x718] sm:$0xff]
    %v1323 = vld [vmem:[#allocation8 + $0x720] sm:$0xff]
    %v1324 = vld [vmem:[#allocation8 + $0x728] sm:$0xff]
    %v1325 = vld [vmem:[#allocation8 + $0x730] sm:$0xff]
    %v1326 = vld [vmem:[#allocation8 + $0x738] sm:$0xff]
    %v1327 = vld [vmem:[#allocation8 + $0x740] sm:$0xff]
    %v1328 = vld [vmem:[#allocation8 + $0x748] sm:$0xff]
    %v1329 = vld [vmem:[#allocation8 + $0x750] sm:$0xff]
    %v1330 = vld [vmem:[#allocation8 + $0x758] sm:$0xff]
    %v1331 = vld [vmem:[#allocation8 + $0x760] sm:$0xff]
    %v1332 = vld [vmem:[#allocation8 + $0x768] sm:$0xff]
    %v1333 = vld [vmem:[#allocation8 + $0x770] sm:$0xff]
    %v1334 = vld [vmem:[#allocation8 + $0x778] sm:$0xff]
    %v1335 = vld [vmem:[#allocation8 + $0x780] sm:$0xff]
    %v1336 = vld [vmem:[#allocation8 + $0x788] sm:$0xff]
    %v1337 = vld [vmem:[#allocation8 + $0x790] sm:$0xff]
    %v1338 = vld [vmem:[#allocation8 + $0x798] sm:$0xff]
    %v1339 = vld [vmem:[#allocation8 + $0x7a0] sm:$0xff]
    %v1340 = vld [vmem:[#allocation8 + $0x7a8] sm:$0xff]
    %v1341 = vld [vmem:[#allocation8 + $0x7b0] sm:$0xff]
    %v1342 = vld [vmem:[#allocation8 + $0x7b8] sm:$0xff]
    %v1343 = vld [vmem:[#allocation8 + $0x7c0] sm:$0xff]
    %v1344 = vld [vmem:[#allocation8 + $0x7c8] sm:$0xff]
    %v1345 = vld [vmem:[#allocation8 + $0x7d0] sm:$0xff]
    %v1346 = vld [vmem:[#allocation8 + $0x7d8] sm:$0xff]
    %v1347 = vld [vmem:[#allocation8 + $0x7e0] sm:$0xff]
    %v1348 = vld [vmem:[#allocation8 + $0x7e8] sm:$0xff]
    %v1349 = vld [vmem:[#allocation8 + $0x7f0] sm:$0xff]
    %v1350 = vld [vmem:[#allocation8 + $0x7f8] sm:$0xff]
    %v1351 = vld [vmem:[#allocation10] sm:$0xff]
    %v1353 = vperm.slane %v1351, 0
    %v1354 = vperm.slane %v1351, 1
    %v1355 = vperm.slane %v1351, 2
    %v1356 = vperm.slane %v1351, 3
    %v1357 = vperm.slane %v1351, 4
    %v1358 = vperm.slane %v1351, 5
    %v1359 = vperm.slane %v1351, 6
    %v1360 = vperm.slane %v1351, 7
    %v1625 = vunpack.c.l.b16 %v1095
    %v1626 = vunpack.c.h.b16 %v1095
    %v1627 = vunpack.c.l.b16 %v1096
    %v1628 = vunpack.c.h.b16 %v1096
    %v1629 = vunpack.c.l.b16 %v1097
    %v1630 = vunpack.c.h.b16 %v1097
    %v1631 = vunpack.c.l.b16 %v1098
    %v1632 = vunpack.c.h.b16 %v1098
    %v1633 = vunpack.c.l.b16 %v1099
    %v1634 = vunpack.c.h.b16 %v1099
    %v1635 = vunpack.c.l.b16 %v1100
    %v1636 = vunpack.c.h.b16 %v1100
    %v1637 = vunpack.c.l.b16 %v1101
    %v1638 = vunpack.c.h.b16 %v1101
    %v1639 = vunpack.c.l.b16 %v1102
    %v1640 = vunpack.c.h.b16 %v1102
    %v1641 = vunpack.c.l.b16 %v1103
    %v1642 = vunpack.c.h.b16 %v1103
    %v1643 = vunpack.c.l.b16 %v1104
    %v1644 = vunpack.c.h.b16 %v1104
    %v1645 = vunpack.c.l.b16 %v1105
    %v1646 = vunpack.c.h.b16 %v1105
    %v1647 = vunpack.c.l.b16 %v1106
    %v1648 = vunpack.c.h.b16 %v1106
    %v1649 = vunpack.c.l.b16 %v1107
    %v1650 = vunpack.c.h.b16 %v1107
    %v1651 = vunpack.c.l.b16 %v1108
    %v1652 = vunpack.c.h.b16 %v1108
    %v1653 = vunpack.c.l.b16 %v1109
    %v1654 = vunpack.c.h.b16 %v1109
    %v1655 = vunpack.c.l.b16 %v1110
    %v1656 = vunpack.c.h.b16 %v1110
    %v1657 = vunpack.c.l.b16 %v1111
    %v1658 = vunpack.c.h.b16 %v1111
    %v1659 = vunpack.c.l.b16 %v1112
    %v1660 = vunpack.c.h.b16 %v1112
    %v1661 = vunpack.c.l.b16 %v1113
    %v1662 = vunpack.c.h.b16 %v1113
    %v1663 = vunpack.c.l.b16 %v1114
    %v1664 = vunpack.c.h.b16 %v1114
    %v1665 = vunpack.c.l.b16 %v1115
    %v1666 = vunpack.c.h.b16 %v1115
    %v1667 = vunpack.c.l.b16 %v1116
    %v1668 = vunpack.c.h.b16 %v1116
    %v1669 = vunpack.c.l.b16 %v1117
    %v1670 = vunpack.c.h.b16 %v1117
    %v1671 = vunpack.c.l.b16 %v1118
    %v1672 = vunpack.c.h.b16 %v1118
    %v1673 = vunpack.c.l.b16 %v1119
    %v1674 = vunpack.c.h.b16 %v1119
    %v1675 = vunpack.c.l.b16 %v1120
    %v1676 = vunpack.c.h.b16 %v1120
    %v1677 = vunpack.c.l.b16 %v1121
    %v1678 = vunpack.c.h.b16 %v1121
    %v1679 = vunpack.c.l.b16 %v1122
    %v1680 = vunpack.c.h.b16 %v1122
    %v1681 = vunpack.c.l.b16 %v1123
    %v1682 = vunpack.c.h.b16 %v1123
    %v1683 = vunpack.c.l.b16 %v1124
    %v1684 = vunpack.c.h.b16 %v1124
    %v1685 = vunpack.c.l.b16 %v1125
    %v1686 = vunpack.c.h.b16 %v1125
    %v1687 = vunpack.c.l.b16 %v1126
    %v1688 = vunpack.c.h.b16 %v1126
    %v1689 = vunpack.c.l.b16 %v1127
    %v1690 = vunpack.c.h.b16 %v1127
    %v1691 = vunpack.c.l.b16 %v1128
    %v1692 = vunpack.c.h.b16 %v1128
    %v1693 = vunpack.c.l.b16 %v1129
    %v1694 = vunpack.c.h.b16 %v1129
    %v1695 = vunpack.c.l.b16 %v1130
    %v1696 = vunpack.c.h.b16 %v1130
    %v1697 = vunpack.c.l.b16 %v1131
    %v1698 = vunpack.c.h.b16 %v1131
    %v1699 = vunpack.c.l.b16 %v1132
    %v1700 = vunpack.c.h.b16 %v1132
    %v1701 = vunpack.c.l.b16 %v1133
    %v1702 = vunpack.c.h.b16 %v1133
    %v1703 = vunpack.c.l.b16 %v1134
    %v1704 = vunpack.c.h.b16 %v1134
    %v1705 = vunpack.c.l.b16 %v1135
    %v1706 = vunpack.c.h.b16 %v1135
    %v1707 = vunpack.c.l.b16 %v1136
    %v1708 = vunpack.c.h.b16 %v1136
    %v1709 = vunpack.c.l.b16 %v1137
    %v1710 = vunpack.c.h.b16 %v1137
    %v1711 = vunpack.c.l.b16 %v1138
    %v1712 = vunpack.c.h.b16 %v1138
    %v1713 = vunpack.c.l.b16 %v1139
    %v1714 = vunpack.c.h.b16 %v1139
    %v1715 = vunpack.c.l.b16 %v1140
    %v1716 = vunpack.c.h.b16 %v1140
    %v1717 = vunpack.c.l.b16 %v1141
    %v1718 = vunpack.c.h.b16 %v1141
    %v1719 = vunpack.c.l.b16 %v1142
    %v1720 = vunpack.c.h.b16 %v1142
    %v1721 = vunpack.c.l.b16 %v1143
    %v1722 = vunpack.c.h.b16 %v1143
    %v1723 = vunpack.c.l.b16 %v1144
    %v1724 = vunpack.c.h.b16 %v1144
    %v1725 = vunpack.c.l.b16 %v1145
    %v1726 = vunpack.c.h.b16 %v1145
    %v1727 = vunpack.c.l.b16 %v1146
    %v1728 = vunpack.c.h.b16 %v1146
    %v1729 = vunpack.c.l.b16 %v1147
    %v1730 = vunpack.c.h.b16 %v1147
    %v1731 = vunpack.c.l.b16 %v1148
    %v1732 = vunpack.c.h.b16 %v1148
    %v1733 = vunpack.c.l.b16 %v1149
    %v1734 = vunpack.c.h.b16 %v1149
    %v1735 = vunpack.c.l.b16 %v1150
    %v1736 = vunpack.c.h.b16 %v1150
    %v1737 = vunpack.c.l.b16 %v1151
    %v1738 = vunpack.c.h.b16 %v1151
    %v1739 = vunpack.c.l.b16 %v1152
    %v1740 = vunpack.c.h.b16 %v1152
    %v1741 = vunpack.c.l.b16 %v1153
    %v1742 = vunpack.c.h.b16 %v1153
    %v1743 = vunpack.c.l.b16 %v1154
    %v1744 = vunpack.c.h.b16 %v1154
    %v1745 = vunpack.c.l.b16 %v1155
    %v1746 = vunpack.c.h.b16 %v1155
    %v1747 = vunpack.c.l.b16 %v1156
    %v1748 = vunpack.c.h.b16 %v1156
    %v1749 = vunpack.c.l.b16 %v1157
    %v1750 = vunpack.c.h.b16 %v1157
    %v1751 = vunpack.c.l.b16 %v1158
    %v1752 = vunpack.c.h.b16 %v1158
    %v1753 = vunpack.c.l.b16 %v1159
    %v1754 = vunpack.c.h.b16 %v1159
    %v1755 = vunpack.c.l.b16 %v1160
    %v1756 = vunpack.c.h.b16 %v1160
    %v1757 = vunpack.c.l.b16 %v1161
    %v1758 = vunpack.c.h.b16 %v1161
    %v1759 = vunpack.c.l.b16 %v1162
    %v1760 = vunpack.c.h.b16 %v1162
    %v1761 = vunpack.c.l.b16 %v1163
    %v1762 = vunpack.c.h.b16 %v1163
    %v1763 = vunpack.c.l.b16 %v1164
    %v1764 = vunpack.c.h.b16 %v1164
    %v1765 = vunpack.c.l.b16 %v1165
    %v1766 = vunpack.c.h.b16 %v1165
    %v1767 = vunpack.c.l.b16 %v1166
    %v1768 = vunpack.c.h.b16 %v1166
    %v1769 = vunpack.c.l.b16 %v1167
    %v1770 = vunpack.c.h.b16 %v1167
    %v1771 = vunpack.c.l.b16 %v1168
    %v1772 = vunpack.c.h.b16 %v1168
    %v1773 = vunpack.c.l.b16 %v1169
    %v1774 = vunpack.c.h.b16 %v1169
    %v1775 = vunpack.c.l.b16 %v1170
    %v1776 = vunpack.c.h.b16 %v1170
    %v1777 = vunpack.c.l.b16 %v1171
    %v1778 = vunpack.c.h.b16 %v1171
    %v1779 = vunpack.c.l.b16 %v1172
    %v1780 = vunpack.c.h.b16 %v1172
    %v1781 = vunpack.c.l.b16 %v1173
    %v1782 = vunpack.c.h.b16 %v1173
    %v1783 = vunpack.c.l.b16 %v1174
    %v1784 = vunpack.c.h.b16 %v1174
    %v1785 = vunpack.c.l.b16 %v1175
    %v1786 = vunpack.c.h.b16 %v1175
    %v1787 = vunpack.c.l.b16 %v1176
    %v1788 = vunpack.c.h.b16 %v1176
    %v1789 = vunpack.c.l.b16 %v1177
    %v1790 = vunpack.c.h.b16 %v1177
    %v1791 = vunpack.c.l.b16 %v1178
    %v1792 = vunpack.c.h.b16 %v1178
    %v1793 = vunpack.c.l.b16 %v1179
    %v1794 = vunpack.c.h.b16 %v1179
    %v1795 = vunpack.c.l.b16 %v1180
    %v1796 = vunpack.c.h.b16 %v1180
    %v1797 = vunpack.c.l.b16 %v1181
    %v1798 = vunpack.c.h.b16 %v1181
    %v1799 = vunpack.c.l.b16 %v1182
    %v1800 = vunpack.c.h.b16 %v1182
    %v1801 = vunpack.c.l.b16 %v1183
    %v1802 = vunpack.c.h.b16 %v1183
    %v1803 = vunpack.c.l.b16 %v1184
    %v1804 = vunpack.c.h.b16 %v1184
    %v1805 = vunpack.c.l.b16 %v1185
    %v1806 = vunpack.c.h.b16 %v1185
    %v1807 = vunpack.c.l.b16 %v1186
    %v1808 = vunpack.c.h.b16 %v1186
    %v1809 = vunpack.c.l.b16 %v1187
    %v1810 = vunpack.c.h.b16 %v1187
    %v1811 = vunpack.c.l.b16 %v1188
    %v1812 = vunpack.c.h.b16 %v1188
    %v1813 = vunpack.c.l.b16 %v1189
    %v1814 = vunpack.c.h.b16 %v1189
    %v1815 = vunpack.c.l.b16 %v1190
    %v1816 = vunpack.c.h.b16 %v1190
    %v1817 = vunpack.c.l.b16 %v1191
    %v1818 = vunpack.c.h.b16 %v1191
    %v1819 = vunpack.c.l.b16 %v1192
    %v1820 = vunpack.c.h.b16 %v1192
    %v1821 = vunpack.c.l.b16 %v1193
    %v1822 = vunpack.c.h.b16 %v1193
    %v1823 = vunpack.c.l.b16 %v1194
    %v1824 = vunpack.c.h.b16 %v1194
    %v1825 = vunpack.c.l.b16 %v1195
    %v1826 = vunpack.c.h.b16 %v1195
    %v1827 = vunpack.c.l.b16 %v1196
    %v1828 = vunpack.c.h.b16 %v1196
    %v1829 = vunpack.c.l.b16 %v1197
    %v1830 = vunpack.c.h.b16 %v1197
    %v1831 = vunpack.c.l.b16 %v1198
    %v1832 = vunpack.c.h.b16 %v1198
    %v1833 = vunpack.c.l.b16 %v1199
    %v1834 = vunpack.c.h.b16 %v1199
    %v1835 = vunpack.c.l.b16 %v1200
    %v1836 = vunpack.c.h.b16 %v1200
    %v1837 = vunpack.c.l.b16 %v1201
    %v1838 = vunpack.c.h.b16 %v1201
    %v1839 = vunpack.c.l.b16 %v1202
    %v1840 = vunpack.c.h.b16 %v1202
    %v1841 = vunpack.c.l.b16 %v1203
    %v1842 = vunpack.c.h.b16 %v1203
    %v1843 = vunpack.c.l.b16 %v1204
    %v1844 = vunpack.c.h.b16 %v1204
    %v1845 = vunpack.c.l.b16 %v1205
    %v1846 = vunpack.c.h.b16 %v1205
    %v1847 = vunpack.c.l.b16 %v1206
    %v1848 = vunpack.c.h.b16 %v1206
    %v1849 = vunpack.c.l.b16 %v1207
    %v1850 = vunpack.c.h.b16 %v1207
    %v1851 = vunpack.c.l.b16 %v1208
    %v1852 = vunpack.c.h.b16 %v1208
    %v1853 = vunpack.c.l.b16 %v1209
    %v1854 = vunpack.c.h.b16 %v1209
    %v1855 = vunpack.c.l.b16 %v1210
    %v1856 = vunpack.c.h.b16 %v1210
    %v1857 = vunpack.c.l.b16 %v1211
    %v1858 = vunpack.c.h.b16 %v1211
    %v1859 = vunpack.c.l.b16 %v1212
    %v1860 = vunpack.c.h.b16 %v1212
    %v1861 = vunpack.c.l.b16 %v1213
    %v1862 = vunpack.c.h.b16 %v1213
    %v1863 = vunpack.c.l.b16 %v1214
    %v1864 = vunpack.c.h.b16 %v1214
    %v1865 = vunpack.c.l.b16 %v1215
    %v1866 = vunpack.c.h.b16 %v1215
    %v1867 = vunpack.c.l.b16 %v1216
    %v1868 = vunpack.c.h.b16 %v1216
    %v1869 = vunpack.c.l.b16 %v1217
    %v1870 = vunpack.c.h.b16 %v1217
    %v1871 = vunpack.c.l.b16 %v1218
    %v1872 = vunpack.c.h.b16 %v1218
    %v1873 = vunpack.c.l.b16 %v1219
    %v1874 = vunpack.c.h.b16 %v1219
    %v1875 = vunpack.c.l.b16 %v1220
    %v1876 = vunpack.c.h.b16 %v1220
    %v1877 = vunpack.c.l.b16 %v1221
    %v1878 = vunpack.c.h.b16 %v1221
    %v1879 = vunpack.c.l.b16 %v1222
    %v1880 = vunpack.c.h.b16 %v1222
    %v1881 = vunpack.c.l.b16 %v1223
    %v1882 = vunpack.c.h.b16 %v1223
    %v1883 = vunpack.c.l.b16 %v1224
    %v1884 = vunpack.c.h.b16 %v1224
    %v1885 = vunpack.c.l.b16 %v1225
    %v1886 = vunpack.c.h.b16 %v1225
    %v1887 = vunpack.c.l.b16 %v1226
    %v1888 = vunpack.c.h.b16 %v1226
    %v1889 = vunpack.c.l.b16 %v1227
    %v1890 = vunpack.c.h.b16 %v1227
    %v1891 = vunpack.c.l.b16 %v1228
    %v1892 = vunpack.c.h.b16 %v1228
    %v1893 = vunpack.c.l.b16 %v1229
    %v1894 = vunpack.c.h.b16 %v1229
    %v1895 = vunpack.c.l.b16 %v1230
    %v1896 = vunpack.c.h.b16 %v1230
    %v1897 = vunpack.c.l.b16 %v1231
    %v1898 = vunpack.c.h.b16 %v1231
    %v1899 = vunpack.c.l.b16 %v1232
    %v1900 = vunpack.c.h.b16 %v1232
    %v1901 = vunpack.c.l.b16 %v1233
    %v1902 = vunpack.c.h.b16 %v1233
    %v1903 = vunpack.c.l.b16 %v1234
    %v1904 = vunpack.c.h.b16 %v1234
    %v1905 = vunpack.c.l.b16 %v1235
    %v1906 = vunpack.c.h.b16 %v1235
    %v1907 = vunpack.c.l.b16 %v1236
    %v1908 = vunpack.c.h.b16 %v1236
    %v1909 = vunpack.c.l.b16 %v1237
    %v1910 = vunpack.c.h.b16 %v1237
    %v1911 = vunpack.c.l.b16 %v1238
    %v1912 = vunpack.c.h.b16 %v1238
    %v1913 = vunpack.c.l.b16 %v1239
    %v1914 = vunpack.c.h.b16 %v1239
    %v1915 = vunpack.c.l.b16 %v1240
    %v1916 = vunpack.c.h.b16 %v1240
    %v1917 = vunpack.c.l.b16 %v1241
    %v1918 = vunpack.c.h.b16 %v1241
    %v1919 = vunpack.c.l.b16 %v1242
    %v1920 = vunpack.c.h.b16 %v1242
    %v1921 = vunpack.c.l.b16 %v1243
    %v1922 = vunpack.c.h.b16 %v1243
    %v1923 = vunpack.c.l.b16 %v1244
    %v1924 = vunpack.c.h.b16 %v1244
    %v1925 = vunpack.c.l.b16 %v1245
    %v1926 = vunpack.c.h.b16 %v1245
    %v1927 = vunpack.c.l.b16 %v1246
    %v1928 = vunpack.c.h.b16 %v1246
    %v1929 = vunpack.c.l.b16 %v1247
    %v1930 = vunpack.c.h.b16 %v1247
    %v1931 = vunpack.c.l.b16 %v1248
    %v1932 = vunpack.c.h.b16 %v1248
    %v1933 = vunpack.c.l.b16 %v1249
    %v1934 = vunpack.c.h.b16 %v1249
    %v1935 = vunpack.c.l.b16 %v1250
    %v1936 = vunpack.c.h.b16 %v1250
    %v1937 = vunpack.c.l.b16 %v1251
    %v1938 = vunpack.c.h.b16 %v1251
    %v1939 = vunpack.c.l.b16 %v1252
    %v1940 = vunpack.c.h.b16 %v1252
    %v1941 = vunpack.c.l.b16 %v1253
    %v1942 = vunpack.c.h.b16 %v1253
    %v1943 = vunpack.c.l.b16 %v1254
    %v1944 = vunpack.c.h.b16 %v1254
    %v1945 = vunpack.c.l.b16 %v1255
    %v1946 = vunpack.c.h.b16 %v1255
    %v1947 = vunpack.c.l.b16 %v1256
    %v1948 = vunpack.c.h.b16 %v1256
    %v1949 = vunpack.c.l.b16 %v1257
    %v1950 = vunpack.c.h.b16 %v1257
    %v1951 = vunpack.c.l.b16 %v1258
    %v1952 = vunpack.c.h.b16 %v1258
    %v1953 = vunpack.c.l.b16 %v1259
    %v1954 = vunpack.c.h.b16 %v1259
    %v1955 = vunpack.c.l.b16 %v1260
    %v1956 = vunpack.c.h.b16 %v1260
    %v1957 = vunpack.c.l.b16 %v1261
    %v1958 = vunpack.c.h.b16 %v1261
    %v1959 = vunpack.c.l.b16 %v1262
    %v1960 = vunpack.c.h.b16 %v1262
    %v1961 = vunpack.c.l.b16 %v1263
    %v1962 = vunpack.c.h.b16 %v1263
    %v1963 = vunpack.c.l.b16 %v1264
    %v1964 = vunpack.c.h.b16 %v1264
    %v1965 = vunpack.c.l.b16 %v1265
    %v1966 = vunpack.c.h.b16 %v1265
    %v1967 = vunpack.c.l.b16 %v1266
    %v1968 = vunpack.c.h.b16 %v1266
    %v1969 = vunpack.c.l.b16 %v1267
    %v1970 = vunpack.c.h.b16 %v1267
    %v1971 = vunpack.c.l.b16 %v1268
    %v1972 = vunpack.c.h.b16 %v1268
    %v1973 = vunpack.c.l.b16 %v1269
    %v1974 = vunpack.c.h.b16 %v1269
    %v1975 = vunpack.c.l.b16 %v1270
    %v1976 = vunpack.c.h.b16 %v1270
    %v1977 = vunpack.c.l.b16 %v1271
    %v1978 = vunpack.c.h.b16 %v1271
    %v1979 = vunpack.c.l.b16 %v1272
    %v1980 = vunpack.c.h.b16 %v1272
    %v1981 = vunpack.c.l.b16 %v1273
    %v1982 = vunpack.c.h.b16 %v1273
    %v1983 = vunpack.c.l.b16 %v1274
    %v1984 = vunpack.c.h.b16 %v1274
    %v1985 = vunpack.c.l.b16 %v1275
    %v1986 = vunpack.c.h.b16 %v1275
    %v1987 = vunpack.c.l.b16 %v1276
    %v1988 = vunpack.c.h.b16 %v1276
    %v1989 = vunpack.c.l.b16 %v1277
    %v1990 = vunpack.c.h.b16 %v1277
    %v1991 = vunpack.c.l.b16 %v1278
    %v1992 = vunpack.c.h.b16 %v1278
    %v1993 = vunpack.c.l.b16 %v1279
    %v1994 = vunpack.c.h.b16 %v1279
    %v1995 = vunpack.c.l.b16 %v1280
    %v1996 = vunpack.c.h.b16 %v1280
    %v1997 = vunpack.c.l.b16 %v1281
    %v1998 = vunpack.c.h.b16 %v1281
    %v1999 = vunpack.c.l.b16 %v1282
    %v2000 = vunpack.c.h.b16 %v1282
    %v2001 = vunpack.c.l.b16 %v1283
    %v2002 = vunpack.c.h.b16 %v1283
    %v2003 = vunpack.c.l.b16 %v1284
    %v2004 = vunpack.c.h.b16 %v1284
    %v2005 = vunpack.c.l.b16 %v1285
    %v2006 = vunpack.c.h.b16 %v1285
    %v2007 = vunpack.c.l.b16 %v1286
    %v2008 = vunpack.c.h.b16 %v1286
    %v2009 = vunpack.c.l.b16 %v1287
    %v2010 = vunpack.c.h.b16 %v1287
    %v2011 = vunpack.c.l.b16 %v1288
    %v2012 = vunpack.c.h.b16 %v1288
    %v2013 = vunpack.c.l.b16 %v1289
    %v2014 = vunpack.c.h.b16 %v1289
    %v2015 = vunpack.c.l.b16 %v1290
    %v2016 = vunpack.c.h.b16 %v1290
    %v2017 = vunpack.c.l.b16 %v1291
    %v2018 = vunpack.c.h.b16 %v1291
    %v2019 = vunpack.c.l.b16 %v1292
    %v2020 = vunpack.c.h.b16 %v1292
    %v2021 = vunpack.c.l.b16 %v1293
    %v2022 = vunpack.c.h.b16 %v1293
    %v2023 = vunpack.c.l.b16 %v1294
    %v2024 = vunpack.c.h.b16 %v1294
    %v2025 = vunpack.c.l.b16 %v1295
    %v2026 = vunpack.c.h.b16 %v1295
    %v2027 = vunpack.c.l.b16 %v1296
    %v2028 = vunpack.c.h.b16 %v1296
    %v2029 = vunpack.c.l.b16 %v1297
    %v2030 = vunpack.c.h.b16 %v1297
    %v2031 = vunpack.c.l.b16 %v1298
    %v2032 = vunpack.c.h.b16 %v1298
    %v2033 = vunpack.c.l.b16 %v1299
    %v2034 = vunpack.c.h.b16 %v1299
    %v2035 = vunpack.c.l.b16 %v1300
    %v2036 = vunpack.c.h.b16 %v1300
    %v2037 = vunpack.c.l.b16 %v1301
    %v2038 = vunpack.c.h.b16 %v1301
    %v2039 = vunpack.c.l.b16 %v1302
    %v2040 = vunpack.c.h.b16 %v1302
    %v2041 = vunpack.c.l.b16 %v1303
    %v2042 = vunpack.c.h.b16 %v1303
    %v2043 = vunpack.c.l.b16 %v1304
    %v2044 = vunpack.c.h.b16 %v1304
    %v2045 = vunpack.c.l.b16 %v1305
    %v2046 = vunpack.c.h.b16 %v1305
    %v2047 = vunpack.c.l.b16 %v1306
    %v2048 = vunpack.c.h.b16 %v1306
    %v2049 = vunpack.c.l.b16 %v1307
    %v2050 = vunpack.c.h.b16 %v1307
    %v2051 = vunpack.c.l.b16 %v1308
    %v2052 = vunpack.c.h.b16 %v1308
    %v2053 = vunpack.c.l.b16 %v1309
    %v2054 = vunpack.c.h.b16 %v1309
    %v2055 = vunpack.c.l.b16 %v1310
    %v2056 = vunpack.c.h.b16 %v1310
    %v2057 = vunpack.c.l.b16 %v1311
    %v2058 = vunpack.c.h.b16 %v1311
    %v2059 = vunpack.c.l.b16 %v1312
    %v2060 = vunpack.c.h.b16 %v1312
    %v2061 = vunpack.c.l.b16 %v1313
    %v2062 = vunpack.c.h.b16 %v1313
    %v2063 = vunpack.c.l.b16 %v1314
    %v2064 = vunpack.c.h.b16 %v1314
    %v2065 = vunpack.c.l.b16 %v1315
    %v2066 = vunpack.c.h.b16 %v1315
    %v2067 = vunpack.c.l.b16 %v1316
    %v2068 = vunpack.c.h.b16 %v1316
    %v2069 = vunpack.c.l.b16 %v1317
    %v2070 = vunpack.c.h.b16 %v1317
    %v2071 = vunpack.c.l.b16 %v1318
    %v2072 = vunpack.c.h.b16 %v1318
    %v2073 = vunpack.c.l.b16 %v1319
    %v2074 = vunpack.c.h.b16 %v1319
    %v2075 = vunpack.c.l.b16 %v1320
    %v2076 = vunpack.c.h.b16 %v1320
    %v2077 = vunpack.c.l.b16 %v1321
    %v2078 = vunpack.c.h.b16 %v1321
    %v2079 = vunpack.c.l.b16 %v1322
    %v2080 = vunpack.c.h.b16 %v1322
    %v2081 = vunpack.c.l.b16 %v1323
    %v2082 = vunpack.c.h.b16 %v1323
    %v2083 = vunpack.c.l.b16 %v1324
    %v2084 = vunpack.c.h.b16 %v1324
    %v2085 = vunpack.c.l.b16 %v1325
    %v2086 = vunpack.c.h.b16 %v1325
    %v2087 = vunpack.c.l.b16 %v1326
    %v2088 = vunpack.c.h.b16 %v1326
    %v2089 = vunpack.c.l.b16 %v1327
    %v2090 = vunpack.c.h.b16 %v1327
    %v2091 = vunpack.c.l.b16 %v1328
    %v2092 = vunpack.c.h.b16 %v1328
    %v2093 = vunpack.c.l.b16 %v1329
    %v2094 = vunpack.c.h.b16 %v1329
    %v2095 = vunpack.c.l.b16 %v1330
    %v2096 = vunpack.c.h.b16 %v1330
    %v2097 = vunpack.c.l.b16 %v1331
    %v2098 = vunpack.c.h.b16 %v1331
    %v2099 = vunpack.c.l.b16 %v1332
    %v2100 = vunpack.c.h.b16 %v1332
    %v2101 = vunpack.c.l.b16 %v1333
    %v2102 = vunpack.c.h.b16 %v1333
    %v2103 = vunpack.c.l.b16 %v1334
    %v2104 = vunpack.c.h.b16 %v1334
    %v2105 = vunpack.c.l.b16 %v1335
    %v2106 = vunpack.c.h.b16 %v1335
    %v2107 = vunpack.c.l.b16 %v1336
    %v2108 = vunpack.c.h.b16 %v1336
    %v2109 = vunpack.c.l.b16 %v1337
    %v2110 = vunpack.c.h.b16 %v1337
    %v2111 = vunpack.c.l.b16 %v1338
    %v2112 = vunpack.c.h.b16 %v1338
    %v2113 = vunpack.c.l.b16 %v1339
    %v2114 = vunpack.c.h.b16 %v1339
    %v2115 = vunpack.c.l.b16 %v1340
    %v2116 = vunpack.c.h.b16 %v1340
    %v2117 = vunpack.c.l.b16 %v1341
    %v2118 = vunpack.c.h.b16 %v1341
    %v2119 = vunpack.c.l.b16 %v1342
    %v2120 = vunpack.c.h.b16 %v1342
    %v2121 = vunpack.c.l.b16 %v1343
    %v2122 = vunpack.c.h.b16 %v1343
    %v2123 = vunpack.c.l.b16 %v1344
    %v2124 = vunpack.c.h.b16 %v1344
    %v2125 = vunpack.c.l.b16 %v1345
    %v2126 = vunpack.c.h.b16 %v1345
    %v2127 = vunpack.c.l.b16 %v1346
    %v2128 = vunpack.c.h.b16 %v1346
    %v2129 = vunpack.c.l.b16 %v1347
    %v2130 = vunpack.c.h.b16 %v1347
    %v2131 = vunpack.c.l.b16 %v1348
    %v2132 = vunpack.c.h.b16 %v1348
    %v2133 = vunpack.c.l.b16 %v1349
    %v2134 = vunpack.c.h.b16 %v1349
    %v2135 = vunpack.c.l.b16 %v1350
    %v2136 = vunpack.c.h.b16 %v1350
    %v2137 = vpack.c.b16 %v1633, %v1625
    %v2138 = vpack.c.b16 %v1634, %v1626
    %v2139 = vpack.c.b16 %v1635, %v1627
    %v2140 = vpack.c.b16 %v1636, %v1628
    %v2141 = vpack.c.b16 %v1637, %v1629
    %v2142 = vpack.c.b16 %v1638, %v1630
    %v2143 = vpack.c.b16 %v1639, %v1631
    %v2144 = vpack.c.b16 %v1640, %v1632
    %v2145 = vpack.c.b16 %v1649, %v1641
    %v2146 = vpack.c.b16 %v1650, %v1642
    %v2147 = vpack.c.b16 %v1651, %v1643
    %v2148 = vpack.c.b16 %v1652, %v1644
    %v2149 = vpack.c.b16 %v1653, %v1645
    %v2150 = vpack.c.b16 %v1654, %v1646
    %v2151 = vpack.c.b16 %v1655, %v1647
    %v2152 = vpack.c.b16 %v1656, %v1648
    %v2153 = vpack.c.b16 %v1665, %v1657
    %v2154 = vpack.c.b16 %v1666, %v1658
    %v2155 = vpack.c.b16 %v1667, %v1659
    %v2156 = vpack.c.b16 %v1668, %v1660
    %v2157 = vpack.c.b16 %v1669, %v1661
    %v2158 = vpack.c.b16 %v1670, %v1662
    %v2159 = vpack.c.b16 %v1671, %v1663
    %v2160 = vpack.c.b16 %v1672, %v1664
    %v2161 = vpack.c.b16 %v1681, %v1673
    %v2162 = vpack.c.b16 %v1682, %v1674
    %v2163 = vpack.c.b16 %v1683, %v1675
    %v2164 = vpack.c.b16 %v1684, %v1676
    %v2165 = vpack.c.b16 %v1685, %v1677
    %v2166 = vpack.c.b16 %v1686, %v1678
    %v2167 = vpack.c.b16 %v1687, %v1679
    %v2168 = vpack.c.b16 %v1688, %v1680
    %v2169 = vpack.c.b16 %v1697, %v1689
    %v2170 = vpack.c.b16 %v1698, %v1690
    %v2171 = vpack.c.b16 %v1699, %v1691
    %v2172 = vpack.c.b16 %v1700, %v1692
    %v2173 = vpack.c.b16 %v1701, %v1693
    %v2174 = vpack.c.b16 %v1702, %v1694
    %v2175 = vpack.c.b16 %v1703, %v1695
    %v2176 = vpack.c.b16 %v1704, %v1696
    %v2177 = vpack.c.b16 %v1713, %v1705
    %v2178 = vpack.c.b16 %v1714, %v1706
    %v2179 = vpack.c.b16 %v1715, %v1707
    %v2180 = vpack.c.b16 %v1716, %v1708
    %v2181 = vpack.c.b16 %v1717, %v1709
    %v2182 = vpack.c.b16 %v1718, %v1710
    %v2183 = vpack.c.b16 %v1719, %v1711
    %v2184 = vpack.c.b16 %v1720, %v1712
    %v2185 = vpack.c.b16 %v1729, %v1721
    %v2186 = vpack.c.b16 %v1730, %v1722
    %v2187 = vpack.c.b16 %v1731, %v1723
    %v2188 = vpack.c.b16 %v1732, %v1724
    %v2189 = vpack.c.b16 %v1733, %v1725
    %v2190 = vpack.c.b16 %v1734, %v1726
    %v2191 = vpack.c.b16 %v1735, %v1727
    %v2192 = vpack.c.b16 %v1736, %v1728
    %v2193 = vpack.c.b16 %v1745, %v1737
    %v2194 = vpack.c.b16 %v1746, %v1738
    %v2195 = vpack.c.b16 %v1747, %v1739
    %v2196 = vpack.c.b16 %v1748, %v1740
    %v2197 = vpack.c.b16 %v1749, %v1741
    %v2198 = vpack.c.b16 %v1750, %v1742
    %v2199 = vpack.c.b16 %v1751, %v1743
    %v2200 = vpack.c.b16 %v1752, %v1744
    %v2201 = vpack.c.b16 %v1761, %v1753
    %v2202 = vpack.c.b16 %v1762, %v1754
    %v2203 = vpack.c.b16 %v1763, %v1755
    %v2204 = vpack.c.b16 %v1764, %v1756
    %v2205 = vpack.c.b16 %v1765, %v1757
    %v2206 = vpack.c.b16 %v1766, %v1758
    %v2207 = vpack.c.b16 %v1767, %v1759
    %v2208 = vpack.c.b16 %v1768, %v1760
    %v2209 = vpack.c.b16 %v1777, %v1769
    %v2210 = vpack.c.b16 %v1778, %v1770
    %v2211 = vpack.c.b16 %v1779, %v1771
    %v2212 = vpack.c.b16 %v1780, %v1772
    %v2213 = vpack.c.b16 %v1781, %v1773
    %v2214 = vpack.c.b16 %v1782, %v1774
    %v2215 = vpack.c.b16 %v1783, %v1775
    %v2216 = vpack.c.b16 %v1784, %v1776
    %v2217 = vpack.c.b16 %v1793, %v1785
    %v2218 = vpack.c.b16 %v1794, %v1786
    %v2219 = vpack.c.b16 %v1795, %v1787
    %v2220 = vpack.c.b16 %v1796, %v1788
    %v2221 = vpack.c.b16 %v1797, %v1789
    %v2222 = vpack.c.b16 %v1798, %v1790
    %v2223 = vpack.c.b16 %v1799, %v1791
    %v2224 = vpack.c.b16 %v1800, %v1792
    %v2225 = vpack.c.b16 %v1809, %v1801
    %v2226 = vpack.c.b16 %v1810, %v1802
    %v2227 = vpack.c.b16 %v1811, %v1803
    %v2228 = vpack.c.b16 %v1812, %v1804
    %v2229 = vpack.c.b16 %v1813, %v1805
    %v2230 = vpack.c.b16 %v1814, %v1806
    %v2231 = vpack.c.b16 %v1815, %v1807
    %v2232 = vpack.c.b16 %v1816, %v1808
    %v2233 = vpack.c.b16 %v1825, %v1817
    %v2234 = vpack.c.b16 %v1826, %v1818
    %v2235 = vpack.c.b16 %v1827, %v1819
    %v2236 = vpack.c.b16 %v1828, %v1820
    %v2237 = vpack.c.b16 %v1829, %v1821
    %v2238 = vpack.c.b16 %v1830, %v1822
    %v2239 = vpack.c.b16 %v1831, %v1823
    %v2240 = vpack.c.b16 %v1832, %v1824
    %v2241 = vpack.c.b16 %v1841, %v1833
    %v2242 = vpack.c.b16 %v1842, %v1834
    %v2243 = vpack.c.b16 %v1843, %v1835
    %v2244 = vpack.c.b16 %v1844, %v1836
    %v2245 = vpack.c.b16 %v1845, %v1837
    %v2246 = vpack.c.b16 %v1846, %v1838
    %v2247 = vpack.c.b16 %v1847, %v1839
    %v2248 = vpack.c.b16 %v1848, %v1840
    %v2249 = vpack.c.b16 %v1857, %v1849
    %v2250 = vpack.c.b16 %v1858, %v1850
    %v2251 = vpack.c.b16 %v1859, %v1851
    %v2252 = vpack.c.b16 %v1860, %v1852
    %v2253 = vpack.c.b16 %v1861, %v1853
    %v2254 = vpack.c.b16 %v1862, %v1854
    %v2255 = vpack.c.b16 %v1863, %v1855
    %v2256 = vpack.c.b16 %v1864, %v1856
    %v2257 = vpack.c.b16 %v1873, %v1865
    %v2258 = vpack.c.b16 %v1874, %v1866
    %v2259 = vpack.c.b16 %v1875, %v1867
    %v2260 = vpack.c.b16 %v1876, %v1868
    %v2261 = vpack.c.b16 %v1877, %v1869
    %v2262 = vpack.c.b16 %v1878, %v1870
    %v2263 = vpack.c.b16 %v1879, %v1871
    %v2264 = vpack.c.b16 %v1880, %v1872
    %v2265 = vpack.c.b16 %v1889, %v1881
    %v2266 = vpack.c.b16 %v1890, %v1882
    %v2267 = vpack.c.b16 %v1891, %v1883
    %v2268 = vpack.c.b16 %v1892, %v1884
    %v2269 = vpack.c.b16 %v1893, %v1885
    %v2270 = vpack.c.b16 %v1894, %v1886
    %v2271 = vpack.c.b16 %v1895, %v1887
    %v2272 = vpack.c.b16 %v1896, %v1888
    %v2273 = vpack.c.b16 %v1905, %v1897
    %v2274 = vpack.c.b16 %v1906, %v1898
    %v2275 = vpack.c.b16 %v1907, %v1899
    %v2276 = vpack.c.b16 %v1908, %v1900
    %v2277 = vpack.c.b16 %v1909, %v1901
    %v2278 = vpack.c.b16 %v1910, %v1902
    %v2279 = vpack.c.b16 %v1911, %v1903
    %v2280 = vpack.c.b16 %v1912, %v1904
    %v2281 = vpack.c.b16 %v1921, %v1913
    %v2282 = vpack.c.b16 %v1922, %v1914
    %v2283 = vpack.c.b16 %v1923, %v1915
    %v2284 = vpack.c.b16 %v1924, %v1916
    %v2285 = vpack.c.b16 %v1925, %v1917
    %v2286 = vpack.c.b16 %v1926, %v1918
    %v2287 = vpack.c.b16 %v1927, %v1919
    %v2288 = vpack.c.b16 %v1928, %v1920
    %v2289 = vpack.c.b16 %v1937, %v1929
    %v2290 = vpack.c.b16 %v1938, %v1930
    %v2291 = vpack.c.b16 %v1939, %v1931
    %v2292 = vpack.c.b16 %v1940, %v1932
    %v2293 = vpack.c.b16 %v1941, %v1933
    %v2294 = vpack.c.b16 %v1942, %v1934
    %v2295 = vpack.c.b16 %v1943, %v1935
    %v2296 = vpack.c.b16 %v1944, %v1936
    %v2297 = vpack.c.b16 %v1953, %v1945
    %v2298 = vpack.c.b16 %v1954, %v1946
    %v2299 = vpack.c.b16 %v1955, %v1947
    %v2300 = vpack.c.b16 %v1956, %v1948
    %v2301 = vpack.c.b16 %v1957, %v1949
    %v2302 = vpack.c.b16 %v1958, %v1950
    %v2303 = vpack.c.b16 %v1959, %v1951
    %v2304 = vpack.c.b16 %v1960, %v1952
    %v2305 = vpack.c.b16 %v1969, %v1961
    %v2306 = vpack.c.b16 %v1970, %v1962
    %v2307 = vpack.c.b16 %v1971, %v1963
    %v2308 = vpack.c.b16 %v1972, %v1964
    %v2309 = vpack.c.b16 %v1973, %v1965
    %v2310 = vpack.c.b16 %v1974, %v1966
    %v2311 = vpack.c.b16 %v1975, %v1967
    %v2312 = vpack.c.b16 %v1976, %v1968
    %v2313 = vpack.c.b16 %v1985, %v1977
    %v2314 = vpack.c.b16 %v1986, %v1978
    %v2315 = vpack.c.b16 %v1987, %v1979
    %v2316 = vpack.c.b16 %v1988, %v1980
    %v2317 = vpack.c.b16 %v1989, %v1981
    %v2318 = vpack.c.b16 %v1990, %v1982
    %v2319 = vpack.c.b16 %v1991, %v1983
    %v2320 = vpack.c.b16 %v1992, %v1984
    %v2321 = vpack.c.b16 %v2001, %v1993
    %v2322 = vpack.c.b16 %v2002, %v1994
    %v2323 = vpack.c.b16 %v2003, %v1995
    %v2324 = vpack.c.b16 %v2004, %v1996
    %v2325 = vpack.c.b16 %v2005, %v1997
    %v2326 = vpack.c.b16 %v2006, %v1998
    %v2327 = vpack.c.b16 %v2007, %v1999
    %v2328 = vpack.c.b16 %v2008, %v2000
    %v2329 = vpack.c.b16 %v2017, %v2009
    %v2330 = vpack.c.b16 %v2018, %v2010
    %v2331 = vpack.c.b16 %v2019, %v2011
    %v2332 = vpack.c.b16 %v2020, %v2012
    %v2333 = vpack.c.b16 %v2021, %v2013
    %v2334 = vpack.c.b16 %v2022, %v2014
    %v2335 = vpack.c.b16 %v2023, %v2015
    %v2336 = vpack.c.b16 %v2024, %v2016
    %v2337 = vpack.c.b16 %v2033, %v2025
    %v2338 = vpack.c.b16 %v2034, %v2026
    %v2339 = vpack.c.b16 %v2035, %v2027
    %v2340 = vpack.c.b16 %v2036, %v2028
    %v2341 = vpack.c.b16 %v2037, %v2029
    %v2342 = vpack.c.b16 %v2038, %v2030
    %v2343 = vpack.c.b16 %v2039, %v2031
    %v2344 = vpack.c.b16 %v2040, %v2032
    %v2345 = vpack.c.b16 %v2049, %v2041
    %v2346 = vpack.c.b16 %v2050, %v2042
    %v2347 = vpack.c.b16 %v2051, %v2043
    %v2348 = vpack.c.b16 %v2052, %v2044
    %v2349 = vpack.c.b16 %v2053, %v2045
    %v2350 = vpack.c.b16 %v2054, %v2046
    %v2351 = vpack.c.b16 %v2055, %v2047
    %v2352 = vpack.c.b16 %v2056, %v2048
    %v2353 = vpack.c.b16 %v2065, %v2057
    %v2354 = vpack.c.b16 %v2066, %v2058
    %v2355 = vpack.c.b16 %v2067, %v2059
    %v2356 = vpack.c.b16 %v2068, %v2060
    %v2357 = vpack.c.b16 %v2069, %v2061
    %v2358 = vpack.c.b16 %v2070, %v2062
    %v2359 = vpack.c.b16 %v2071, %v2063
    %v2360 = vpack.c.b16 %v2072, %v2064
    %v2361 = vpack.c.b16 %v2081, %v2073
    %v2362 = vpack.c.b16 %v2082, %v2074
    %v2363 = vpack.c.b16 %v2083, %v2075
    %v2364 = vpack.c.b16 %v2084, %v2076
    %v2365 = vpack.c.b16 %v2085, %v2077
    %v2366 = vpack.c.b16 %v2086, %v2078
    %v2367 = vpack.c.b16 %v2087, %v2079
    %v2368 = vpack.c.b16 %v2088, %v2080
    %v2369 = vpack.c.b16 %v2097, %v2089
    %v2370 = vpack.c.b16 %v2098, %v2090
    %v2371 = vpack.c.b16 %v2099, %v2091
    %v2372 = vpack.c.b16 %v2100, %v2092
    %v2373 = vpack.c.b16 %v2101, %v2093
    %v2374 = vpack.c.b16 %v2102, %v2094
    %v2375 = vpack.c.b16 %v2103, %v2095
    %v2376 = vpack.c.b16 %v2104, %v2096
    %v2377 = vpack.c.b16 %v2113, %v2105
    %v2378 = vpack.c.b16 %v2114, %v2106
    %v2379 = vpack.c.b16 %v2115, %v2107
    %v2380 = vpack.c.b16 %v2116, %v2108
    %v2381 = vpack.c.b16 %v2117, %v2109
    %v2382 = vpack.c.b16 %v2118, %v2110
    %v2383 = vpack.c.b16 %v2119, %v2111
    %v2384 = vpack.c.b16 %v2120, %v2112
    %v2385 = vpack.c.b16 %v2129, %v2121
    %v2386 = vpack.c.b16 %v2130, %v2122
    %v2387 = vpack.c.b16 %v2131, %v2123
    %v2388 = vpack.c.b16 %v2132, %v2124
    %v2389 = vpack.c.b16 %v2133, %v2125
    %v2390 = vpack.c.b16 %v2134, %v2126
    %v2391 = vpack.c.b16 %v2135, %v2127
    %v2392 = vpack.c.b16 %v2136, %v2128
    %2649 = vmatpush.bf16.msra.mxu0 %v2193
    %2650 = vmatpush.bf16.msra.mxu0 %v2185
    %2651 = vmatpush.bf16.msra.mxu0 %v2177
    %2652 = vmatpush.bf16.msra.mxu0 %v2169
    %2653 = vmatpush.bf16.msra.mxu0 %v2161
    %2654 = vmatpush.bf16.msra.mxu0 %v2153
    %2655 = vmatpush.bf16.msra.mxu0 %v2145
    %2656 = vmatpush.bf16.msra.mxu0 %v2137
    %2657 = vmatmul.bf16.gmra.mxu0 %v1091
    %v2658 = vpop.f32.mrf.mxu0
    %v2659 = vadd.f32 %v1353, %v2658
    %v2660 = vpop.f32.mrf.mxu0
    %2661 = vdwg.mxu0
    %2662 = vmatpush.bf16.msra.mxu0 %v2257
    %2663 = vmatpush.bf16.msra.mxu0 %v2249
    %2664 = vmatpush.bf16.msra.mxu0 %v2241
    %2665 = vmatpush.bf16.msra.mxu0 %v2233
    %2666 = vmatpush.bf16.msra.mxu0 %v2225
    %2667 = vmatpush.bf16.msra.mxu0 %v2217
    %2668 = vmatpush.bf16.msra.mxu0 %v2209
    %2669 = vmatpush.bf16.msra.mxu0 %v2201
    %2670 = vmatmul.bf16.gmra.mxu0 %v1092
    %v2671 = vpop.f32.mrf.mxu0
    %v2672 = vadd.f32 %v2659, %v2671
    %v2673 = vpop.f32.mrf.mxu0
    %2674 = vdwg.mxu0
    %2675 = vmatpush.bf16.msra.mxu0 %v2321
    %2676 = vmatpush.bf16.msra.mxu0 %v2313
    %2677 = vmatpush.bf16.msra.mxu0 %v2305
    %2678 = vmatpush.bf16.msra.mxu0 %v2297
    %2679 = vmatpush.bf16.msra.mxu0 %v2289
    %2680 = vmatpush.bf16.msra.mxu0 %v2281
    %2681 = vmatpush.bf16.msra.mxu0 %v2273
    %2682 = vmatpush.bf16.msra.mxu0 %v2265
    %2683 = vmatmul.bf16.gmra.mxu0 %v1093
    %v2684 = vpop.f32.mrf.mxu0
    %v2685 = vadd.f32 %v2672, %v2684
    %v2686 = vpop.f32.mrf.mxu0
    %2687 = vdwg.mxu0
    %2688 = vmatpush.bf16.msra.mxu0 %v2385
    %2689 = vmatpush.bf16.msra.mxu0 %v2377
    %2690 = vmatpush.bf16.msra.mxu0 %v2369
    %2691 = vmatpush.bf16.msra.mxu0 %v2361
    %2692 = vmatpush.bf16.msra.mxu0 %v2353
    %2693 = vmatpush.bf16.msra.mxu0 %v2345
    %2694 = vmatpush.bf16.msra.mxu0 %v2337
    %2695 = vmatpush.bf16.msra.mxu0 %v2329
    %2696 = vmatmul.bf16.gmra.mxu0 %v1094
    %v2697 = vpop.f32.mrf.mxu0
    %v2698 = vadd.f32 %v2685, %v2697
    %v2699 = vpop.f32.mrf.mxu0
    %2700 = vdwg.mxu0
    %2701 = vmatpush.bf16.msra.mxu0 %v2194
    %2702 = vmatpush.bf16.msra.mxu0 %v2186
    %2703 = vmatpush.bf16.msra.mxu0 %v2178
    %2704 = vmatpush.bf16.msra.mxu0 %v2170
    %2705 = vmatpush.bf16.msra.mxu0 %v2162
    %2706 = vmatpush.bf16.msra.mxu0 %v2154
    %2707 = vmatpush.bf16.msra.mxu0 %v2146
    %2708 = vmatpush.bf16.msra.mxu0 %v2138
    %2709 = vmatmul.bf16.gmra.mxu0 %v1091
    %v2710 = vpop.f32.mrf.mxu0
    %v2711 = vadd.f32 %v1354, %v2710
    %v2712 = vpop.f32.mrf.mxu0
    %2713 = vdwg.mxu0
    %2714 = vmatpush.bf16.msra.mxu0 %v2258
    %2715 = vmatpush.bf16.msra.mxu0 %v2250
    %2716 = vmatpush.bf16.msra.mxu0 %v2242
    %2717 = vmatpush.bf16.msra.mxu0 %v2234
    %2718 = vmatpush.bf16.msra.mxu0 %v2226
    %2719 = vmatpush.bf16.msra.mxu0 %v2218
    %2720 = vmatpush.bf16.msra.mxu0 %v2210
    %2721 = vmatpush.bf16.msra.mxu0 %v2202
    %2722 = vmatmul.bf16.gmra.mxu0 %v1092
    %v2723 = vpop.f32.mrf.mxu0
    %v2724 = vadd.f32 %v2711, %v2723
    %v2725 = vpop.f32.mrf.mxu0
    %2726 = vdwg.mxu0
    %2727 = vmatpush.bf16.msra.mxu0 %v2322
    %2728 = vmatpush.bf16.msra.mxu0 %v2314
    %2729 = vmatpush.bf16.msra.mxu0 %v2306
    %2730 = vmatpush.bf16.msra.mxu0 %v2298
    %2731 = vmatpush.bf16.msra.mxu0 %v2290
    %2732 = vmatpush.bf16.msra.mxu0 %v2282
    %2733 = vmatpush.bf16.msra.mxu0 %v2274
    %2734 = vmatpush.bf16.msra.mxu0 %v2266
    %2735 = vmatmul.bf16.gmra.mxu0 %v1093
    %v2736 = vpop.f32.mrf.mxu0
    %v2737 = vadd.f32 %v2724, %v2736
    %v2738 = vpop.f32.mrf.mxu0
    %2739 = vdwg.mxu0
    %2740 = vmatpush.bf16.msra.mxu0 %v2386
    %2741 = vmatpush.bf16.msra.mxu0 %v2378
    %2742 = vmatpush.bf16.msra.mxu0 %v2370
    %2743 = vmatpush.bf16.msra.mxu0 %v2362
    %2744 = vmatpush.bf16.msra.mxu0 %v2354
    %2745 = vmatpush.bf16.msra.mxu0 %v2346
    %2746 = vmatpush.bf16.msra.mxu0 %v2338
    %2747 = vmatpush.bf16.msra.mxu0 %v2330
    %2748 = vmatmul.bf16.gmra.mxu0 %v1094
    %v2749 = vpop.f32.mrf.mxu0
    %v2750 = vadd.f32 %v2737, %v2749
    %v2751 = vpop.f32.mrf.mxu0
    %2752 = vdwg.mxu0
    %2753 = vmatpush.bf16.msra.mxu0 %v2195
    %2754 = vmatpush.bf16.msra.mxu0 %v2187
    %2755 = vmatpush.bf16.msra.mxu0 %v2179
    %2756 = vmatpush.bf16.msra.mxu0 %v2171
    %2757 = vmatpush.bf16.msra.mxu0 %v2163
    %2758 = vmatpush.bf16.msra.mxu0 %v2155
    %2759 = vmatpush.bf16.msra.mxu0 %v2147
    %2760 = vmatpush.bf16.msra.mxu0 %v2139
    %2761 = vmatmul.bf16.gmra.mxu0 %v1091
    %v2762 = vpop.f32.mrf.mxu0
    %v2763 = vadd.f32 %v1355, %v2762
    %v2764 = vpop.f32.mrf.mxu0
    %2765 = vdwg.mxu0
    %2766 = vmatpush.bf16.msra.mxu0 %v2259
    %2767 = vmatpush.bf16.msra.mxu0 %v2251
    %2768 = vmatpush.bf16.msra.mxu0 %v2243
    %2769 = vmatpush.bf16.msra.mxu0 %v2235
    %2770 = vmatpush.bf16.msra.mxu0 %v2227
    %2771 = vmatpush.bf16.msra.mxu0 %v2219
    %2772 = vmatpush.bf16.msra.mxu0 %v2211
    %2773 = vmatpush.bf16.msra.mxu0 %v2203
    %2774 = vmatmul.bf16.gmra.mxu0 %v1092
    %v2775 = vpop.f32.mrf.mxu0
    %v2776 = vadd.f32 %v2763, %v2775
    %v2777 = vpop.f32.mrf.mxu0
    %2778 = vdwg.mxu0
    %2779 = vmatpush.bf16.msra.mxu0 %v2323
    %2780 = vmatpush.bf16.msra.mxu0 %v2315
    %2781 = vmatpush.bf16.msra.mxu0 %v2307
    %2782 = vmatpush.bf16.msra.mxu0 %v2299
    %2783 = vmatpush.bf16.msra.mxu0 %v2291
    %2784 = vmatpush.bf16.msra.mxu0 %v2283
    %2785 = vmatpush.bf16.msra.mxu0 %v2275
    %2786 = vmatpush.bf16.msra.mxu0 %v2267
    %2787 = vmatmul.bf16.gmra.mxu0 %v1093
    %v2788 = vpop.f32.mrf.mxu0
    %v2789 = vadd.f32 %v2776, %v2788
    %v2790 = vpop.f32.mrf.mxu0
    %2791 = vdwg.mxu0
    %2792 = vmatpush.bf16.msra.mxu0 %v2387
    %2793 = vmatpush.bf16.msra.mxu0 %v2379
    %2794 = vmatpush.bf16.msra.mxu0 %v2371
    %2795 = vmatpush.bf16.msra.mxu0 %v2363
    %2796 = vmatpush.bf16.msra.mxu0 %v2355
    %2797 = vmatpush.bf16.msra.mxu0 %v2347
    %2798 = vmatpush.bf16.msra.mxu0 %v2339
    %2799 = vmatpush.bf16.msra.mxu0 %v2331
    %2800 = vmatmul.bf16.gmra.mxu0 %v1094
    %v2801 = vpop.f32.mrf.mxu0
    %v2802 = vadd.f32 %v2789, %v2801
    %v2803 = vpop.f32.mrf.mxu0
    %2804 = vdwg.mxu0
    %2805 = vmatpush.bf16.msra.mxu0 %v2196
    %2806 = vmatpush.bf16.msra.mxu0 %v2188
    %2807 = vmatpush.bf16.msra.mxu0 %v2180
    %2808 = vmatpush.bf16.msra.mxu0 %v2172
    %2809 = vmatpush.bf16.msra.mxu0 %v2164
    %2810 = vmatpush.bf16.msra.mxu0 %v2156
    %2811 = vmatpush.bf16.msra.mxu0 %v2148
    %2812 = vmatpush.bf16.msra.mxu0 %v2140
    %2813 = vmatmul.bf16.gmra.mxu0 %v1091
    %v2814 = vpop.f32.mrf.mxu0
    %v2815 = vadd.f32 %v1356, %v2814
    %v2816 = vpop.f32.mrf.mxu0
    %2817 = vdwg.mxu0
    %2818 = vmatpush.bf16.msra.mxu0 %v2260
    %2819 = vmatpush.bf16.msra.mxu0 %v2252
    %2820 = vmatpush.bf16.msra.mxu0 %v2244
    %2821 = vmatpush.bf16.msra.mxu0 %v2236
    %2822 = vmatpush.bf16.msra.mxu0 %v2228
    %2823 = vmatpush.bf16.msra.mxu0 %v2220
    %2824 = vmatpush.bf16.msra.mxu0 %v2212
    %2825 = vmatpush.bf16.msra.mxu0 %v2204
    %2826 = vmatmul.bf16.gmra.mxu0 %v1092
    %v2827 = vpop.f32.mrf.mxu0
    %v2828 = vadd.f32 %v2815, %v2827
    %v2829 = vpop.f32.mrf.mxu0
    %2830 = vdwg.mxu0
    %2831 = vmatpush.bf16.msra.mxu0 %v2324
    %2832 = vmatpush.bf16.msra.mxu0 %v2316
    %2833 = vmatpush.bf16.msra.mxu0 %v2308
    %2834 = vmatpush.bf16.msra.mxu0 %v2300
    %2835 = vmatpush.bf16.msra.mxu0 %v2292
    %2836 = vmatpush.bf16.msra.mxu0 %v2284
    %2837 = vmatpush.bf16.msra.mxu0 %v2276
    %2838 = vmatpush.bf16.msra.mxu0 %v2268
    %2839 = vmatmul.bf16.gmra.mxu0 %v1093
    %v2840 = vpop.f32.mrf.mxu0
    %v2841 = vadd.f32 %v2828, %v2840
    %v2842 = vpop.f32.mrf.mxu0
    %2843 = vdwg.mxu0
    %2844 = vmatpush.bf16.msra.mxu0 %v2388
    %2845 = vmatpush.bf16.msra.mxu0 %v2380
    %2846 = vmatpush.bf16.msra.mxu0 %v2372
    %2847 = vmatpush.bf16.msra.mxu0 %v2364
    %2848 = vmatpush.bf16.msra.mxu0 %v2356
    %2849 = vmatpush.bf16.msra.mxu0 %v2348
    %2850 = vmatpush.bf16.msra.mxu0 %v2340
    %2851 = vmatpush.bf16.msra.mxu0 %v2332
    %2852 = vmatmul.bf16.gmra.mxu0 %v1094
    %v2853 = vpop.f32.mrf.mxu0
    %v2854 = vadd.f32 %v2841, %v2853
    %v2855 = vpop.f32.mrf.mxu0
    %2856 = vdwg.mxu0
    %2857 = vmatpush.bf16.msra.mxu0 %v2197
    %2858 = vmatpush.bf16.msra.mxu0 %v2189
    %2859 = vmatpush.bf16.msra.mxu0 %v2181
    %2860 = vmatpush.bf16.msra.mxu0 %v2173
    %2861 = vmatpush.bf16.msra.mxu0 %v2165
    %2862 = vmatpush.bf16.msra.mxu0 %v2157
    %2863 = vmatpush.bf16.msra.mxu0 %v2149
    %2864 = vmatpush.bf16.msra.mxu0 %v2141
    %2865 = vmatmul.bf16.gmra.mxu0 %v1091
    %v2866 = vpop.f32.mrf.mxu0
    %v2867 = vadd.f32 %v1357, %v2866
    %v2868 = vpop.f32.mrf.mxu0
    %2869 = vdwg.mxu0
    %2870 = vmatpush.bf16.msra.mxu0 %v2261
    %2871 = vmatpush.bf16.msra.mxu0 %v2253
    %2872 = vmatpush.bf16.msra.mxu0 %v2245
    %2873 = vmatpush.bf16.msra.mxu0 %v2237
    %2874 = vmatpush.bf16.msra.mxu0 %v2229
    %2875 = vmatpush.bf16.msra.mxu0 %v2221
    %2876 = vmatpush.bf16.msra.mxu0 %v2213
    %2877 = vmatpush.bf16.msra.mxu0 %v2205
    %2878 = vmatmul.bf16.gmra.mxu0 %v1092
    %v2879 = vpop.f32.mrf.mxu0
    %v2880 = vadd.f32 %v2867, %v2879
    %v2881 = vpop.f32.mrf.mxu0
    %2882 = vdwg.mxu0
    %2883 = vmatpush.bf16.msra.mxu0 %v2325
    %2884 = vmatpush.bf16.msra.mxu0 %v2317
    %2885 = vmatpush.bf16.msra.mxu0 %v2309
    %2886 = vmatpush.bf16.msra.mxu0 %v2301
    %2887 = vmatpush.bf16.msra.mxu0 %v2293
    %2888 = vmatpush.bf16.msra.mxu0 %v2285
    %2889 = vmatpush.bf16.msra.mxu0 %v2277
    %2890 = vmatpush.bf16.msra.mxu0 %v2269
    %2891 = vmatmul.bf16.gmra.mxu0 %v1093
    %v2892 = vpop.f32.mrf.mxu0
    %v2893 = vadd.f32 %v2880, %v2892
    %v2894 = vpop.f32.mrf.mxu0
    %2895 = vdwg.mxu0
    %2896 = vmatpush.bf16.msra.mxu0 %v2389
    %2897 = vmatpush.bf16.msra.mxu0 %v2381
    %2898 = vmatpush.bf16.msra.mxu0 %v2373
    %2899 = vmatpush.bf16.msra.mxu0 %v2365
    %2900 = vmatpush.bf16.msra.mxu0 %v2357
    %2901 = vmatpush.bf16.msra.mxu0 %v2349
    %2902 = vmatpush.bf16.msra.mxu0 %v2341
    %2903 = vmatpush.bf16.msra.mxu0 %v2333
    %2904 = vmatmul.bf16.gmra.mxu0 %v1094
    %v2905 = vpop.f32.mrf.mxu0
    %v2906 = vadd.f32 %v2893, %v2905
    %v2907 = vpop.f32.mrf.mxu0
    %2908 = vdwg.mxu0
    %2909 = vmatpush.bf16.msra.mxu0 %v2198
    %2910 = vmatpush.bf16.msra.mxu0 %v2190
    %2911 = vmatpush.bf16.msra.mxu0 %v2182
    %2912 = vmatpush.bf16.msra.mxu0 %v2174
    %2913 = vmatpush.bf16.msra.mxu0 %v2166
    %2914 = vmatpush.bf16.msra.mxu0 %v2158
    %2915 = vmatpush.bf16.msra.mxu0 %v2150
    %2916 = vmatpush.bf16.msra.mxu0 %v2142
    %2917 = vmatmul.bf16.gmra.mxu0 %v1091
    %v2918 = vpop.f32.mrf.mxu0
    %v2919 = vadd.f32 %v1358, %v2918
    %v2920 = vpop.f32.mrf.mxu0
    %2921 = vdwg.mxu0
    %2922 = vmatpush.bf16.msra.mxu0 %v2262
    %2923 = vmatpush.bf16.msra.mxu0 %v2254
    %2924 = vmatpush.bf16.msra.mxu0 %v2246
    %2925 = vmatpush.bf16.msra.mxu0 %v2238
    %2926 = vmatpush.bf16.msra.mxu0 %v2230
    %2927 = vmatpush.bf16.msra.mxu0 %v2222
    %2928 = vmatpush.bf16.msra.mxu0 %v2214
    %2929 = vmatpush.bf16.msra.mxu0 %v2206
    %2930 = vmatmul.bf16.gmra.mxu0 %v1092
    %v2931 = vpop.f32.mrf.mxu0
    %v2932 = vadd.f32 %v2919, %v2931
    %v2933 = vpop.f32.mrf.mxu0
    %2934 = vdwg.mxu0
    %2935 = vmatpush.bf16.msra.mxu0 %v2326
    %2936 = vmatpush.bf16.msra.mxu0 %v2318
    %2937 = vmatpush.bf16.msra.mxu0 %v2310
    %2938 = vmatpush.bf16.msra.mxu0 %v2302
    %2939 = vmatpush.bf16.msra.mxu0 %v2294
    %2940 = vmatpush.bf16.msra.mxu0 %v2286
    %2941 = vmatpush.bf16.msra.mxu0 %v2278
    %2942 = vmatpush.bf16.msra.mxu0 %v2270
    %2943 = vmatmul.bf16.gmra.mxu0 %v1093
    %v2944 = vpop.f32.mrf.mxu0
    %v2945 = vadd.f32 %v2932, %v2944
    %v2946 = vpop.f32.mrf.mxu0
    %2947 = vdwg.mxu0
    %2948 = vmatpush.bf16.msra.mxu0 %v2390
    %2949 = vmatpush.bf16.msra.mxu0 %v2382
    %2950 = vmatpush.bf16.msra.mxu0 %v2374
    %2951 = vmatpush.bf16.msra.mxu0 %v2366
    %2952 = vmatpush.bf16.msra.mxu0 %v2358
    %2953 = vmatpush.bf16.msra.mxu0 %v2350
    %2954 = vmatpush.bf16.msra.mxu0 %v2342
    %2955 = vmatpush.bf16.msra.mxu0 %v2334
    %2956 = vmatmul.bf16.gmra.mxu0 %v1094
    %v2957 = vpop.f32.mrf.mxu0
    %v2958 = vadd.f32 %v2945, %v2957
    %v2959 = vpop.f32.mrf.mxu0
    %2960 = vdwg.mxu0
    %2961 = vmatpush.bf16.msra.mxu0 %v2199
    %2962 = vmatpush.bf16.msra.mxu0 %v2191
    %2963 = vmatpush.bf16.msra.mxu0 %v2183
    %2964 = vmatpush.bf16.msra.mxu0 %v2175
    %2965 = vmatpush.bf16.msra.mxu0 %v2167
    %2966 = vmatpush.bf16.msra.mxu0 %v2159
    %2967 = vmatpush.bf16.msra.mxu0 %v2151
    %2968 = vmatpush.bf16.msra.mxu0 %v2143
    %2969 = vmatmul.bf16.gmra.mxu0 %v1091
    %v2970 = vpop.f32.mrf.mxu0
    %v2971 = vadd.f32 %v1359, %v2970
    %v2972 = vpop.f32.mrf.mxu0
    %2973 = vdwg.mxu0
    %2974 = vmatpush.bf16.msra.mxu0 %v2263
    %2975 = vmatpush.bf16.msra.mxu0 %v2255
    %2976 = vmatpush.bf16.msra.mxu0 %v2247
    %2977 = vmatpush.bf16.msra.mxu0 %v2239
    %2978 = vmatpush.bf16.msra.mxu0 %v2231
    %2979 = vmatpush.bf16.msra.mxu0 %v2223
    %2980 = vmatpush.bf16.msra.mxu0 %v2215
    %2981 = vmatpush.bf16.msra.mxu0 %v2207
    %2982 = vmatmul.bf16.gmra.mxu0 %v1092
    %v2983 = vpop.f32.mrf.mxu0
    %v2984 = vadd.f32 %v2971, %v2983
    %v2985 = vpop.f32.mrf.mxu0
    %2986 = vdwg.mxu0
    %2987 = vmatpush.bf16.msra.mxu0 %v2327
    %2988 = vmatpush.bf16.msra.mxu0 %v2319
    %2989 = vmatpush.bf16.msra.mxu0 %v2311
    %2990 = vmatpush.bf16.msra.mxu0 %v2303
    %2991 = vmatpush.bf16.msra.mxu0 %v2295
    %2992 = vmatpush.bf16.msra.mxu0 %v2287
    %2993 = vmatpush.bf16.msra.mxu0 %v2279
    %2994 = vmatpush.bf16.msra.mxu0 %v2271
    %2995 = vmatmul.bf16.gmra.mxu0 %v1093
    %v2996 = vpop.f32.mrf.mxu0
    %v2997 = vadd.f32 %v2984, %v2996
    %v2998 = vpop.f32.mrf.mxu0
    %2999 = vdwg.mxu0
    %3000 = vmatpush.bf16.msra.mxu0 %v2391
    %3001 = vmatpush.bf16.msra.mxu0 %v2383
    %3002 = vmatpush.bf16.msra.mxu0 %v2375
    %3003 = vmatpush.bf16.msra.mxu0 %v2367
    %3004 = vmatpush.bf16.msra.mxu0 %v2359
    %3005 = vmatpush.bf16.msra.mxu0 %v2351
    %3006 = vmatpush.bf16.msra.mxu0 %v2343
    %3007 = vmatpush.bf16.msra.mxu0 %v2335
    %3008 = vmatmul.bf16.gmra.mxu0 %v1094
    %v3009 = vpop.f32.mrf.mxu0
    %v3010 = vadd.f32 %v2997, %v3009
    %v3011 = vpop.f32.mrf.mxu0
    %3012 = vdwg.mxu0
    %3013 = vmatpush.bf16.msra.mxu0 %v2200
    %3014 = vmatpush.bf16.msra.mxu0 %v2192
    %3015 = vmatpush.bf16.msra.mxu0 %v2184
    %3016 = vmatpush.bf16.msra.mxu0 %v2176
    %3017 = vmatpush.bf16.msra.mxu0 %v2168
    %3018 = vmatpush.bf16.msra.mxu0 %v2160
    %3019 = vmatpush.bf16.msra.mxu0 %v2152
    %3020 = vmatpush.bf16.msra.mxu0 %v2144
    %3021 = vmatmul.bf16.gmra.mxu0 %v1091
    %v3022 = vpop.f32.mrf.mxu0
    %v3023 = vadd.f32 %v1360, %v3022
    %v3024 = vpop.f32.mrf.mxu0
    %3025 = vdwg.mxu0
    %3026 = vmatpush.bf16.msra.mxu0 %v2264
    %3027 = vmatpush.bf16.msra.mxu0 %v2256
    %3028 = vmatpush.bf16.msra.mxu0 %v2248
    %3029 = vmatpush.bf16.msra.mxu0 %v2240
    %3030 = vmatpush.bf16.msra.mxu0 %v2232
    %3031 = vmatpush.bf16.msra.mxu0 %v2224
    %3032 = vmatpush.bf16.msra.mxu0 %v2216
    %3033 = vmatpush.bf16.msra.mxu0 %v2208
    %3034 = vmatmul.bf16.gmra.mxu0 %v1092
    %v3035 = vpop.f32.mrf.mxu0
    %v3036 = vadd.f32 %v3023, %v3035
    %v3037 = vpop.f32.mrf.mxu0
    %3038 = vdwg.mxu0
    %3039 = vmatpush.bf16.msra.mxu0 %v2328
    %3040 = vmatpush.bf16.msra.mxu0 %v2320
    %3041 = vmatpush.bf16.msra.mxu0 %v2312
    %3042 = vmatpush.bf16.msra.mxu0 %v2304
    %3043 = vmatpush.bf16.msra.mxu0 %v2296
    %3044 = vmatpush.bf16.msra.mxu0 %v2288
    %3045 = vmatpush.bf16.msra.mxu0 %v2280
    %3046 = vmatpush.bf16.msra.mxu0 %v2272
    %3047 = vmatmul.bf16.gmra.mxu0 %v1093
    %v3048 = vpop.f32.mrf.mxu0
    %v3049 = vadd.f32 %v3036, %v3048
    %v3050 = vpop.f32.mrf.mxu0
    %3051 = vdwg.mxu0
    %3052 = vmatpush.bf16.msra.mxu0 %v2392
    %3053 = vmatpush.bf16.msra.mxu0 %v2384
    %3054 = vmatpush.bf16.msra.mxu0 %v2376
    %3055 = vmatpush.bf16.msra.mxu0 %v2368
    %3056 = vmatpush.bf16.msra.mxu0 %v2360
    %3057 = vmatpush.bf16.msra.mxu0 %v2352
    %3058 = vmatpush.bf16.msra.mxu0 %v2344
    %3059 = vmatpush.bf16.msra.mxu0 %v2336
    %3060 = vmatmul.bf16.gmra.mxu0 %v1094
    %v3061 = vpop.f32.mrf.mxu0
    %v3062 = vadd.f32 %v3049, %v3061
    %v3063 = vpop.f32.mrf.mxu0
    %3064 = vdwg.mxu0
    %3065 = vst [vmem:[#allocation11] sm:$0xff] %v2698
    %3066 = vst [vmem:[#allocation11 + $0x8] sm:$0xff] %v2750
    %3067 = vst [vmem:[#allocation11 + $0x10] sm:$0xff] %v2802
    %3068 = vst [vmem:[#allocation11 + $0x18] sm:$0xff] %v2854
    %3069 = vst [vmem:[#allocation11 + $0x20] sm:$0xff] %v2906
    %3070 = vst [vmem:[#allocation11 + $0x28] sm:$0xff] %v2958
    %3071 = vst [vmem:[#allocation11 + $0x30] sm:$0xff] %v3010
    %3072 = vst [vmem:[#allocation11 + $0x38] sm:$0xff] %v3062
    // Predicated region
    $region42: #{tpu_custom_call.1} parent=1 // pred_check
      _
    $region43: #{tpu_custom_call.1} parent=1 // pred_check_branch
      %3074 = sbr.rel (0) target = $region45
    $region44: #{tpu_custom_call.1} parent=1 // pred_region
      %3076 = vsyncadd [#allocation4], 0
      %s3078 = sshll.u32 [#allocation11], 4
      %s3079 = int_to_ptr.vmem [resolvable:$true] %s3078
      %s3080 = sshll.u32 %s5, 4
      %s3081 = int_to_ptr.hbm [resolvable:$true] %s3080
      %3083 = dma.vmem_to_hbm [thread:$0]  %s3079, 1024, %s3081, [#allocation4]
    $region45: #{tpu_custom_call.1} parent=1 // pred_fallthru
      _
    // Predicated region
    $region46: #{tpu_custom_call.1} parent=1 // pred_check
      _
    $region47: #{tpu_custom_call.1} parent=1 // pred_check_branch
      %3085 = sbr.rel (0) target = $region49
    $region48: #{tpu_custom_call.1} parent=1 // pred_region
      %3087 = dma.done [#allocation4], 1024
    $region49: #{tpu_custom_call.1} parent=1 // pred_fallthru
      _
    %3088 = vsyncpa [#allocation3], 1
    %3089 = vsyncpa [#allocation6], 1
    %3090 = vsyncpa [#allocation9], 1
    %3091 = vsyncpa [#allocation4], 1

</llo_original>
